<compile_context>
chip_gen: v6e
topology: v6e:2x2x1
jax: 0.10.0
libtpu: 0.0.40
codegen_flags: <defaults>
</compile_context>

<pallas_src>
import functools

import jax
import jax.numpy as jnp
from jax.experimental import pallas as pl
from jax.experimental.pallas import tpu as pltpu


def scale_prediction_kernel(x_ref, w1_ref, bnb_ref, w2_ref, b2_ref, o_ref, *, wp, c_in):
    # x_ref:  ((row_tile+3)*(W+2), C_in)  zero-padded input tile (with halo), flat spatial
    # w1_ref: (9*C_in, C_mid)             3x3 conv weights, BN scale folded in
    # bnb_ref:(1, C_mid)                  folded BN bias (f32)
    # w2_ref: (C_mid, C_out_pad)          1x1 conv weights, lane-padded to 128-multiple
    # b2_ref: (1, C_out_pad)              1x1 conv bias, lane-padded (f32)
    # o_ref:  (row_tile*(W+2), C_out_pad) lane-dense output slab for this tile
    rows = o_ref.shape[0]  # row_tile * (W + 2)

    # 3x3 conv as 9 accumulated MXU matmuls over shifted views of the padded tile.
    # No im2col is ever materialized; accumulation is in f32.
    acc = None
    for dy in range(3):
        for dx in range(3):
            tap = x_ref[pl.ds(dy * wp + dx, rows), :]             # (rows, C_in)
            wt = w1_ref[pl.ds((dy * 3 + dx) * c_in, c_in), :]     # (C_in, C_mid)
            part = jnp.dot(tap, wt, preferred_element_type=jnp.float32)
            acc = part if acc is None else acc + part

    # Folded-BatchNorm bias + LeakyReLU(0.1) in f32 on the VPU.
    y = acc + bnb_ref[...]
    y = jnp.where(y > 0, y, 0.1 * y)

    # 1x1 conv = matmul + bias; full lane-dense store.
    z = jnp.dot(y.astype(w2_ref.dtype), w2_ref[...], preferred_element_type=jnp.float32)
    o_ref[...] = (z + b2_ref[...]).astype(o_ref.dtype)


def _vmem_limit_bytes():
    cap = 128 * 1024 * 1024
    try:
        info = pltpu.get_tpu_info()
        cap = int(getattr(info, "vmem_capacity_bytes", cap))
    except Exception:
        pass
    # ~3/4 of physical, capped: ~48 MiB on v7x (64 MiB), ~96 MiB on v5e/v6e (128 MiB).
    return min((cap * 3) // 4, 100 * 1024 * 1024)


def _pick_row_tile(h, wp, max_rows=1024):
    """Largest divisor of h whose output tile (th*(W+2) rows) stays <= max_rows."""
    best = 1
    for th in range(1, h + 1):
        if h % th == 0 and th * wp <= max_rows:
            best = th
    return best


def make_params(key, in_channels, num_classes):
    c_mid = 2 * in_channels
    c_out = 3 * (num_classes + 5)
    k1, k2, k3, k4, k5, k6, k7 = jax.random.split(key, 7)
    return {
        # conv1 (3x3, no bias) in HWIO layout
        "w1": jax.random.normal(k1, (3, 3, in_channels, c_mid), jnp.float32) * 0.1,
        # BatchNorm2d(c_mid) parameters + running stats (eval semantics)
        "gamma": jax.random.uniform(k2, (c_mid,), jnp.float32, minval=0.5, maxval=1.5),
        "beta": jax.random.normal(k3, (c_mid,), jnp.float32) * 0.1,
        "mean": jax.random.normal(k4, (c_mid,), jnp.float32) * 0.1,
        "var": jax.random.uniform(k5, (c_mid,), jnp.float32, minval=0.5, maxval=1.5),
        # conv2 (1x1, with bias) as (C_mid, C_out)
        "w2": jax.random.normal(k6, (c_mid, c_out), jnp.float32) * 0.1,
        "b2": jax.random.normal(k7, (c_out,), jnp.float32) * 0.1,
    }


def scale_prediction_forward(x_nchw, params, num_classes, eps=1e-5,
                             compute_dtype=jnp.float32, row_tile=None):
    """Pallas forward of ScalePrediction.  Pass compute_dtype=jnp.bfloat16 on
    v6e/v7x to use the bf16 MXU path (f32 accumulation)."""
    n, c_in, h, w = x_nchw.shape
    c_mid = params["w1"].shape[-1]
    c_out = params["w2"].shape[-1]
    c_out_pad = ((c_out + 127) // 128) * 128   # lane-dense output stores
    wp = w + 2

    if row_tile is None:
        row_tile = _pick_row_tile(h, wp)
    assert h % row_tile == 0
    n_tiles = h // row_tile
    rows_in = (row_tile + 3) * wp     # input rows per tile, incl. halo (+1 top, +2 bottom)
    rows_out = row_tile * wp          # output rows per tile (incl. 2 junk cols per row)

    # --- glue: NCHW -> NHWC, zero-pad (1 top / 2 bottom / 1 left / 1 right), then
    # gather overlapping row-tile windows (duplicates only 3 halo rows per tile)
    # and flatten the per-tile spatial dims.
    x_nhwc = jnp.transpose(x_nchw, (0, 2, 3, 1))
    xp = jnp.pad(x_nhwc, ((0, 0), (1, 2), (1, 1), (0, 0))).astype(compute_dtype)
    row_idx = (jnp.arange(n_tiles)[:, None] * row_tile
               + jnp.arange(row_tile + 3)[None, :])                 # (n_tiles, row_tile+3)
    x_tiles = xp[:, row_idx].reshape(n, n_tiles, rows_in, c_in)

    # --- fold BatchNorm (eval running stats) scale into the 3x3 conv weights (in f32).
    bn_scale = params["gamma"] / jnp.sqrt(params["var"] + eps)          # (c_mid,)
    bn_bias = (params["beta"] - params["mean"] * bn_scale).reshape(1, c_mid)
    w1f = (params["w1"] * bn_scale).reshape(9 * c_in, c_mid).astype(compute_dtype)

    # --- pad the 1x1 conv weights/bias up to a 128-multiple of output channels.
    w2p = jnp.zeros((c_mid, c_out_pad), jnp.float32).at[:, :c_out].set(params["w2"])
    w2p = w2p.astype(compute_dtype)
    b2p = jnp.zeros((1, c_out_pad), jnp.float32).at[:, :c_out].set(params["b2"][None, :])

    # NOTE for the deepest YOLO scale (13x13, C_in=1024): add a per-tap K grid
    # axis ("arbitrary") with w1 blocked (C_in, C_mid) + pl.when-init/finalize
    # accumulator, and/or pipeline_mode=pl.Buffered(1) on the constant weight
    # specs, so the 37.7 MiB bf16 w1 never needs to be fully VMEM-resident.
    kernel = functools.partial(scale_prediction_kernel, wp=wp, c_in=c_in)
    out_flat = pl.pallas_call(
        kernel,
        out_shape=jax.ShapeDtypeStruct((n, n_tiles, rows_out, c_out_pad), jnp.float32),
        grid=(n, n_tiles),
        in_specs=[
            pl.BlockSpec((None, None, rows_in, c_in), lambda i, j: (i, j, 0, 0)),
            pl.BlockSpec((9 * c_in, c_mid), lambda i, j: (0, 0)),
            pl.BlockSpec((1, c_mid), lambda i, j: (0, 0)),
            pl.BlockSpec((c_mid, c_out_pad), lambda i, j: (0, 0)),
            pl.BlockSpec((1, c_out_pad), lambda i, j: (0, 0)),
        ],
        out_specs=pl.BlockSpec((None, None, rows_out, c_out_pad),
                               lambda i, j: (i, j, 0, 0)),
        compiler_params=pltpu.CompilerParams(
            dimension_semantics=("parallel", "parallel"),
            vmem_limit_bytes=_vmem_limit_bytes(),
        ),
    )(x_tiles, w1f, bn_bias, w2p, b2p)

    # --- glue: drop junk columns + channel padding, reshape to the YOLO head layout.
    out = out_flat.reshape(n, h, wp, c_out_pad)[:, :, :w, :c_out]
    out = out.reshape(n, h, w, 3, num_classes + 5)
    return jnp.transpose(out, (0, 3, 1, 2, 4))


def reference_forward(x_nchw, params, num_classes, eps=1e-5):
    """Pure-JAX reference of the PyTorch ScalePrediction forward (BN eval)."""
    x = jnp.transpose(x_nchw, (0, 2, 3, 1))
    y = jax.lax.conv_general_dilated(
        x, params["w1"], (1, 1), "SAME",
        dimension_numbers=("NHWC", "HWIO", "NHWC"))
    scale = params["gamma"] / jnp.sqrt(params["var"] + eps)
    y = (y - params["mean"]) * scale + params["beta"]
    y = jnp.where(y > 0, y, 0.1 * y)
    c_mid, c_out = params["w2"].shape
    z = jax.lax.conv_general_dilated(
        y, params["w2"].reshape(1, 1, c_mid, c_out), (1, 1), "VALID",
        dimension_numbers=("NHWC", "HWIO", "NHWC")) + params["b2"]
    n, h, w, _ = x.shape
    out = z.reshape(n, h, w, 3, num_classes + 5)
    return jnp.transpose(out, (0, 3, 1, 2, 4))


if __name__ == "__main__":
    in_channels = 4
    num_classes = 3
    batch, height, width = 2, 16, 16

    key = jax.random.PRNGKey(0)
    kx, kp = jax.random.split(key)
    x = jax.random.normal(kx, (batch, in_channels, height, width), jnp.float32)
    params = make_params(kp, in_channels, num_classes)

    ref = reference_forward(x, params, num_classes)

    # f32 path, auto row tile (single tile per image at this small size).
    out = jax.block_until_ready(scale_prediction_forward(x, params, num_classes))
    assert out.shape == (batch, 3, height, width, num_classes + 5), out.shape
    assert jnp.allclose(out, ref, atol=1e-4, rtol=1e-4), \
        float(jnp.max(jnp.abs(out - ref)))

    # f32 path with an explicit small row tile — exercises the multi-tile halo path.
    out_t = jax.block_until_ready(
        scale_prediction_forward(x, params, num_classes, row_tile=4))
    assert jnp.allclose(out_t, ref, atol=1e-4, rtol=1e-4), \
        float(jnp.max(jnp.abs(out_t - ref)))

    # bf16 MXU path (v6e/v7x perf variant): bf16 matmul inputs, f32 accumulation.
    out_bf16 = jax.block_until_ready(
        scale_prediction_forward(x, params, num_classes, compute_dtype=jnp.bfloat16))
    assert out_bf16.shape == (batch, 3, height, width, num_classes + 5)
    assert jnp.allclose(out_bf16, ref, atol=1e-1, rtol=1e-1), \
        float(jnp.max(jnp.abs(out_bf16 - ref)))

    print("KERNEL_OK")
</pallas_src>

<mosaic_0001>
module attributes {stable_mosaic.version = 11 : i64} {
  func.func @scale_prediction_kernel(%arg0: i32, %arg1: i32, %arg2: memref<1x1x342x4xf32, #tpu.memory_space<vmem>>, %arg3: memref<36x8xf32, #tpu.memory_space<vmem>>, %arg4: memref<1x8xf32, #tpu.memory_space<vmem>>, %arg5: memref<8x128xf32, #tpu.memory_space<vmem>>, %arg6: memref<1x128xf32, #tpu.memory_space<vmem>>, %arg7: memref<1x1x288x128xf32, #tpu.memory_space<vmem>>) attributes {dimension_semantics = [#tpu.dimension_semantics<parallel>, #tpu.dimension_semantics<parallel>], iteration_bounds = array<i64: 2, 1>, scalar_prefetch = 0 : i64, scratch_operands = 0 : i64, tpu.core_type = #tpu.core_type<tc>, window_params = [{transform_indices = @transform_0, window_bounds = array<i64: 1, 1, 342, 4>}, {pipeline_mode = #tpu.pipeline_mode<synchronous>, transform_indices = @transform_1, window_bounds = array<i64: 36, 8>}, {pipeline_mode = #tpu.pipeline_mode<synchronous>, transform_indices = @transform_2, window_bounds = array<i64: 1, 8>}, {pipeline_mode = #tpu.pipeline_mode<synchronous>, transform_indices = @transform_3, window_bounds = array<i64: 8, 128>}, {pipeline_mode = #tpu.pipeline_mode<synchronous>, transform_indices = @transform_4, window_bounds = array<i64: 1, 128>}, {transform_indices = @transform_5, window_bounds = array<i64: 1, 1, 288, 128>}]} {
    %c0 = arith.constant 0 : index
    %c0_0 = arith.constant 0 : index
    %c0_1 = arith.constant 0 : index
    %c0_2 = arith.constant 0 : index
    %0 = vector.load %arg2[%c0, %c0_0, %c0_1, %c0_2] : memref<1x1x342x4xf32, #tpu.memory_space<vmem>>, vector<1x1x288x4xf32>
    %1 = vector.shape_cast %0 : vector<1x1x288x4xf32> to vector<288x4xf32>
    %c0_3 = arith.constant 0 : index
    %c0_4 = arith.constant 0 : index
    %2 = vector.load %arg3[%c0_3, %c0_4] : memref<36x8xf32, #tpu.memory_space<vmem>>, vector<4x8xf32>
    %cst = arith.constant dense<0.000000e+00> : vector<288x8xf32>
    %3 = tpu.matmul %1, %2, %cst {dimension_numbers = #tpu.dot_dimension_numbers<[1], [0], [0], [1], [0, 0, 1, 1], [], []>} : vector<288x4xf32>, vector<4x8xf32>, vector<288x8xf32> -> vector<288x8xf32>
    %c0_5 = arith.constant 0 : index
    %c0_6 = arith.constant 0 : index
    %c1 = arith.constant 1 : index
    %c0_7 = arith.constant 0 : index
    %4 = vector.load %arg2[%c0_5, %c0_6, %c1, %c0_7] : memref<1x1x342x4xf32, #tpu.memory_space<vmem>>, vector<1x1x288x4xf32>
    %5 = vector.shape_cast %4 : vector<1x1x288x4xf32> to vector<288x4xf32>
    %c4 = arith.constant 4 : index
    %c0_8 = arith.constant 0 : index
    %6 = vector.load %arg3[%c4, %c0_8] : memref<36x8xf32, #tpu.memory_space<vmem>>, vector<4x8xf32>
    %cst_9 = arith.constant dense<0.000000e+00> : vector<288x8xf32>
    %7 = tpu.matmul %5, %6, %cst_9 {dimension_numbers = #tpu.dot_dimension_numbers<[1], [0], [0], [1], [0, 0, 1, 1], [], []>} : vector<288x4xf32>, vector<4x8xf32>, vector<288x8xf32> -> vector<288x8xf32>
    %8 = arith.addf %3, %7 : vector<288x8xf32>
    %c0_10 = arith.constant 0 : index
    %c0_11 = arith.constant 0 : index
    %c2 = arith.constant 2 : index
    %c0_12 = arith.constant 0 : index
    %9 = vector.load %arg2[%c0_10, %c0_11, %c2, %c0_12] : memref<1x1x342x4xf32, #tpu.memory_space<vmem>>, vector<1x1x288x4xf32>
    %10 = vector.shape_cast %9 : vector<1x1x288x4xf32> to vector<288x4xf32>
    %c8 = arith.constant 8 : index
    %c0_13 = arith.constant 0 : index
    %11 = vector.load %arg3[%c8, %c0_13] : memref<36x8xf32, #tpu.memory_space<vmem>>, vector<4x8xf32>
    %cst_14 = arith.constant dense<0.000000e+00> : vector<288x8xf32>
    %12 = tpu.matmul %10, %11, %cst_14 {dimension_numbers = #tpu.dot_dimension_numbers<[1], [0], [0], [1], [0, 0, 1, 1], [], []>} : vector<288x4xf32>, vector<4x8xf32>, vector<288x8xf32> -> vector<288x8xf32>
    %13 = arith.addf %8, %12 : vector<288x8xf32>
    %c0_15 = arith.constant 0 : index
    %c0_16 = arith.constant 0 : index
    %c18 = arith.constant 18 : index
    %c0_17 = arith.constant 0 : index
    %14 = vector.load %arg2[%c0_15, %c0_16, %c18, %c0_17] : memref<1x1x342x4xf32, #tpu.memory_space<vmem>>, vector<1x1x288x4xf32>
    %15 = vector.shape_cast %14 : vector<1x1x288x4xf32> to vector<288x4xf32>
    %c12 = arith.constant 12 : index
    %c0_18 = arith.constant 0 : index
    %16 = vector.load %arg3[%c12, %c0_18] : memref<36x8xf32, #tpu.memory_space<vmem>>, vector<4x8xf32>
    %cst_19 = arith.constant dense<0.000000e+00> : vector<288x8xf32>
    %17 = tpu.matmul %15, %16, %cst_19 {dimension_numbers = #tpu.dot_dimension_numbers<[1], [0], [0], [1], [0, 0, 1, 1], [], []>} : vector<288x4xf32>, vector<4x8xf32>, vector<288x8xf32> -> vector<288x8xf32>
    %18 = arith.addf %13, %17 : vector<288x8xf32>
    %c0_20 = arith.constant 0 : index
    %c0_21 = arith.constant 0 : index
    %c19 = arith.constant 19 : index
    %c0_22 = arith.constant 0 : index
    %19 = vector.load %arg2[%c0_20, %c0_21, %c19, %c0_22] : memref<1x1x342x4xf32, #tpu.memory_space<vmem>>, vector<1x1x288x4xf32>
    %20 = vector.shape_cast %19 : vector<1x1x288x4xf32> to vector<288x4xf32>
    %c16 = arith.constant 16 : index
    %c0_23 = arith.constant 0 : index
    %21 = vector.load %arg3[%c16, %c0_23] : memref<36x8xf32, #tpu.memory_space<vmem>>, vector<4x8xf32>
    %cst_24 = arith.constant dense<0.000000e+00> : vector<288x8xf32>
    %22 = tpu.matmul %20, %21, %cst_24 {dimension_numbers = #tpu.dot_dimension_numbers<[1], [0], [0], [1], [0, 0, 1, 1], [], []>} : vector<288x4xf32>, vector<4x8xf32>, vector<288x8xf32> -> vector<288x8xf32>
    %23 = arith.addf %18, %22 : vector<288x8xf32>
    %c0_25 = arith.constant 0 : index
    %c0_26 = arith.constant 0 : index
    %c20 = arith.constant 20 : index
    %c0_27 = arith.constant 0 : index
    %24 = vector.load %arg2[%c0_25, %c0_26, %c20, %c0_27] : memref<1x1x342x4xf32, #tpu.memory_space<vmem>>, vector<1x1x288x4xf32>
    %25 = vector.shape_cast %24 : vector<1x1x288x4xf32> to vector<288x4xf32>
    %c20_28 = arith.constant 20 : index
    %c0_29 = arith.constant 0 : index
    %26 = vector.load %arg3[%c20_28, %c0_29] : memref<36x8xf32, #tpu.memory_space<vmem>>, vector<4x8xf32>
    %cst_30 = arith.constant dense<0.000000e+00> : vector<288x8xf32>
    %27 = tpu.matmul %25, %26, %cst_30 {dimension_numbers = #tpu.dot_dimension_numbers<[1], [0], [0], [1], [0, 0, 1, 1], [], []>} : vector<288x4xf32>, vector<4x8xf32>, vector<288x8xf32> -> vector<288x8xf32>
    %28 = arith.addf %23, %27 : vector<288x8xf32>
    %c0_31 = arith.constant 0 : index
    %c0_32 = arith.constant 0 : index
    %c36 = arith.constant 36 : index
    %c0_33 = arith.constant 0 : index
    %29 = vector.load %arg2[%c0_31, %c0_32, %c36, %c0_33] : memref<1x1x342x4xf32, #tpu.memory_space<vmem>>, vector<1x1x288x4xf32>
    %30 = vector.shape_cast %29 : vector<1x1x288x4xf32> to vector<288x4xf32>
    %c24 = arith.constant 24 : index
    %c0_34 = arith.constant 0 : index
    %31 = vector.load %arg3[%c24, %c0_34] : memref<36x8xf32, #tpu.memory_space<vmem>>, vector<4x8xf32>
    %cst_35 = arith.constant dense<0.000000e+00> : vector<288x8xf32>
    %32 = tpu.matmul %30, %31, %cst_35 {dimension_numbers = #tpu.dot_dimension_numbers<[1], [0], [0], [1], [0, 0, 1, 1], [], []>} : vector<288x4xf32>, vector<4x8xf32>, vector<288x8xf32> -> vector<288x8xf32>
    %33 = arith.addf %28, %32 : vector<288x8xf32>
    %c0_36 = arith.constant 0 : index
    %c0_37 = arith.constant 0 : index
    %c37 = arith.constant 37 : index
    %c0_38 = arith.constant 0 : index
    %34 = vector.load %arg2[%c0_36, %c0_37, %c37, %c0_38] : memref<1x1x342x4xf32, #tpu.memory_space<vmem>>, vector<1x1x288x4xf32>
    %35 = vector.shape_cast %34 : vector<1x1x288x4xf32> to vector<288x4xf32>
    %c28 = arith.constant 28 : index
    %c0_39 = arith.constant 0 : index
    %36 = vector.load %arg3[%c28, %c0_39] : memref<36x8xf32, #tpu.memory_space<vmem>>, vector<4x8xf32>
    %cst_40 = arith.constant dense<0.000000e+00> : vector<288x8xf32>
    %37 = tpu.matmul %35, %36, %cst_40 {dimension_numbers = #tpu.dot_dimension_numbers<[1], [0], [0], [1], [0, 0, 1, 1], [], []>} : vector<288x4xf32>, vector<4x8xf32>, vector<288x8xf32> -> vector<288x8xf32>
    %38 = arith.addf %33, %37 : vector<288x8xf32>
    %c0_41 = arith.constant 0 : index
    %c0_42 = arith.constant 0 : index
    %c38 = arith.constant 38 : index
    %c0_43 = arith.constant 0 : index
    %39 = vector.load %arg2[%c0_41, %c0_42, %c38, %c0_43] : memref<1x1x342x4xf32, #tpu.memory_space<vmem>>, vector<1x1x288x4xf32>
    %40 = vector.shape_cast %39 : vector<1x1x288x4xf32> to vector<288x4xf32>
    %c32 = arith.constant 32 : index
    %c0_44 = arith.constant 0 : index
    %41 = vector.load %arg3[%c32, %c0_44] : memref<36x8xf32, #tpu.memory_space<vmem>>, vector<4x8xf32>
    %cst_45 = arith.constant dense<0.000000e+00> : vector<288x8xf32>
    %42 = tpu.matmul %40, %41, %cst_45 {dimension_numbers = #tpu.dot_dimension_numbers<[1], [0], [0], [1], [0, 0, 1, 1], [], []>} : vector<288x4xf32>, vector<4x8xf32>, vector<288x8xf32> -> vector<288x8xf32>
    %43 = arith.addf %38, %42 : vector<288x8xf32>
    %c0_46 = arith.constant 0 : index
    %c0_47 = arith.constant 0 : index
    %44 = vector.load %arg4[%c0_46, %c0_47] : memref<1x8xf32, #tpu.memory_space<vmem>>, vector<1x8xf32>
    %45 = vector.broadcast %44 : vector<1x8xf32> to vector<288x8xf32>
    %46 = arith.addf %43, %45 : vector<288x8xf32>
    %cst_48 = arith.constant 0.000000e+00 : f32
    %47 = vector.broadcast %cst_48 : f32 to vector<288x8xf32>
    %48 = arith.cmpf ogt, %46, %47 : vector<288x8xf32>
    %cst_49 = arith.constant 1.000000e-01 : f32
    %49 = vector.broadcast %cst_49 : f32 to vector<288x8xf32>
    %50 = arith.mulf %49, %46 : vector<288x8xf32>
    %51 = arith.select %48, %46, %50 : vector<288x8xi1>, vector<288x8xf32>
    %c0_50 = arith.constant 0 : index
    %c0_51 = arith.constant 0 : index
    %52 = vector.load %arg5[%c0_50, %c0_51] : memref<8x128xf32, #tpu.memory_space<vmem>>, vector<8x128xf32>
    %cst_52 = arith.constant dense<0.000000e+00> : vector<288x128xf32>
    %53 = tpu.matmul %51, %52, %cst_52 {dimension_numbers = #tpu.dot_dimension_numbers<[1], [0], [0], [1], [0, 0, 1, 1], [], []>} : vector<288x8xf32>, vector<8x128xf32>, vector<288x128xf32> -> vector<288x128xf32>
    %c0_53 = arith.constant 0 : index
    %c0_54 = arith.constant 0 : index
    %54 = vector.load %arg6[%c0_53, %c0_54] : memref<1x128xf32, #tpu.memory_space<vmem>>, vector<1x128xf32>
    %55 = vector.broadcast %54 : vector<1x128xf32> to vector<288x128xf32>
    %56 = arith.addf %53, %55 : vector<288x128xf32>
    %c0_55 = arith.constant 0 : index
    %c0_56 = arith.constant 0 : index
    %c0_57 = arith.constant 0 : index
    %c0_58 = arith.constant 0 : index
    %57 = vector.load %arg7[%c0_55, %c0_56, %c0_57, %c0_58] : memref<1x1x288x128xf32, #tpu.memory_space<vmem>>, vector<1x1x288x128xf32>
    %58 = vector.shape_cast %57 : vector<1x1x288x128xf32> to vector<288x128xf32>
    %59 = vector.shape_cast %56 : vector<288x128xf32> to vector<1x1x288x128xf32>
    tpu.vector_store %arg7[%c0_55, %c0_56, %c0_57, %c0_58], %59 {strides = array<i32>} : memref<1x1x288x128xf32, #tpu.memory_space<vmem>>, vector<1x1x288x128xf32>,
    return
  }
  func.func @transform_0(%arg0: i32, %arg1: i32) -> (i32, i32, i32, i32) {
    %c0_i32 = arith.constant 0 : i32
    %c0_i32_0 = arith.constant 0 : i32
    %c0_i32_1 = arith.constant 0 : i32
    return %arg0, %arg1, %c0_i32, %c0_i32_0 : i32, i32, i32, i32
  }
  func.func @transform_1(%arg0: i32, %arg1: i32) -> (i32, i32) {
    %c0_i32 = arith.constant 0 : i32
    %c0_i32_0 = arith.constant 0 : i32
    %c0_i32_1 = arith.constant 0 : i32
    return %c0_i32, %c0_i32_0 : i32, i32
  }
  func.func @transform_2(%arg0: i32, %arg1: i32) -> (i32, i32) {
    %c0_i32 = arith.constant 0 : i32
    %c0_i32_0 = arith.constant 0 : i32
    %c0_i32_1 = arith.constant 0 : i32
    return %c0_i32, %c0_i32_0 : i32, i32
  }
  func.func @transform_3(%arg0: i32, %arg1: i32) -> (i32, i32) {
    %c0_i32 = arith.constant 0 : i32
    %c0_i32_0 = arith.constant 0 : i32
    %c0_i32_1 = arith.constant 0 : i32
    return %c0_i32, %c0_i32_0 : i32, i32
  }
  func.func @transform_4(%arg0: i32, %arg1: i32) -> (i32, i32) {
    %c0_i32 = arith.constant 0 : i32
    %c0_i32_0 = arith.constant 0 : i32
    %c0_i32_1 = arith.constant 0 : i32
    return %c0_i32, %c0_i32_0 : i32, i32
  }
  func.func @transform_5(%arg0: i32, %arg1: i32) -> (i32, i32, i32, i32) {
    %c0_i32 = arith.constant 0 : i32
    %c0_i32_0 = arith.constant 0 : i32
    %c0_i32_1 = arith.constant 0 : i32
    return %arg0, %arg1, %c0_i32, %c0_i32_0 : i32, i32, i32, i32
  }
}

</mosaic_0001>

<llo_original>
// kernel: tpu_custom_call.1
$region0: #{tpu_custom_call.1}
  #allocation0 [shape = 'u32[]', space=smem, size = 0x4, offset = 0x4, fixed_abs, tag = 'smem constant byte address 0x4 - core index']
  #allocation1 [shape = 'u32[144,128]{1,0:T(1,128)}', space=vmem, size = 0x12000, scoped, tag = 'internal scratch']
  %s0 = inlined_call_operand.vmem [shape: f32[2,1,342,4], index: 0, kind: input, shape index: {}]
  %s1 = inlined_call_operand.vmem [shape: f32[36,8], index: 1, kind: input, shape index: {}]
  %s2 = inlined_call_operand.vmem [shape: f32[1,8], index: 2, kind: input, shape index: {}]
  %s3 = inlined_call_operand.vmem [shape: f32[8,128], index: 3, kind: input, shape index: {}]
  %s4 = inlined_call_operand.vmem [shape: f32[1,128], index: 4, kind: input, shape index: {}]
  %s5 = inlined_call_operand.hbm [shape: f32[2,1,288,128], index: 5, kind: output, shape index: {}]
  %s6 = sld [smem:[#allocation0]]
  $region53: #{tpu_custom_call.1} parent=0
    _
  %s8 = ssub.s32 1, %s6
  %s9 = scalar_select 0, %s8, %s6
  $region1: #{tpu_custom_call.1} parent=0
    #allocation2 [shape = 'u8[294912]{0}', space=vmem, size = 0x48000, scoped, tag = 'output window, operand 0']
    #allocation3 [shape = 's32[2]{0}', space=sflag, size = 0x8, scoped, tag = 'scoped memory for tpu_custom_call.1']
    %10 = vsyncpa [#allocation3], 0
    %s11 = scalar_lea.sflag [#allocation3], 1
    %12 = vsyncpa %s11, 0
    loop: start=0, step=1, limit=4
    $region2: #{tpu_custom_call.1} parent=1 // loop_pre_header
      _
    $region3: #{tpu_custom_call.1} parent=1 // loop_header
      %s14 = sphi 0, %s18
      %p15 = scmp.ge.s32.totalorder %s14, 4
      %s21 = sphi 0, %s33
      %s22 = sphi 0, %s29
      %s23 = sphi 0, %s21
      %s24 = sphi 0, %s22
      %s25 = sphi 0, %s23
      %s26 = sphi 0, %s24
      %s38 = sphi 0, %s40
      %s41 = sphi 0, %s38
      %s42 = sphi 0, %s41
      %s58 = sphi 0, %s42
      %s62 = sphi 0, %s62
      %s64 = sphi 0, %s62
      %s65 = sphi 0, %s64
      %s79 = sphi 0, %s65
      %s83 = sphi 0, %s83
      %s85 = sphi 0, %s83
      %s86 = sphi 0, %s85
      %s100 = sphi 0, %s86
      %s104 = sphi 0, %s104
      %s106 = sphi 0, %s104
      %s107 = sphi 0, %s106
      %s121 = sphi 0, %s107
      %s125 = sphi 0, %s125
      %s127 = sphi 0, %s125
      %s128 = sphi 0, %s127
      %s142 = sphi 0, %s128
      %s150 = sphi 0, %s152
      %s153 = sphi 0, %s150
      %s154 = sphi 0, %s153
      %s170 = sphi 0, %s154
    $region4: #{tpu_custom_call.1} parent=1 // loop_header_branch
      %17 = sbr.rel (%p15) target = $region8
    $region5: #{tpu_custom_call.1} parent=1 // loop_body
      %s19 = ssub.s32 %s14, 1
      %s20 = ssub.s32 %s14, 2
      %s27 = sadd.s32 1, %s22
      %p28 = scmp.ge.s32.totalorder %s27, 1
      %s29 = scalar_select %p28, 0, %s27
      %s30 = sadd.s32 1, %s21
      %s31 = scalar_select %p28, %s30, %s21
      %p32 = scmp.ge.s32.totalorder %s31, 2
      %s33 = scalar_select %p32, 0, %s31
      %s34 = ssub.s32 %s21, %s33
      %s35 = ssub.s32 %s22, %s29
      %s36 = sor.u32 %s34, %s35
      %p37 = scmp.eq.s32.totalorder %s36, 0
      %s39 = sadd.s32 %s38, 1
      %s40 = scalar_select %p37, %s38, %s39
      %p43 = pneg %p37
      %p44 = scmp.eq.s32.totalorder %s14, 1
      %p45 = por %p43, %p44
      %p46 = scmp.ne.s32.totalorder %s38, %s41
      %p47 = scmp.eq.s32.totalorder %s14, 0
      %p48 = por %p46, %p47
      %p49 = scmp.ne.s32.totalorder %s38, %s41
      %p50 = scmp.eq.s32.totalorder %s19, 1
      %p51 = por %p49, %p50
      %p52 = scmp.ne.s32.totalorder %s41, %s42
      %p53 = scmp.eq.s32.totalorder %s19, 0
      %p54 = por %p52, %p53
      %p55 = scmp.ne.s32.totalorder %s41, %s42
      %p56 = scmp.eq.s32.totalorder %s20, 1
      %p57 = por %p55, %p56
      %p59 = scmp.ne.s32.totalorder %s42, %s58
      %p60 = scmp.eq.s32.totalorder %s20, 0
      %p61 = por %p59, %p60
      %s63 = sadd.s32 %s62, 1
      %p66 = scmp.eq.s32.totalorder %s14, 1
      %p67 = scmp.ne.s32.totalorder %s62, %s64
      %p68 = scmp.eq.s32.totalorder %s14, 0
      %p69 = por %p67, %p68
      %p70 = scmp.ne.s32.totalorder %s62, %s64
      %p71 = scmp.eq.s32.totalorder %s19, 1
      %p72 = por %p70, %p71
      %p73 = scmp.ne.s32.totalorder %s64, %s65
      %p74 = scmp.eq.s32.totalorder %s19, 0
      %p75 = por %p73, %p74
      %p76 = scmp.ne.s32.totalorder %s64, %s65
      %p77 = scmp.eq.s32.totalorder %s20, 1
      %p78 = por %p76, %p77
      %p80 = scmp.ne.s32.totalorder %s65, %s79
      %p81 = scmp.eq.s32.totalorder %s20, 0
      %p82 = por %p80, %p81
      %s84 = sadd.s32 %s83, 1
      %p87 = scmp.eq.s32.totalorder %s14, 1
      %p88 = scmp.ne.s32.totalorder %s83, %s85
      %p89 = scmp.eq.s32.totalorder %s14, 0
      %p90 = por %p88, %p89
      %p91 = scmp.ne.s32.totalorder %s83, %s85
      %p92 = scmp.eq.s32.totalorder %s19, 1
      %p93 = por %p91, %p92
      %p94 = scmp.ne.s32.totalorder %s85, %s86
      %p95 = scmp.eq.s32.totalorder %s19, 0
      %p96 = por %p94, %p95
      %p97 = scmp.ne.s32.totalorder %s85, %s86
      %p98 = scmp.eq.s32.totalorder %s20, 1
      %p99 = por %p97, %p98
      %p101 = scmp.ne.s32.totalorder %s86, %s100
      %p102 = scmp.eq.s32.totalorder %s20, 0
      %p103 = por %p101, %p102
      %s105 = sadd.s32 %s104, 1
      %p108 = scmp.eq.s32.totalorder %s14, 1
      %p109 = scmp.ne.s32.totalorder %s104, %s106
      %p110 = scmp.eq.s32.totalorder %s14, 0
      %p111 = por %p109, %p110
      %p112 = scmp.ne.s32.totalorder %s104, %s106
      %p113 = scmp.eq.s32.totalorder %s19, 1
      %p114 = por %p112, %p113
      %p115 = scmp.ne.s32.totalorder %s106, %s107
      %p116 = scmp.eq.s32.totalorder %s19, 0
      %p117 = por %p115, %p116
      %p118 = scmp.ne.s32.totalorder %s106, %s107
      %p119 = scmp.eq.s32.totalorder %s20, 1
      %p120 = por %p118, %p119
      %p122 = scmp.ne.s32.totalorder %s107, %s121
      %p123 = scmp.eq.s32.totalorder %s20, 0
      %p124 = por %p122, %p123
      %s126 = sadd.s32 %s125, 1
      %p129 = scmp.eq.s32.totalorder %s14, 1
      %p130 = scmp.ne.s32.totalorder %s125, %s127
      %p131 = scmp.eq.s32.totalorder %s14, 0
      %p132 = por %p130, %p131
      %p133 = scmp.ne.s32.totalorder %s125, %s127
      %p134 = scmp.eq.s32.totalorder %s19, 1
      %p135 = por %p133, %p134
      %p136 = scmp.ne.s32.totalorder %s127, %s128
      %p137 = scmp.eq.s32.totalorder %s19, 0
      %p138 = por %p136, %p137
      %p139 = scmp.ne.s32.totalorder %s127, %s128
      %p140 = scmp.eq.s32.totalorder %s20, 1
      %p141 = por %p139, %p140
      %p143 = scmp.ne.s32.totalorder %s128, %s142
      %p144 = scmp.eq.s32.totalorder %s20, 0
      %p145 = por %p143, %p144
      %s146 = ssub.s32 %s21, %s33
      %s147 = ssub.s32 %s22, %s29
      %s148 = sor.u32 %s146, %s147
      %p149 = scmp.eq.s32.totalorder %s148, 0
      %s151 = sadd.s32 %s150, 1
      %s152 = scalar_select %p149, %s150, %s151
      %p155 = pneg %p149
      %p156 = scmp.eq.s32.totalorder %s14, 1
      %p157 = por %p155, %p156
      %p158 = scmp.ne.s32.totalorder %s150, %s153
      %p159 = scmp.eq.s32.totalorder %s14, 0
      %p160 = por %p158, %p159
      %p161 = scmp.ne.s32.totalorder %s150, %s153
      %p162 = scmp.eq.s32.totalorder %s19, 1
      %p163 = por %p161, %p162
      %p164 = scmp.ne.s32.totalorder %s153, %s154
      %p165 = scmp.eq.s32.totalorder %s19, 0
      %p166 = por %p164, %p165
      %p167 = scmp.ne.s32.totalorder %s153, %s154
      %p168 = scmp.eq.s32.totalorder %s20, 1
      %p169 = por %p167, %p168
      %p171 = scmp.ne.s32.totalorder %s154, %s170
      %p172 = scmp.eq.s32.totalorder %s20, 0
      %p173 = por %p171, %p172
      %p174 = scmp.le.s32.totalorder 1, %s14
      %p175 = scmp.lt.s32.totalorder %s14, 3
      %p176 = pnand %p174, %p175
      %p177 = pneg %p176
      // Predicated region
      $region9: #{tpu_custom_call.1} parent=5 // pred_check
        _
      $region10: #{tpu_custom_call.1} parent=5 // pred_check_branch
        %179 = sbr.rel (%p176) target = $region12
      $region11: #{tpu_custom_call.1} parent=5 // pred_region
        %s180 = ssub.s32 %s14, 1
        // Predicated region
        $region13: #{tpu_custom_call.1} parent=11 // pred_check
          %p181 = pneg %p75
        $region14: #{tpu_custom_call.1} parent=11 // pred_check_branch
          %183 = sbr.rel (%p181) target = $region16
        $region15: #{tpu_custom_call.1} parent=11 // pred_region
          _
        $region16: #{tpu_custom_call.1} parent=11 // pred_fallthru
          _
        // Predicated region
        $region17: #{tpu_custom_call.1} parent=11 // pred_check
          %p184 = pneg %p96
        $region18: #{tpu_custom_call.1} parent=11 // pred_check_branch
          %186 = sbr.rel (%p184) target = $region20
        $region19: #{tpu_custom_call.1} parent=11 // pred_region
          _
        $region20: #{tpu_custom_call.1} parent=11 // pred_fallthru
          _
        // Predicated region
        $region21: #{tpu_custom_call.1} parent=11 // pred_check
          %p187 = pneg %p117
        $region22: #{tpu_custom_call.1} parent=11 // pred_check_branch
          %189 = sbr.rel (%p187) target = $region24
        $region23: #{tpu_custom_call.1} parent=11 // pred_region
          _
        $region24: #{tpu_custom_call.1} parent=11 // pred_fallthru
          _
        // Predicated region
        $region25: #{tpu_custom_call.1} parent=11 // pred_check
          %p190 = pneg %p138
        $region26: #{tpu_custom_call.1} parent=11 // pred_check_branch
          %192 = sbr.rel (%p190) target = $region28
        $region27: #{tpu_custom_call.1} parent=11 // pred_region
          _
        $region28: #{tpu_custom_call.1} parent=11 // pred_fallthru
          _
      $region12: #{tpu_custom_call.1} parent=5 // pred_fallthru
        _
      %p193 = scmp.lt.s32.totalorder %s14, 2
      // Predicated region
      $region29: #{tpu_custom_call.1} parent=5 // pred_check
        %p194 = pneg %p193
      $region30: #{tpu_custom_call.1} parent=5 // pred_check_branch
        %196 = sbr.rel (%p194) target = $region32
      $region31: #{tpu_custom_call.1} parent=5 // pred_region
        // Predicated region
        $region33: #{tpu_custom_call.1} parent=31 // pred_check
          %p197 = pneg %p48
        $region34: #{tpu_custom_call.1} parent=31 // pred_check_branch
          %199 = sbr.rel (%p197) target = $region36
        $region35: #{tpu_custom_call.1} parent=31 // pred_region
          %p200 = scmp.lt.s32.totalorder %s21, 1
          %s201 = scalar_select %p200, %s21, 1
          %p202 = scmp.lt.s32.totalorder %s22, 0
          %s203 = scalar_select %p202, %s22, 0
          %s204 = smul.addr %s203, 43
          %s205 = smul.addr %s201, 43
          %s206 = sadd.s32 %s204, %s205
          %s207 = smul.addr %s206, 8
          %s208 = scalar_lea.vmem %s0, %s207
        $region36: #{tpu_custom_call.1} parent=31 // pred_fallthru
          _
      $region32: #{tpu_custom_call.1} parent=5 // pred_fallthru
        _
      %p209 = scmp.le.s32.totalorder 1, %s14
      %p210 = scmp.lt.s32.totalorder %s14, 3
      %p211 = pnand %p209, %p210
      %p212 = pneg %p211
      // Predicated region
      $region37: #{tpu_custom_call.1} parent=5 // pred_check
        _
      $region38: #{tpu_custom_call.1} parent=5 // pred_check_branch
        %214 = sbr.rel (%p211) target = $region40
      $region39: #{tpu_custom_call.1} parent=5 // pred_region
        %s215 = ssub.s32 %s14, 1
        %p216 = scmp.lt.s32.totalorder %s23, 1
        %s217 = scalar_select %p216, %s23, 1
        %p218 = scmp.lt.s32.totalorder %s24, 0
        %s219 = scalar_select %p218, %s24, 0
        %s220 = smul.addr %s219, 43
        %s221 = smul.addr %s217, 43
        %s222 = sadd.s32 %s220, %s221
        %s223 = smul.addr %s222, 8
        %s224 = scalar_lea.vmem %s0, %s223
        %p225 = pneg %p54
        %p226 = pneg %p51
        %p227 = pneg %p75
        %p228 = pneg %p72
        %p229 = pneg %p96
        %p230 = pneg %p93
        %p231 = pneg %p117
        %p232 = pneg %p114
        %p233 = pneg %p138
        %p234 = pneg %p135
        %p235 = pneg %p166
        %p236 = pneg %p163
        %s237 = sand.u32 %s153, 1
        %s238 = scalar_lea.sflag [#allocation3], %s237
        %s239 = sand.u32 %s153, 1
        %s240 = smul.addr %s239, 288
        %s241 = scalar_lea.vmem [#allocation2], %s240
        %p242 = scmp.lt.s32.totalorder %s23, 1
        %s243 = scalar_select %p242, %s23, 1
        %p244 = scmp.lt.s32.totalorder %s24, 0
        %s245 = scalar_select %p244, %s24, 0
        %s246 = smul.addr %s245, 43
        %s247 = smul.addr %s243, 43
        %s248 = sadd.s32 %s246, %s247
        %s249 = smul.addr %s248, 8
        %s250 = scalar_lea.vmem %s0, %s249
        %v251 = vld [vmem:[%s250] sm:$0xff]
        %v252 = vld [vmem:[%s250 + $0x8] sm:$0xff]
        %v253 = vld [vmem:[%s250 + $0x10] sm:$0xff]
        %v254 = vld [vmem:[%s250 + $0x18] sm:$0xff]
        %v255 = vld [vmem:[%s250 + $0x20] sm:$0xff]
        %v256 = vld [vmem:[%s250 + $0x28] sm:$0xff]
        %v257 = vld [vmem:[%s250 + $0x30] sm:$0xff]
        %v258 = vld [vmem:[%s250 + $0x38] sm:$0xff]
        %v259 = vld [vmem:[%s250 + $0x40] sm:$0xff]
        %v260 = vld [vmem:[%s250 + $0x48] sm:$0xff]
        %v261 = vld [vmem:[%s250 + $0x50] sm:$0xff]
        %v262 = vld [vmem:[%s250 + $0x58] sm:$0xff]
        %v263 = vld [vmem:[%s250 + $0x60] sm:$0xff]
        %v264 = vld [vmem:[%s250 + $0x68] sm:$0xff]
        %v265 = vld [vmem:[%s250 + $0x70] sm:$0xff]
        %v266 = vld [vmem:[%s250 + $0x78] sm:$0xff]
        %v267 = vld [vmem:[%s250 + $0x80] sm:$0xff]
        %v268 = vld [vmem:[%s250 + $0x88] sm:$0xff]
        %v269 = vld [vmem:[%s250 + $0x90] sm:$0xff]
        %v270 = vld [vmem:[%s250 + $0x98] sm:$0xff]
        %v271 = vld [vmem:[%s250 + $0xa0] sm:$0xff]
        %v272 = vld [vmem:[%s250 + $0xa8] sm:$0xff]
        %v273 = vld [vmem:[%s250 + $0xb0] sm:$0xff]
        %v274 = vld [vmem:[%s250 + $0xb8] sm:$0xff]
        %v275 = vld [vmem:[%s250 + $0xc0] sm:$0xff]
        %v276 = vld [vmem:[%s250 + $0xc8] sm:$0xff]
        %v277 = vld [vmem:[%s250 + $0xd0] sm:$0xff]
        %v278 = vld [vmem:[%s250 + $0xd8] sm:$0xff]
        %v279 = vld [vmem:[%s250 + $0xe0] sm:$0xff]
        %v280 = vld [vmem:[%s250 + $0xe8] sm:$0xff]
        %v281 = vld [vmem:[%s250 + $0xf0] sm:$0xff]
        %v282 = vld [vmem:[%s250 + $0xf8] sm:$0xff]
        %v283 = vld [vmem:[%s250 + $0x100] sm:$0xff]
        %v284 = vld [vmem:[%s250 + $0x108] sm:$0xff]
        %v285 = vld [vmem:[%s250 + $0x110] sm:$0xff]
        %v286 = vld [vmem:[%s250 + $0x118] sm:$0xff]
        %v287 = vld [vmem:[%s1] sm:$0xf]
        %v288 = vld [vmem:[%s250 + $0x1] sm:$0xff]
        %v289 = vld [vmem:[%s250 + $0x9] sm:$0xff]
        %v290 = vld [vmem:[%s250 + $0x11] sm:$0xff]
        %v291 = vld [vmem:[%s250 + $0x19] sm:$0xff]
        %v292 = vld [vmem:[%s250 + $0x21] sm:$0xff]
        %v293 = vld [vmem:[%s250 + $0x29] sm:$0xff]
        %v294 = vld [vmem:[%s250 + $0x31] sm:$0xff]
        %v295 = vld [vmem:[%s250 + $0x39] sm:$0xff]
        %v296 = vld [vmem:[%s250 + $0x41] sm:$0xff]
        %v297 = vld [vmem:[%s250 + $0x49] sm:$0xff]
        %v298 = vld [vmem:[%s250 + $0x51] sm:$0xff]
        %v299 = vld [vmem:[%s250 + $0x59] sm:$0xff]
        %v300 = vld [vmem:[%s250 + $0x61] sm:$0xff]
        %v301 = vld [vmem:[%s250 + $0x69] sm:$0xff]
        %v302 = vld [vmem:[%s250 + $0x71] sm:$0xff]
        %v303 = vld [vmem:[%s250 + $0x79] sm:$0xff]
        %v304 = vld [vmem:[%s250 + $0x81] sm:$0xff]
        %v305 = vld [vmem:[%s250 + $0x89] sm:$0xff]
        %v306 = vld [vmem:[%s250 + $0x91] sm:$0xff]
        %v307 = vld [vmem:[%s250 + $0x99] sm:$0xff]
        %v308 = vld [vmem:[%s250 + $0xa1] sm:$0xff]
        %v309 = vld [vmem:[%s250 + $0xa9] sm:$0xff]
        %v310 = vld [vmem:[%s250 + $0xb1] sm:$0xff]
        %v311 = vld [vmem:[%s250 + $0xb9] sm:$0xff]
        %v312 = vld [vmem:[%s250 + $0xc1] sm:$0xff]
        %v313 = vld [vmem:[%s250 + $0xc9] sm:$0xff]
        %v314 = vld [vmem:[%s250 + $0xd1] sm:$0xff]
        %v315 = vld [vmem:[%s250 + $0xd9] sm:$0xff]
        %v316 = vld [vmem:[%s250 + $0xe1] sm:$0xff]
        %v317 = vld [vmem:[%s250 + $0xe9] sm:$0xff]
        %v318 = vld [vmem:[%s250 + $0xf1] sm:$0xff]
        %v319 = vld [vmem:[%s250 + $0xf9] sm:$0xff]
        %v320 = vld [vmem:[%s250 + $0x101] sm:$0xff]
        %v321 = vld [vmem:[%s250 + $0x109] sm:$0xff]
        %v322 = vld [vmem:[%s250 + $0x111] sm:$0xff]
        %v323 = vld [vmem:[%s250 + $0x119] sm:$0xff]
        %v324 = vld [vmem:[%s1 + $0x4] sm:$0xf]
        %vm325 = vcmask 31744
        %v327 = vsel %vm325, %v288, 0
        %v330 = vsel %vm325, %v289, 0
        %v333 = vsel %vm325, %v290, 0
        %v336 = vsel %vm325, %v291, 0
        %v339 = vsel %vm325, %v292, 0
        %v342 = vsel %vm325, %v293, 0
        %v345 = vsel %vm325, %v294, 0
        %v348 = vsel %vm325, %v295, 0
        %v351 = vsel %vm325, %v296, 0
        %v354 = vsel %vm325, %v297, 0
        %v357 = vsel %vm325, %v298, 0
        %v360 = vsel %vm325, %v299, 0
        %v363 = vsel %vm325, %v300, 0
        %v366 = vsel %vm325, %v301, 0
        %v369 = vsel %vm325, %v302, 0
        %v372 = vsel %vm325, %v303, 0
        %v375 = vsel %vm325, %v304, 0
        %v378 = vsel %vm325, %v305, 0
        %v381 = vsel %vm325, %v306, 0
        %v384 = vsel %vm325, %v307, 0
        %v387 = vsel %vm325, %v308, 0
        %v390 = vsel %vm325, %v309, 0
        %v393 = vsel %vm325, %v310, 0
        %v396 = vsel %vm325, %v311, 0
        %v399 = vsel %vm325, %v312, 0
        %v402 = vsel %vm325, %v313, 0
        %v405 = vsel %vm325, %v314, 0
        %v408 = vsel %vm325, %v315, 0
        %v411 = vsel %vm325, %v316, 0
        %v414 = vsel %vm325, %v317, 0
        %v417 = vsel %vm325, %v318, 0
        %v420 = vsel %vm325, %v319, 0
        %v423 = vsel %vm325, %v320, 0
        %v426 = vsel %vm325, %v321, 0
        %v429 = vsel %vm325, %v322, 0
        %v432 = vsel %vm325, %v323, 0
        %vm434 = vcmask 1043456
        %v436 = vsel %vm434, %v324, 0
        %438 = vmatprep.subr.mxu0 0.0
        %439 = vmatpush1.msra.mxu0 0.0
        %440 = vmatprep.subr.mxu0 0.0
        %441 = vmatpush1.msra.mxu0 0.0
        %442 = vmatprep.subr.mxu0 0.0
        %443 = vmatpush1.msra.mxu0 0.0
        %444 = vmatprep.subr.mxu0 0.0
        %445 = vmatpush1.msra.mxu0 0.0
        %446 = vmatprep.subr.mxu0 0.0
        %447 = vmatpush1.msra.mxu0 0.0
        %448 = vmatprep.subr.mxu0 0.0
        %449 = vmatpush1.msra.mxu0 0.0
        %450 = vmatprep.subr.mxu0 0.0
        %451 = vmatpush1.msra.mxu0 0.0
        %452 = vmatprep.subr.mxu0 0.0
        %453 = vmatpush1.msra.mxu0 0.0
        %454 = vmatprep.subr.mxu0 0.0
        %455 = vmatpush1.msra.mxu0 0.0
        %456 = vmatprep.subr.mxu0 0.0
        %457 = vmatpush1.msra.mxu0 0.0
        %458 = vmatprep.subr.mxu0 0.0
        %459 = vmatpush1.msra.mxu0 0.0
        %460 = vmatprep.subr.mxu0 0.0
        %461 = vmatpush1.msra.mxu0 0.0
        %462 = vmatprep.subr.mxu0 0.0
        %463 = vmatpush1.msra.mxu0 0.0
        %464 = vmatprep.subr.mxu0 0.0
        %465 = vmatpush1.msra.mxu0 0.0
        %466 = vmatprep.subr.mxu0 0.0
        %467 = vmatpush1.msra.mxu0 0.0
        %468 = vmatprep.subr.mxu0 0.0
        %469 = vmatpush1.msra.mxu0 %v436
        %470 = vmatprep.subr.mxu0 0.0
        %471 = vmatpush2.msra.mxu0 0.0
        %472 = vmatprep.subr.mxu0 0.0
        %473 = vmatpush2.msra.mxu0 0.0
        %474 = vmatprep.subr.mxu0 0.0
        %475 = vmatpush2.msra.mxu0 0.0
        %476 = vmatprep.subr.mxu0 0.0
        %477 = vmatpush2.msra.mxu0 0.0
        %478 = vmatprep.subr.mxu0 0.0
        %479 = vmatpush2.msra.mxu0 0.0
        %480 = vmatprep.subr.mxu0 0.0
        %481 = vmatpush2.msra.mxu0 0.0
        %482 = vmatprep.subr.mxu0 0.0
        %483 = vmatpush2.msra.mxu0 0.0
        %484 = vmatprep.subr.mxu0 0.0
        %485 = vmatpush2.msra.mxu0 0.0
        %486 = vmatprep.subr.mxu0 0.0
        %487 = vmatpush2.msra.mxu0 0.0
        %488 = vmatprep.subr.mxu0 0.0
        %489 = vmatpush2.msra.mxu0 0.0
        %490 = vmatprep.subr.mxu0 0.0
        %491 = vmatpush2.msra.mxu0 0.0
        %492 = vmatprep.subr.mxu0 0.0
        %493 = vmatpush2.msra.mxu0 0.0
        %494 = vmatprep.subr.mxu0 0.0
        %495 = vmatpush2.msra.mxu0 0.0
        %496 = vmatprep.subr.mxu0 0.0
        %497 = vmatpush2.msra.mxu0 0.0
        %498 = vmatprep.subr.mxu0 0.0
        %499 = vmatpush2.msra.mxu0 0.0
        %500 = vmatprep.subr.mxu0 0.0
        %501 = vmatpush2.msra.mxu0 0.0
        %502 = vmatprep.mubr.f32.mxu0 0.0
        %503 = vmatmul.mubr.f32.gmra.mxu0 %v327
        %v504 = vpop.f32.mrf.mxu0
        %v505 = vadd.f32 0.0, %v504
        %v506 = vpop.f32.mrf.mxu0
        %507 = vmatprep.mubr.f32.mxu0 0.0
        %508 = vmatmul.mubr.f32.gmra.mxu0 %v330
        %v509 = vpop.f32.mrf.mxu0
        %v510 = vadd.f32 0.0, %v509
        %v511 = vpop.f32.mrf.mxu0
        %512 = vmatprep.mubr.f32.mxu0 0.0
        %513 = vmatmul.mubr.f32.gmra.mxu0 %v333
        %v514 = vpop.f32.mrf.mxu0
        %v515 = vadd.f32 0.0, %v514
        %v516 = vpop.f32.mrf.mxu0
        %517 = vmatprep.mubr.f32.mxu0 0.0
        %518 = vmatmul.mubr.f32.gmra.mxu0 %v336
        %v519 = vpop.f32.mrf.mxu0
        %v520 = vadd.f32 0.0, %v519
        %v521 = vpop.f32.mrf.mxu0
        %522 = vmatprep.mubr.f32.mxu0 0.0
        %523 = vmatmul.mubr.f32.gmra.mxu0 %v339
        %v524 = vpop.f32.mrf.mxu0
        %v525 = vadd.f32 0.0, %v524
        %v526 = vpop.f32.mrf.mxu0
        %527 = vmatprep.mubr.f32.mxu0 0.0
        %528 = vmatmul.mubr.f32.gmra.mxu0 %v342
        %v529 = vpop.f32.mrf.mxu0
        %v530 = vadd.f32 0.0, %v529
        %v531 = vpop.f32.mrf.mxu0
        %532 = vmatprep.mubr.f32.mxu0 0.0
        %533 = vmatmul.mubr.f32.gmra.mxu0 %v345
        %v534 = vpop.f32.mrf.mxu0
        %v535 = vadd.f32 0.0, %v534
        %v536 = vpop.f32.mrf.mxu0
        %537 = vmatprep.mubr.f32.mxu0 0.0
        %538 = vmatmul.mubr.f32.gmra.mxu0 %v348
        %v539 = vpop.f32.mrf.mxu0
        %v540 = vadd.f32 0.0, %v539
        %v541 = vpop.f32.mrf.mxu0
        %542 = vmatprep.mubr.f32.mxu0 0.0
        %543 = vmatmul.mubr.f32.gmra.mxu0 %v351
        %v544 = vpop.f32.mrf.mxu0
        %v545 = vadd.f32 0.0, %v544
        %v546 = vpop.f32.mrf.mxu0
        %547 = vmatprep.mubr.f32.mxu0 0.0
        %548 = vmatmul.mubr.f32.gmra.mxu0 %v354
        %v549 = vpop.f32.mrf.mxu0
        %v550 = vadd.f32 0.0, %v549
        %v551 = vpop.f32.mrf.mxu0
        %552 = vmatprep.mubr.f32.mxu0 0.0
        %553 = vmatmul.mubr.f32.gmra.mxu0 %v357
        %v554 = vpop.f32.mrf.mxu0
        %v555 = vadd.f32 0.0, %v554
        %v556 = vpop.f32.mrf.mxu0
        %557 = vmatprep.mubr.f32.mxu0 0.0
        %558 = vmatmul.mubr.f32.gmra.mxu0 %v360
        %v559 = vpop.f32.mrf.mxu0
        %v560 = vadd.f32 0.0, %v559
        %v561 = vpop.f32.mrf.mxu0
        %562 = vmatprep.mubr.f32.mxu0 0.0
        %563 = vmatmul.mubr.f32.gmra.mxu0 %v363
        %v564 = vpop.f32.mrf.mxu0
        %v565 = vadd.f32 0.0, %v564
        %v566 = vpop.f32.mrf.mxu0
        %567 = vmatprep.mubr.f32.mxu0 0.0
        %568 = vmatmul.mubr.f32.gmra.mxu0 %v366
        %v569 = vpop.f32.mrf.mxu0
        %v570 = vadd.f32 0.0, %v569
        %v571 = vpop.f32.mrf.mxu0
        %572 = vmatprep.mubr.f32.mxu0 0.0
        %573 = vmatmul.mubr.f32.gmra.mxu0 %v369
        %v574 = vpop.f32.mrf.mxu0
        %v575 = vadd.f32 0.0, %v574
        %v576 = vpop.f32.mrf.mxu0
        %577 = vmatprep.mubr.f32.mxu0 0.0
        %578 = vmatmul.mubr.f32.gmra.mxu0 %v372
        %v579 = vpop.f32.mrf.mxu0
        %v580 = vadd.f32 0.0, %v579
        %v581 = vpop.f32.mrf.mxu0
        %582 = vmatprep.mubr.f32.mxu0 0.0
        %583 = vmatmul.mubr.f32.gmra.mxu0 %v375
        %v584 = vpop.f32.mrf.mxu0
        %v585 = vadd.f32 0.0, %v584
        %v586 = vpop.f32.mrf.mxu0
        %587 = vmatprep.mubr.f32.mxu0 0.0
        %588 = vmatmul.mubr.f32.gmra.mxu0 %v378
        %v589 = vpop.f32.mrf.mxu0
        %v590 = vadd.f32 0.0, %v589
        %v591 = vpop.f32.mrf.mxu0
        %592 = vmatprep.mubr.f32.mxu0 0.0
        %593 = vmatmul.mubr.f32.gmra.mxu0 %v381
        %v594 = vpop.f32.mrf.mxu0
        %v595 = vadd.f32 0.0, %v594
        %v596 = vpop.f32.mrf.mxu0
        %597 = vmatprep.mubr.f32.mxu0 0.0
        %598 = vmatmul.mubr.f32.gmra.mxu0 %v384
        %v599 = vpop.f32.mrf.mxu0
        %v600 = vadd.f32 0.0, %v599
        %v601 = vpop.f32.mrf.mxu0
        %602 = vmatprep.mubr.f32.mxu0 0.0
        %603 = vmatmul.mubr.f32.gmra.mxu0 %v387
        %v604 = vpop.f32.mrf.mxu0
        %v605 = vadd.f32 0.0, %v604
        %v606 = vpop.f32.mrf.mxu0
        %607 = vmatprep.mubr.f32.mxu0 0.0
        %608 = vmatmul.mubr.f32.gmra.mxu0 %v390
        %v609 = vpop.f32.mrf.mxu0
        %v610 = vadd.f32 0.0, %v609
        %v611 = vpop.f32.mrf.mxu0
        %612 = vmatprep.mubr.f32.mxu0 0.0
        %613 = vmatmul.mubr.f32.gmra.mxu0 %v393
        %v614 = vpop.f32.mrf.mxu0
        %v615 = vadd.f32 0.0, %v614
        %v616 = vpop.f32.mrf.mxu0
        %617 = vmatprep.mubr.f32.mxu0 0.0
        %618 = vmatmul.mubr.f32.gmra.mxu0 %v396
        %v619 = vpop.f32.mrf.mxu0
        %v620 = vadd.f32 0.0, %v619
        %v621 = vpop.f32.mrf.mxu0
        %622 = vmatprep.mubr.f32.mxu0 0.0
        %623 = vmatmul.mubr.f32.gmra.mxu0 %v399
        %v624 = vpop.f32.mrf.mxu0
        %v625 = vadd.f32 0.0, %v624
        %v626 = vpop.f32.mrf.mxu0
        %627 = vmatprep.mubr.f32.mxu0 0.0
        %628 = vmatmul.mubr.f32.gmra.mxu0 %v402
        %v629 = vpop.f32.mrf.mxu0
        %v630 = vadd.f32 0.0, %v629
        %v631 = vpop.f32.mrf.mxu0
        %632 = vmatprep.mubr.f32.mxu0 0.0
        %633 = vmatmul.mubr.f32.gmra.mxu0 %v405
        %v634 = vpop.f32.mrf.mxu0
        %v635 = vadd.f32 0.0, %v634
        %v636 = vpop.f32.mrf.mxu0
        %637 = vmatprep.mubr.f32.mxu0 0.0
        %638 = vmatmul.mubr.f32.gmra.mxu0 %v408
        %v639 = vpop.f32.mrf.mxu0
        %v640 = vadd.f32 0.0, %v639
        %v641 = vpop.f32.mrf.mxu0
        %642 = vmatprep.mubr.f32.mxu0 0.0
        %643 = vmatmul.mubr.f32.gmra.mxu0 %v411
        %v644 = vpop.f32.mrf.mxu0
        %v645 = vadd.f32 0.0, %v644
        %v646 = vpop.f32.mrf.mxu0
        %647 = vmatprep.mubr.f32.mxu0 0.0
        %648 = vmatmul.mubr.f32.gmra.mxu0 %v414
        %v649 = vpop.f32.mrf.mxu0
        %v650 = vadd.f32 0.0, %v649
        %v651 = vpop.f32.mrf.mxu0
        %652 = vmatprep.mubr.f32.mxu0 0.0
        %653 = vmatmul.mubr.f32.gmra.mxu0 %v417
        %v654 = vpop.f32.mrf.mxu0
        %v655 = vadd.f32 0.0, %v654
        %v656 = vpop.f32.mrf.mxu0
        %657 = vmatprep.mubr.f32.mxu0 0.0
        %658 = vmatmul.mubr.f32.gmra.mxu0 %v420
        %v659 = vpop.f32.mrf.mxu0
        %v660 = vadd.f32 0.0, %v659
        %v661 = vpop.f32.mrf.mxu0
        %662 = vmatprep.mubr.f32.mxu0 0.0
        %663 = vmatmul.mubr.f32.gmra.mxu0 %v423
        %v664 = vpop.f32.mrf.mxu0
        %v665 = vadd.f32 0.0, %v664
        %v666 = vpop.f32.mrf.mxu0
        %667 = vmatprep.mubr.f32.mxu0 0.0
        %668 = vmatmul.mubr.f32.gmra.mxu0 %v426
        %v669 = vpop.f32.mrf.mxu0
        %v670 = vadd.f32 0.0, %v669
        %v671 = vpop.f32.mrf.mxu0
        %672 = vmatprep.mubr.f32.mxu0 0.0
        %673 = vmatmul.mubr.f32.gmra.mxu0 %v429
        %v674 = vpop.f32.mrf.mxu0
        %v675 = vadd.f32 0.0, %v674
        %v676 = vpop.f32.mrf.mxu0
        %677 = vmatprep.mubr.f32.mxu0 0.0
        %678 = vmatmul.mubr.f32.gmra.mxu0 %v432
        %v679 = vpop.f32.mrf.mxu0
        %v680 = vadd.f32 0.0, %v679
        %v681 = vpop.f32.mrf.mxu0
        %682 = vdwg.mxu0
        %v684 = vsel %vm325, %v251, 0
        %v687 = vsel %vm325, %v252, 0
        %v690 = vsel %vm325, %v253, 0
        %v693 = vsel %vm325, %v254, 0
        %v696 = vsel %vm325, %v255, 0
        %v699 = vsel %vm325, %v256, 0
        %v702 = vsel %vm325, %v257, 0
        %v705 = vsel %vm325, %v258, 0
        %v708 = vsel %vm325, %v259, 0
        %v711 = vsel %vm325, %v260, 0
        %v714 = vsel %vm325, %v261, 0
        %v717 = vsel %vm325, %v262, 0
        %v720 = vsel %vm325, %v263, 0
        %v723 = vsel %vm325, %v264, 0
        %v726 = vsel %vm325, %v265, 0
        %v729 = vsel %vm325, %v266, 0
        %v732 = vsel %vm325, %v267, 0
        %v735 = vsel %vm325, %v268, 0
        %v738 = vsel %vm325, %v269, 0
        %v741 = vsel %vm325, %v270, 0
        %v744 = vsel %vm325, %v271, 0
        %v747 = vsel %vm325, %v272, 0
        %v750 = vsel %vm325, %v273, 0
        %v753 = vsel %vm325, %v274, 0
        %v756 = vsel %vm325, %v275, 0
        %v759 = vsel %vm325, %v276, 0
        %v762 = vsel %vm325, %v277, 0
        %v765 = vsel %vm325, %v278, 0
        %v768 = vsel %vm325, %v279, 0
        %v771 = vsel %vm325, %v280, 0
        %v774 = vsel %vm325, %v281, 0
        %v777 = vsel %vm325, %v282, 0
        %v780 = vsel %vm325, %v283, 0
        %v783 = vsel %vm325, %v284, 0
        %v786 = vsel %vm325, %v285, 0
        %v789 = vsel %vm325, %v286, 0
        %v792 = vsel %vm434, %v287, 0
        %794 = vmatprep.subr.mxu0 0.0
        %795 = vmatpush1.msra.mxu0 0.0
        %796 = vmatprep.subr.mxu0 0.0
        %797 = vmatpush1.msra.mxu0 0.0
        %798 = vmatprep.subr.mxu0 0.0
        %799 = vmatpush1.msra.mxu0 0.0
        %800 = vmatprep.subr.mxu0 0.0
        %801 = vmatpush1.msra.mxu0 0.0
        %802 = vmatprep.subr.mxu0 0.0
        %803 = vmatpush1.msra.mxu0 0.0
        %804 = vmatprep.subr.mxu0 0.0
        %805 = vmatpush1.msra.mxu0 0.0
        %806 = vmatprep.subr.mxu0 0.0
        %807 = vmatpush1.msra.mxu0 0.0
        %808 = vmatprep.subr.mxu0 0.0
        %809 = vmatpush1.msra.mxu0 0.0
        %810 = vmatprep.subr.mxu0 0.0
        %811 = vmatpush1.msra.mxu0 0.0
        %812 = vmatprep.subr.mxu0 0.0
        %813 = vmatpush1.msra.mxu0 0.0
        %814 = vmatprep.subr.mxu0 0.0
        %815 = vmatpush1.msra.mxu0 0.0
        %816 = vmatprep.subr.mxu0 0.0
        %817 = vmatpush1.msra.mxu0 0.0
        %818 = vmatprep.subr.mxu0 0.0
        %819 = vmatpush1.msra.mxu0 0.0
        %820 = vmatprep.subr.mxu0 0.0
        %821 = vmatpush1.msra.mxu0 0.0
        %822 = vmatprep.subr.mxu0 0.0
        %823 = vmatpush1.msra.mxu0 0.0
        %824 = vmatprep.subr.mxu0 0.0
        %825 = vmatpush1.msra.mxu0 %v792
        %826 = vmatprep.subr.mxu0 0.0
        %827 = vmatpush2.msra.mxu0 0.0
        %828 = vmatprep.subr.mxu0 0.0
        %829 = vmatpush2.msra.mxu0 0.0
        %830 = vmatprep.subr.mxu0 0.0
        %831 = vmatpush2.msra.mxu0 0.0
        %832 = vmatprep.subr.mxu0 0.0
        %833 = vmatpush2.msra.mxu0 0.0
        %834 = vmatprep.subr.mxu0 0.0
        %835 = vmatpush2.msra.mxu0 0.0
        %836 = vmatprep.subr.mxu0 0.0
        %837 = vmatpush2.msra.mxu0 0.0
        %838 = vmatprep.subr.mxu0 0.0
        %839 = vmatpush2.msra.mxu0 0.0
        %840 = vmatprep.subr.mxu0 0.0
        %841 = vmatpush2.msra.mxu0 0.0
        %842 = vmatprep.subr.mxu0 0.0
        %843 = vmatpush2.msra.mxu0 0.0
        %844 = vmatprep.subr.mxu0 0.0
        %845 = vmatpush2.msra.mxu0 0.0
        %846 = vmatprep.subr.mxu0 0.0
        %847 = vmatpush2.msra.mxu0 0.0
        %848 = vmatprep.subr.mxu0 0.0
        %849 = vmatpush2.msra.mxu0 0.0
        %850 = vmatprep.subr.mxu0 0.0
        %851 = vmatpush2.msra.mxu0 0.0
        %852 = vmatprep.subr.mxu0 0.0
        %853 = vmatpush2.msra.mxu0 0.0
        %854 = vmatprep.subr.mxu0 0.0
        %855 = vmatpush2.msra.mxu0 0.0
        %856 = vmatprep.subr.mxu0 0.0
        %857 = vmatpush2.msra.mxu0 0.0
        %858 = vmatprep.mubr.f32.mxu0 0.0
        %859 = vmatmul.mubr.f32.gmra.mxu0 %v684
        %v860 = vpop.f32.mrf.mxu0
        %v861 = vadd.f32 %v505, %v860
        %v862 = vpop.f32.mrf.mxu0
        %863 = vmatprep.mubr.f32.mxu0 0.0
        %864 = vmatmul.mubr.f32.gmra.mxu0 %v687
        %v865 = vpop.f32.mrf.mxu0
        %v866 = vadd.f32 %v510, %v865
        %v867 = vpop.f32.mrf.mxu0
        %868 = vmatprep.mubr.f32.mxu0 0.0
        %869 = vmatmul.mubr.f32.gmra.mxu0 %v690
        %v870 = vpop.f32.mrf.mxu0
        %v871 = vadd.f32 %v515, %v870
        %v872 = vpop.f32.mrf.mxu0
        %873 = vmatprep.mubr.f32.mxu0 0.0
        %874 = vmatmul.mubr.f32.gmra.mxu0 %v693
        %v875 = vpop.f32.mrf.mxu0
        %v876 = vadd.f32 %v520, %v875
        %v877 = vpop.f32.mrf.mxu0
        %878 = vmatprep.mubr.f32.mxu0 0.0
        %879 = vmatmul.mubr.f32.gmra.mxu0 %v696
        %v880 = vpop.f32.mrf.mxu0
        %v881 = vadd.f32 %v525, %v880
        %v882 = vpop.f32.mrf.mxu0
        %883 = vmatprep.mubr.f32.mxu0 0.0
        %884 = vmatmul.mubr.f32.gmra.mxu0 %v699
        %v885 = vpop.f32.mrf.mxu0
        %v886 = vadd.f32 %v530, %v885
        %v887 = vpop.f32.mrf.mxu0
        %888 = vmatprep.mubr.f32.mxu0 0.0
        %889 = vmatmul.mubr.f32.gmra.mxu0 %v702
        %v890 = vpop.f32.mrf.mxu0
        %v891 = vadd.f32 %v535, %v890
        %v892 = vpop.f32.mrf.mxu0
        %893 = vmatprep.mubr.f32.mxu0 0.0
        %894 = vmatmul.mubr.f32.gmra.mxu0 %v705
        %v895 = vpop.f32.mrf.mxu0
        %v896 = vadd.f32 %v540, %v895
        %v897 = vpop.f32.mrf.mxu0
        %898 = vmatprep.mubr.f32.mxu0 0.0
        %899 = vmatmul.mubr.f32.gmra.mxu0 %v708
        %v900 = vpop.f32.mrf.mxu0
        %v901 = vadd.f32 %v545, %v900
        %v902 = vpop.f32.mrf.mxu0
        %903 = vmatprep.mubr.f32.mxu0 0.0
        %904 = vmatmul.mubr.f32.gmra.mxu0 %v711
        %v905 = vpop.f32.mrf.mxu0
        %v906 = vadd.f32 %v550, %v905
        %v907 = vpop.f32.mrf.mxu0
        %908 = vmatprep.mubr.f32.mxu0 0.0
        %909 = vmatmul.mubr.f32.gmra.mxu0 %v714
        %v910 = vpop.f32.mrf.mxu0
        %v911 = vadd.f32 %v555, %v910
        %v912 = vpop.f32.mrf.mxu0
        %913 = vmatprep.mubr.f32.mxu0 0.0
        %914 = vmatmul.mubr.f32.gmra.mxu0 %v717
        %v915 = vpop.f32.mrf.mxu0
        %v916 = vadd.f32 %v560, %v915
        %v917 = vpop.f32.mrf.mxu0
        %918 = vmatprep.mubr.f32.mxu0 0.0
        %919 = vmatmul.mubr.f32.gmra.mxu0 %v720
        %v920 = vpop.f32.mrf.mxu0
        %v921 = vadd.f32 %v565, %v920
        %v922 = vpop.f32.mrf.mxu0
        %923 = vmatprep.mubr.f32.mxu0 0.0
        %924 = vmatmul.mubr.f32.gmra.mxu0 %v723
        %v925 = vpop.f32.mrf.mxu0
        %v926 = vadd.f32 %v570, %v925
        %v927 = vpop.f32.mrf.mxu0
        %928 = vmatprep.mubr.f32.mxu0 0.0
        %929 = vmatmul.mubr.f32.gmra.mxu0 %v726
        %v930 = vpop.f32.mrf.mxu0
        %v931 = vadd.f32 %v575, %v930
        %v932 = vpop.f32.mrf.mxu0
        %933 = vmatprep.mubr.f32.mxu0 0.0
        %934 = vmatmul.mubr.f32.gmra.mxu0 %v729
        %v935 = vpop.f32.mrf.mxu0
        %v936 = vadd.f32 %v580, %v935
        %v937 = vpop.f32.mrf.mxu0
        %938 = vmatprep.mubr.f32.mxu0 0.0
        %939 = vmatmul.mubr.f32.gmra.mxu0 %v732
        %v940 = vpop.f32.mrf.mxu0
        %v941 = vadd.f32 %v585, %v940
        %v942 = vpop.f32.mrf.mxu0
        %943 = vmatprep.mubr.f32.mxu0 0.0
        %944 = vmatmul.mubr.f32.gmra.mxu0 %v735
        %v945 = vpop.f32.mrf.mxu0
        %v946 = vadd.f32 %v590, %v945
        %v947 = vpop.f32.mrf.mxu0
        %948 = vmatprep.mubr.f32.mxu0 0.0
        %949 = vmatmul.mubr.f32.gmra.mxu0 %v738
        %v950 = vpop.f32.mrf.mxu0
        %v951 = vadd.f32 %v595, %v950
        %v952 = vpop.f32.mrf.mxu0
        %953 = vmatprep.mubr.f32.mxu0 0.0
        %954 = vmatmul.mubr.f32.gmra.mxu0 %v741
        %v955 = vpop.f32.mrf.mxu0
        %v956 = vadd.f32 %v600, %v955
        %v957 = vpop.f32.mrf.mxu0
        %958 = vmatprep.mubr.f32.mxu0 0.0
        %959 = vmatmul.mubr.f32.gmra.mxu0 %v744
        %v960 = vpop.f32.mrf.mxu0
        %v961 = vadd.f32 %v605, %v960
        %v962 = vpop.f32.mrf.mxu0
        %963 = vmatprep.mubr.f32.mxu0 0.0
        %964 = vmatmul.mubr.f32.gmra.mxu0 %v747
        %v965 = vpop.f32.mrf.mxu0
        %v966 = vadd.f32 %v610, %v965
        %v967 = vpop.f32.mrf.mxu0
        %968 = vmatprep.mubr.f32.mxu0 0.0
        %969 = vmatmul.mubr.f32.gmra.mxu0 %v750
        %v970 = vpop.f32.mrf.mxu0
        %v971 = vadd.f32 %v615, %v970
        %v972 = vpop.f32.mrf.mxu0
        %973 = vmatprep.mubr.f32.mxu0 0.0
        %974 = vmatmul.mubr.f32.gmra.mxu0 %v753
        %v975 = vpop.f32.mrf.mxu0
        %v976 = vadd.f32 %v620, %v975
        %v977 = vpop.f32.mrf.mxu0
        %978 = vmatprep.mubr.f32.mxu0 0.0
        %979 = vmatmul.mubr.f32.gmra.mxu0 %v756
        %v980 = vpop.f32.mrf.mxu0
        %v981 = vadd.f32 %v625, %v980
        %v982 = vpop.f32.mrf.mxu0
        %983 = vmatprep.mubr.f32.mxu0 0.0
        %984 = vmatmul.mubr.f32.gmra.mxu0 %v759
        %v985 = vpop.f32.mrf.mxu0
        %v986 = vadd.f32 %v630, %v985
        %v987 = vpop.f32.mrf.mxu0
        %988 = vmatprep.mubr.f32.mxu0 0.0
        %989 = vmatmul.mubr.f32.gmra.mxu0 %v762
        %v990 = vpop.f32.mrf.mxu0
        %v991 = vadd.f32 %v635, %v990
        %v992 = vpop.f32.mrf.mxu0
        %993 = vmatprep.mubr.f32.mxu0 0.0
        %994 = vmatmul.mubr.f32.gmra.mxu0 %v765
        %v995 = vpop.f32.mrf.mxu0
        %v996 = vadd.f32 %v640, %v995
        %v997 = vpop.f32.mrf.mxu0
        %998 = vmatprep.mubr.f32.mxu0 0.0
        %999 = vmatmul.mubr.f32.gmra.mxu0 %v768
        %v1000 = vpop.f32.mrf.mxu0
        %v1001 = vadd.f32 %v645, %v1000
        %v1002 = vpop.f32.mrf.mxu0
        %1003 = vmatprep.mubr.f32.mxu0 0.0
        %1004 = vmatmul.mubr.f32.gmra.mxu0 %v771
        %v1005 = vpop.f32.mrf.mxu0
        %v1006 = vadd.f32 %v650, %v1005
        %v1007 = vpop.f32.mrf.mxu0
        %1008 = vmatprep.mubr.f32.mxu0 0.0
        %1009 = vmatmul.mubr.f32.gmra.mxu0 %v774
        %v1010 = vpop.f32.mrf.mxu0
        %v1011 = vadd.f32 %v655, %v1010
        %v1012 = vpop.f32.mrf.mxu0
        %1013 = vmatprep.mubr.f32.mxu0 0.0
        %1014 = vmatmul.mubr.f32.gmra.mxu0 %v777
        %v1015 = vpop.f32.mrf.mxu0
        %v1016 = vadd.f32 %v660, %v1015
        %v1017 = vpop.f32.mrf.mxu0
        %1018 = vmatprep.mubr.f32.mxu0 0.0
        %1019 = vmatmul.mubr.f32.gmra.mxu0 %v780
        %v1020 = vpop.f32.mrf.mxu0
        %v1021 = vadd.f32 %v665, %v1020
        %v1022 = vpop.f32.mrf.mxu0
        %1023 = vmatprep.mubr.f32.mxu0 0.0
        %1024 = vmatmul.mubr.f32.gmra.mxu0 %v783
        %v1025 = vpop.f32.mrf.mxu0
        %v1026 = vadd.f32 %v670, %v1025
        %v1027 = vpop.f32.mrf.mxu0
        %1028 = vmatprep.mubr.f32.mxu0 0.0
        %1029 = vmatmul.mubr.f32.gmra.mxu0 %v786
        %v1030 = vpop.f32.mrf.mxu0
        %v1031 = vadd.f32 %v675, %v1030
        %v1032 = vpop.f32.mrf.mxu0
        %1033 = vmatprep.mubr.f32.mxu0 0.0
        %1034 = vmatmul.mubr.f32.gmra.mxu0 %v789
        %v1035 = vpop.f32.mrf.mxu0
        %v1036 = vadd.f32 %v680, %v1035
        %v1037 = vpop.f32.mrf.mxu0
        %1038 = vdwg.mxu0
        %v1039 = vld [vmem:[%s250 + $0x2] sm:$0xff]
        %v1040 = vld [vmem:[%s250 + $0xa] sm:$0xff]
        %v1041 = vld [vmem:[%s250 + $0x12] sm:$0xff]
        %v1042 = vld [vmem:[%s250 + $0x1a] sm:$0xff]
        %v1043 = vld [vmem:[%s250 + $0x22] sm:$0xff]
        %v1044 = vld [vmem:[%s250 + $0x2a] sm:$0xff]
        %v1045 = vld [vmem:[%s250 + $0x32] sm:$0xff]
        %v1046 = vld [vmem:[%s250 + $0x3a] sm:$0xff]
        %v1047 = vld [vmem:[%s250 + $0x42] sm:$0xff]
        %v1048 = vld [vmem:[%s250 + $0x4a] sm:$0xff]
        %v1049 = vld [vmem:[%s250 + $0x52] sm:$0xff]
        %v1050 = vld [vmem:[%s250 + $0x5a] sm:$0xff]
        %v1051 = vld [vmem:[%s250 + $0x62] sm:$0xff]
        %v1052 = vld [vmem:[%s250 + $0x6a] sm:$0xff]
        %v1053 = vld [vmem:[%s250 + $0x72] sm:$0xff]
        %v1054 = vld [vmem:[%s250 + $0x7a] sm:$0xff]
        %v1055 = vld [vmem:[%s250 + $0x82] sm:$0xff]
        %v1056 = vld [vmem:[%s250 + $0x8a] sm:$0xff]
        %v1057 = vld [vmem:[%s250 + $0x92] sm:$0xff]
        %v1058 = vld [vmem:[%s250 + $0x9a] sm:$0xff]
        %v1059 = vld [vmem:[%s250 + $0xa2] sm:$0xff]
        %v1060 = vld [vmem:[%s250 + $0xaa] sm:$0xff]
        %v1061 = vld [vmem:[%s250 + $0xb2] sm:$0xff]
        %v1062 = vld [vmem:[%s250 + $0xba] sm:$0xff]
        %v1063 = vld [vmem:[%s250 + $0xc2] sm:$0xff]
        %v1064 = vld [vmem:[%s250 + $0xca] sm:$0xff]
        %v1065 = vld [vmem:[%s250 + $0xd2] sm:$0xff]
        %v1066 = vld [vmem:[%s250 + $0xda] sm:$0xff]
        %v1067 = vld [vmem:[%s250 + $0xe2] sm:$0xff]
        %v1068 = vld [vmem:[%s250 + $0xea] sm:$0xff]
        %v1069 = vld [vmem:[%s250 + $0xf2] sm:$0xff]
        %v1070 = vld [vmem:[%s250 + $0xfa] sm:$0xff]
        %v1071 = vld [vmem:[%s250 + $0x102] sm:$0xff]
        %v1072 = vld [vmem:[%s250 + $0x10a] sm:$0xff]
        %v1073 = vld [vmem:[%s250 + $0x112] sm:$0xff]
        %v1074 = vld [vmem:[%s250 + $0x11a] sm:$0xff]
        %v1075 = vld [vmem:[%s1 + $0x8] sm:$0xf]
        %v1077 = vsel %vm325, %v1039, 0
        %v1080 = vsel %vm325, %v1040, 0
        %v1083 = vsel %vm325, %v1041, 0
        %v1086 = vsel %vm325, %v1042, 0
        %v1089 = vsel %vm325, %v1043, 0
        %v1092 = vsel %vm325, %v1044, 0
        %v1095 = vsel %vm325, %v1045, 0
        %v1098 = vsel %vm325, %v1046, 0
        %v1101 = vsel %vm325, %v1047, 0
        %v1104 = vsel %vm325, %v1048, 0
        %v1107 = vsel %vm325, %v1049, 0
        %v1110 = vsel %vm325, %v1050, 0
        %v1113 = vsel %vm325, %v1051, 0
        %v1116 = vsel %vm325, %v1052, 0
        %v1119 = vsel %vm325, %v1053, 0
        %v1122 = vsel %vm325, %v1054, 0
        %v1125 = vsel %vm325, %v1055, 0
        %v1128 = vsel %vm325, %v1056, 0
        %v1131 = vsel %vm325, %v1057, 0
        %v1134 = vsel %vm325, %v1058, 0
        %v1137 = vsel %vm325, %v1059, 0
        %v1140 = vsel %vm325, %v1060, 0
        %v1143 = vsel %vm325, %v1061, 0
        %v1146 = vsel %vm325, %v1062, 0
        %v1149 = vsel %vm325, %v1063, 0
        %v1152 = vsel %vm325, %v1064, 0
        %v1155 = vsel %vm325, %v1065, 0
        %v1158 = vsel %vm325, %v1066, 0
        %v1161 = vsel %vm325, %v1067, 0
        %v1164 = vsel %vm325, %v1068, 0
        %v1167 = vsel %vm325, %v1069, 0
        %v1170 = vsel %vm325, %v1070, 0
        %v1173 = vsel %vm325, %v1071, 0
        %v1176 = vsel %vm325, %v1072, 0
        %v1179 = vsel %vm325, %v1073, 0
        %v1182 = vsel %vm325, %v1074, 0
        %v1185 = vsel %vm434, %v1075, 0
        %1187 = vmatprep.subr.mxu0 0.0
        %1188 = vmatpush1.msra.mxu0 0.0
        %1189 = vmatprep.subr.mxu0 0.0
        %1190 = vmatpush1.msra.mxu0 0.0
        %1191 = vmatprep.subr.mxu0 0.0
        %1192 = vmatpush1.msra.mxu0 0.0
        %1193 = vmatprep.subr.mxu0 0.0
        %1194 = vmatpush1.msra.mxu0 0.0
        %1195 = vmatprep.subr.mxu0 0.0
        %1196 = vmatpush1.msra.mxu0 0.0
        %1197 = vmatprep.subr.mxu0 0.0
        %1198 = vmatpush1.msra.mxu0 0.0
        %1199 = vmatprep.subr.mxu0 0.0
        %1200 = vmatpush1.msra.mxu0 0.0
        %1201 = vmatprep.subr.mxu0 0.0
        %1202 = vmatpush1.msra.mxu0 0.0
        %1203 = vmatprep.subr.mxu0 0.0
        %1204 = vmatpush1.msra.mxu0 0.0
        %1205 = vmatprep.subr.mxu0 0.0
        %1206 = vmatpush1.msra.mxu0 0.0
        %1207 = vmatprep.subr.mxu0 0.0
        %1208 = vmatpush1.msra.mxu0 0.0
        %1209 = vmatprep.subr.mxu0 0.0
        %1210 = vmatpush1.msra.mxu0 0.0
        %1211 = vmatprep.subr.mxu0 0.0
        %1212 = vmatpush1.msra.mxu0 0.0
        %1213 = vmatprep.subr.mxu0 0.0
        %1214 = vmatpush1.msra.mxu0 0.0
        %1215 = vmatprep.subr.mxu0 0.0
        %1216 = vmatpush1.msra.mxu0 0.0
        %1217 = vmatprep.subr.mxu0 0.0
        %1218 = vmatpush1.msra.mxu0 %v1185
        %1219 = vmatprep.subr.mxu0 0.0
        %1220 = vmatpush2.msra.mxu0 0.0
        %1221 = vmatprep.subr.mxu0 0.0
        %1222 = vmatpush2.msra.mxu0 0.0
        %1223 = vmatprep.subr.mxu0 0.0
        %1224 = vmatpush2.msra.mxu0 0.0
        %1225 = vmatprep.subr.mxu0 0.0
        %1226 = vmatpush2.msra.mxu0 0.0
        %1227 = vmatprep.subr.mxu0 0.0
        %1228 = vmatpush2.msra.mxu0 0.0
        %1229 = vmatprep.subr.mxu0 0.0
        %1230 = vmatpush2.msra.mxu0 0.0
        %1231 = vmatprep.subr.mxu0 0.0
        %1232 = vmatpush2.msra.mxu0 0.0
        %1233 = vmatprep.subr.mxu0 0.0
        %1234 = vmatpush2.msra.mxu0 0.0
        %1235 = vmatprep.subr.mxu0 0.0
        %1236 = vmatpush2.msra.mxu0 0.0
        %1237 = vmatprep.subr.mxu0 0.0
        %1238 = vmatpush2.msra.mxu0 0.0
        %1239 = vmatprep.subr.mxu0 0.0
        %1240 = vmatpush2.msra.mxu0 0.0
        %1241 = vmatprep.subr.mxu0 0.0
        %1242 = vmatpush2.msra.mxu0 0.0
        %1243 = vmatprep.subr.mxu0 0.0
        %1244 = vmatpush2.msra.mxu0 0.0
        %1245 = vmatprep.subr.mxu0 0.0
        %1246 = vmatpush2.msra.mxu0 0.0
        %1247 = vmatprep.subr.mxu0 0.0
        %1248 = vmatpush2.msra.mxu0 0.0
        %1249 = vmatprep.subr.mxu0 0.0
        %1250 = vmatpush2.msra.mxu0 0.0
        %1251 = vmatprep.mubr.f32.mxu0 0.0
        %1252 = vmatmul.mubr.f32.gmra.mxu0 %v1077
        %v1253 = vpop.f32.mrf.mxu0
        %v1254 = vadd.f32 0.0, %v1253
        %v1255 = vpop.f32.mrf.mxu0
        %1256 = vmatprep.mubr.f32.mxu0 0.0
        %1257 = vmatmul.mubr.f32.gmra.mxu0 %v1080
        %v1258 = vpop.f32.mrf.mxu0
        %v1259 = vadd.f32 0.0, %v1258
        %v1260 = vpop.f32.mrf.mxu0
        %1261 = vmatprep.mubr.f32.mxu0 0.0
        %1262 = vmatmul.mubr.f32.gmra.mxu0 %v1083
        %v1263 = vpop.f32.mrf.mxu0
        %v1264 = vadd.f32 0.0, %v1263
        %v1265 = vpop.f32.mrf.mxu0
        %1266 = vmatprep.mubr.f32.mxu0 0.0
        %1267 = vmatmul.mubr.f32.gmra.mxu0 %v1086
        %v1268 = vpop.f32.mrf.mxu0
        %v1269 = vadd.f32 0.0, %v1268
        %v1270 = vpop.f32.mrf.mxu0
        %1271 = vmatprep.mubr.f32.mxu0 0.0
        %1272 = vmatmul.mubr.f32.gmra.mxu0 %v1089
        %v1273 = vpop.f32.mrf.mxu0
        %v1274 = vadd.f32 0.0, %v1273
        %v1275 = vpop.f32.mrf.mxu0
        %1276 = vmatprep.mubr.f32.mxu0 0.0
        %1277 = vmatmul.mubr.f32.gmra.mxu0 %v1092
        %v1278 = vpop.f32.mrf.mxu0
        %v1279 = vadd.f32 0.0, %v1278
        %v1280 = vpop.f32.mrf.mxu0
        %1281 = vmatprep.mubr.f32.mxu0 0.0
        %1282 = vmatmul.mubr.f32.gmra.mxu0 %v1095
        %v1283 = vpop.f32.mrf.mxu0
        %v1284 = vadd.f32 0.0, %v1283
        %v1285 = vpop.f32.mrf.mxu0
        %1286 = vmatprep.mubr.f32.mxu0 0.0
        %1287 = vmatmul.mubr.f32.gmra.mxu0 %v1098
        %v1288 = vpop.f32.mrf.mxu0
        %v1289 = vadd.f32 0.0, %v1288
        %v1290 = vpop.f32.mrf.mxu0
        %1291 = vmatprep.mubr.f32.mxu0 0.0
        %1292 = vmatmul.mubr.f32.gmra.mxu0 %v1101
        %v1293 = vpop.f32.mrf.mxu0
        %v1294 = vadd.f32 0.0, %v1293
        %v1295 = vpop.f32.mrf.mxu0
        %1296 = vmatprep.mubr.f32.mxu0 0.0
        %1297 = vmatmul.mubr.f32.gmra.mxu0 %v1104
        %v1298 = vpop.f32.mrf.mxu0
        %v1299 = vadd.f32 0.0, %v1298
        %v1300 = vpop.f32.mrf.mxu0
        %1301 = vmatprep.mubr.f32.mxu0 0.0
        %1302 = vmatmul.mubr.f32.gmra.mxu0 %v1107
        %v1303 = vpop.f32.mrf.mxu0
        %v1304 = vadd.f32 0.0, %v1303
        %v1305 = vpop.f32.mrf.mxu0
        %1306 = vmatprep.mubr.f32.mxu0 0.0
        %1307 = vmatmul.mubr.f32.gmra.mxu0 %v1110
        %v1308 = vpop.f32.mrf.mxu0
        %v1309 = vadd.f32 0.0, %v1308
        %v1310 = vpop.f32.mrf.mxu0
        %1311 = vmatprep.mubr.f32.mxu0 0.0
        %1312 = vmatmul.mubr.f32.gmra.mxu0 %v1113
        %v1313 = vpop.f32.mrf.mxu0
        %v1314 = vadd.f32 0.0, %v1313
        %v1315 = vpop.f32.mrf.mxu0
        %1316 = vmatprep.mubr.f32.mxu0 0.0
        %1317 = vmatmul.mubr.f32.gmra.mxu0 %v1116
        %v1318 = vpop.f32.mrf.mxu0
        %v1319 = vadd.f32 0.0, %v1318
        %v1320 = vpop.f32.mrf.mxu0
        %1321 = vmatprep.mubr.f32.mxu0 0.0
        %1322 = vmatmul.mubr.f32.gmra.mxu0 %v1119
        %v1323 = vpop.f32.mrf.mxu0
        %v1324 = vadd.f32 0.0, %v1323
        %v1325 = vpop.f32.mrf.mxu0
        %1326 = vmatprep.mubr.f32.mxu0 0.0
        %1327 = vmatmul.mubr.f32.gmra.mxu0 %v1122
        %v1328 = vpop.f32.mrf.mxu0
        %v1329 = vadd.f32 0.0, %v1328
        %v1330 = vpop.f32.mrf.mxu0
        %1331 = vmatprep.mubr.f32.mxu0 0.0
        %1332 = vmatmul.mubr.f32.gmra.mxu0 %v1125
        %v1333 = vpop.f32.mrf.mxu0
        %v1334 = vadd.f32 0.0, %v1333
        %v1335 = vpop.f32.mrf.mxu0
        %1336 = vmatprep.mubr.f32.mxu0 0.0
        %1337 = vmatmul.mubr.f32.gmra.mxu0 %v1128
        %v1338 = vpop.f32.mrf.mxu0
        %v1339 = vadd.f32 0.0, %v1338
        %v1340 = vpop.f32.mrf.mxu0
        %1341 = vmatprep.mubr.f32.mxu0 0.0
        %1342 = vmatmul.mubr.f32.gmra.mxu0 %v1131
        %v1343 = vpop.f32.mrf.mxu0
        %v1344 = vadd.f32 0.0, %v1343
        %v1345 = vpop.f32.mrf.mxu0
        %1346 = vmatprep.mubr.f32.mxu0 0.0
        %1347 = vmatmul.mubr.f32.gmra.mxu0 %v1134
        %v1348 = vpop.f32.mrf.mxu0
        %v1349 = vadd.f32 0.0, %v1348
        %v1350 = vpop.f32.mrf.mxu0
        %1351 = vmatprep.mubr.f32.mxu0 0.0
        %1352 = vmatmul.mubr.f32.gmra.mxu0 %v1137
        %v1353 = vpop.f32.mrf.mxu0
        %v1354 = vadd.f32 0.0, %v1353
        %v1355 = vpop.f32.mrf.mxu0
        %1356 = vmatprep.mubr.f32.mxu0 0.0
        %1357 = vmatmul.mubr.f32.gmra.mxu0 %v1140
        %v1358 = vpop.f32.mrf.mxu0
        %v1359 = vadd.f32 0.0, %v1358
        %v1360 = vpop.f32.mrf.mxu0
        %1361 = vmatprep.mubr.f32.mxu0 0.0
        %1362 = vmatmul.mubr.f32.gmra.mxu0 %v1143
        %v1363 = vpop.f32.mrf.mxu0
        %v1364 = vadd.f32 0.0, %v1363
        %v1365 = vpop.f32.mrf.mxu0
        %1366 = vmatprep.mubr.f32.mxu0 0.0
        %1367 = vmatmul.mubr.f32.gmra.mxu0 %v1146
        %v1368 = vpop.f32.mrf.mxu0
        %v1369 = vadd.f32 0.0, %v1368
        %v1370 = vpop.f32.mrf.mxu0
        %1371 = vmatprep.mubr.f32.mxu0 0.0
        %1372 = vmatmul.mubr.f32.gmra.mxu0 %v1149
        %v1373 = vpop.f32.mrf.mxu0
        %v1374 = vadd.f32 0.0, %v1373
        %v1375 = vpop.f32.mrf.mxu0
        %1376 = vmatprep.mubr.f32.mxu0 0.0
        %1377 = vmatmul.mubr.f32.gmra.mxu0 %v1152
        %v1378 = vpop.f32.mrf.mxu0
        %v1379 = vadd.f32 0.0, %v1378
        %v1380 = vpop.f32.mrf.mxu0
        %1381 = vmatprep.mubr.f32.mxu0 0.0
        %1382 = vmatmul.mubr.f32.gmra.mxu0 %v1155
        %v1383 = vpop.f32.mrf.mxu0
        %v1384 = vadd.f32 0.0, %v1383
        %v1385 = vpop.f32.mrf.mxu0
        %1386 = vmatprep.mubr.f32.mxu0 0.0
        %1387 = vmatmul.mubr.f32.gmra.mxu0 %v1158
        %v1388 = vpop.f32.mrf.mxu0
        %v1389 = vadd.f32 0.0, %v1388
        %v1390 = vpop.f32.mrf.mxu0
        %1391 = vmatprep.mubr.f32.mxu0 0.0
        %1392 = vmatmul.mubr.f32.gmra.mxu0 %v1161
        %v1393 = vpop.f32.mrf.mxu0
        %v1394 = vadd.f32 0.0, %v1393
        %v1395 = vpop.f32.mrf.mxu0
        %1396 = vmatprep.mubr.f32.mxu0 0.0
        %1397 = vmatmul.mubr.f32.gmra.mxu0 %v1164
        %v1398 = vpop.f32.mrf.mxu0
        %v1399 = vadd.f32 0.0, %v1398
        %v1400 = vpop.f32.mrf.mxu0
        %1401 = vmatprep.mubr.f32.mxu0 0.0
        %1402 = vmatmul.mubr.f32.gmra.mxu0 %v1167
        %v1403 = vpop.f32.mrf.mxu0
        %v1404 = vadd.f32 0.0, %v1403
        %v1405 = vpop.f32.mrf.mxu0
        %1406 = vmatprep.mubr.f32.mxu0 0.0
        %1407 = vmatmul.mubr.f32.gmra.mxu0 %v1170
        %v1408 = vpop.f32.mrf.mxu0
        %v1409 = vadd.f32 0.0, %v1408
        %v1410 = vpop.f32.mrf.mxu0
        %1411 = vmatprep.mubr.f32.mxu0 0.0
        %1412 = vmatmul.mubr.f32.gmra.mxu0 %v1173
        %v1413 = vpop.f32.mrf.mxu0
        %v1414 = vadd.f32 0.0, %v1413
        %v1415 = vpop.f32.mrf.mxu0
        %1416 = vmatprep.mubr.f32.mxu0 0.0
        %1417 = vmatmul.mubr.f32.gmra.mxu0 %v1176
        %v1418 = vpop.f32.mrf.mxu0
        %v1419 = vadd.f32 0.0, %v1418
        %v1420 = vpop.f32.mrf.mxu0
        %1421 = vmatprep.mubr.f32.mxu0 0.0
        %1422 = vmatmul.mubr.f32.gmra.mxu0 %v1179
        %v1423 = vpop.f32.mrf.mxu0
        %v1424 = vadd.f32 0.0, %v1423
        %v1425 = vpop.f32.mrf.mxu0
        %1426 = vmatprep.mubr.f32.mxu0 0.0
        %1427 = vmatmul.mubr.f32.gmra.mxu0 %v1182
        %v1428 = vpop.f32.mrf.mxu0
        %v1429 = vadd.f32 0.0, %v1428
        %v1430 = vpop.f32.mrf.mxu0
        %1431 = vdwg.mxu0
        %v1432 = vadd.f32 %v861, %v1254
        %v1433 = vadd.f32 %v866, %v1259
        %v1434 = vadd.f32 %v871, %v1264
        %v1435 = vadd.f32 %v876, %v1269
        %v1436 = vadd.f32 %v881, %v1274
        %v1437 = vadd.f32 %v886, %v1279
        %v1438 = vadd.f32 %v891, %v1284
        %v1439 = vadd.f32 %v896, %v1289
        %v1440 = vadd.f32 %v901, %v1294
        %v1441 = vadd.f32 %v906, %v1299
        %v1442 = vadd.f32 %v911, %v1304
        %v1443 = vadd.f32 %v916, %v1309
        %v1444 = vadd.f32 %v921, %v1314
        %v1445 = vadd.f32 %v926, %v1319
        %v1446 = vadd.f32 %v931, %v1324
        %v1447 = vadd.f32 %v936, %v1329
        %v1448 = vadd.f32 %v941, %v1334
        %v1449 = vadd.f32 %v946, %v1339
        %v1450 = vadd.f32 %v951, %v1344
        %v1451 = vadd.f32 %v956, %v1349
        %v1452 = vadd.f32 %v961, %v1354
        %v1453 = vadd.f32 %v966, %v1359
        %v1454 = vadd.f32 %v971, %v1364
        %v1455 = vadd.f32 %v976, %v1369
        %v1456 = vadd.f32 %v981, %v1374
        %v1457 = vadd.f32 %v986, %v1379
        %v1458 = vadd.f32 %v991, %v1384
        %v1459 = vadd.f32 %v996, %v1389
        %v1460 = vadd.f32 %v1001, %v1394
        %v1461 = vadd.f32 %v1006, %v1399
        %v1462 = vadd.f32 %v1011, %v1404
        %v1463 = vadd.f32 %v1016, %v1409
        %v1464 = vadd.f32 %v1021, %v1414
        %v1465 = vadd.f32 %v1026, %v1419
        %v1466 = vadd.f32 %v1031, %v1424
        %v1467 = vadd.f32 %v1036, %v1429
        %v1468 = vld [vmem:[%s250 + $0x12] sm:$0xff]
        %v1469 = vld [vmem:[%s250 + $0x1a] sm:$0xff]
        %v1470 = vld [vmem:[%s250 + $0x22] sm:$0xff]
        %v1471 = vld [vmem:[%s250 + $0x2a] sm:$0xff]
        %v1472 = vld [vmem:[%s250 + $0x32] sm:$0xff]
        %v1473 = vld [vmem:[%s250 + $0x3a] sm:$0xff]
        %v1474 = vld [vmem:[%s250 + $0x42] sm:$0xff]
        %v1475 = vld [vmem:[%s250 + $0x4a] sm:$0xff]
        %v1476 = vld [vmem:[%s250 + $0x52] sm:$0xff]
        %v1477 = vld [vmem:[%s250 + $0x5a] sm:$0xff]
        %v1478 = vld [vmem:[%s250 + $0x62] sm:$0xff]
        %v1479 = vld [vmem:[%s250 + $0x6a] sm:$0xff]
        %v1480 = vld [vmem:[%s250 + $0x72] sm:$0xff]
        %v1481 = vld [vmem:[%s250 + $0x7a] sm:$0xff]
        %v1482 = vld [vmem:[%s250 + $0x82] sm:$0xff]
        %v1483 = vld [vmem:[%s250 + $0x8a] sm:$0xff]
        %v1484 = vld [vmem:[%s250 + $0x92] sm:$0xff]
        %v1485 = vld [vmem:[%s250 + $0x9a] sm:$0xff]
        %v1486 = vld [vmem:[%s250 + $0xa2] sm:$0xff]
        %v1487 = vld [vmem:[%s250 + $0xaa] sm:$0xff]
        %v1488 = vld [vmem:[%s250 + $0xb2] sm:$0xff]
        %v1489 = vld [vmem:[%s250 + $0xba] sm:$0xff]
        %v1490 = vld [vmem:[%s250 + $0xc2] sm:$0xff]
        %v1491 = vld [vmem:[%s250 + $0xca] sm:$0xff]
        %v1492 = vld [vmem:[%s250 + $0xd2] sm:$0xff]
        %v1493 = vld [vmem:[%s250 + $0xda] sm:$0xff]
        %v1494 = vld [vmem:[%s250 + $0xe2] sm:$0xff]
        %v1495 = vld [vmem:[%s250 + $0xea] sm:$0xff]
        %v1496 = vld [vmem:[%s250 + $0xf2] sm:$0xff]
        %v1497 = vld [vmem:[%s250 + $0xfa] sm:$0xff]
        %v1498 = vld [vmem:[%s250 + $0x102] sm:$0xff]
        %v1499 = vld [vmem:[%s250 + $0x10a] sm:$0xff]
        %v1500 = vld [vmem:[%s250 + $0x112] sm:$0xff]
        %v1501 = vld [vmem:[%s250 + $0x11a] sm:$0xff]
        %v1502 = vld [vmem:[%s250 + $0x122] sm:$0xff]
        %v1503 = vld [vmem:[%s250 + $0x12a] sm:$0xff]
        %v1504 = vld [vmem:[%s1 + $0xc] sm:$0xf]
        %v1506 = vsel %vm325, %v1468, 0
        %v1509 = vsel %vm325, %v1469, 0
        %v1512 = vsel %vm325, %v1470, 0
        %v1515 = vsel %vm325, %v1471, 0
        %v1518 = vsel %vm325, %v1472, 0
        %v1521 = vsel %vm325, %v1473, 0
        %v1524 = vsel %vm325, %v1474, 0
        %v1527 = vsel %vm325, %v1475, 0
        %v1530 = vsel %vm325, %v1476, 0
        %v1533 = vsel %vm325, %v1477, 0
        %v1536 = vsel %vm325, %v1478, 0
        %v1539 = vsel %vm325, %v1479, 0
        %v1542 = vsel %vm325, %v1480, 0
        %v1545 = vsel %vm325, %v1481, 0
        %v1548 = vsel %vm325, %v1482, 0
        %v1551 = vsel %vm325, %v1483, 0
        %v1554 = vsel %vm325, %v1484, 0
        %v1557 = vsel %vm325, %v1485, 0
        %v1560 = vsel %vm325, %v1486, 0
        %v1563 = vsel %vm325, %v1487, 0
        %v1566 = vsel %vm325, %v1488, 0
        %v1569 = vsel %vm325, %v1489, 0
        %v1572 = vsel %vm325, %v1490, 0
        %v1575 = vsel %vm325, %v1491, 0
        %v1578 = vsel %vm325, %v1492, 0
        %v1581 = vsel %vm325, %v1493, 0
        %v1584 = vsel %vm325, %v1494, 0
        %v1587 = vsel %vm325, %v1495, 0
        %v1590 = vsel %vm325, %v1496, 0
        %v1593 = vsel %vm325, %v1497, 0
        %v1596 = vsel %vm325, %v1498, 0
        %v1599 = vsel %vm325, %v1499, 0
        %v1602 = vsel %vm325, %v1500, 0
        %v1605 = vsel %vm325, %v1501, 0
        %v1608 = vsel %vm325, %v1502, 0
        %v1611 = vsel %vm325, %v1503, 0
        %v1614 = vsel %vm434, %v1504, 0
        %1616 = vmatprep.subr.mxu0 0.0
        %1617 = vmatpush1.msra.mxu0 0.0
        %1618 = vmatprep.subr.mxu0 0.0
        %1619 = vmatpush1.msra.mxu0 0.0
        %1620 = vmatprep.subr.mxu0 0.0
        %1621 = vmatpush1.msra.mxu0 0.0
        %1622 = vmatprep.subr.mxu0 0.0
        %1623 = vmatpush1.msra.mxu0 0.0
        %1624 = vmatprep.subr.mxu0 0.0
        %1625 = vmatpush1.msra.mxu0 0.0
        %1626 = vmatprep.subr.mxu0 0.0
        %1627 = vmatpush1.msra.mxu0 0.0
        %1628 = vmatprep.subr.mxu0 0.0
        %1629 = vmatpush1.msra.mxu0 0.0
        %1630 = vmatprep.subr.mxu0 0.0
        %1631 = vmatpush1.msra.mxu0 0.0
        %1632 = vmatprep.subr.mxu0 0.0
        %1633 = vmatpush1.msra.mxu0 0.0
        %1634 = vmatprep.subr.mxu0 0.0
        %1635 = vmatpush1.msra.mxu0 0.0
        %1636 = vmatprep.subr.mxu0 0.0
        %1637 = vmatpush1.msra.mxu0 0.0
        %1638 = vmatprep.subr.mxu0 0.0
        %1639 = vmatpush1.msra.mxu0 0.0
        %1640 = vmatprep.subr.mxu0 0.0
        %1641 = vmatpush1.msra.mxu0 0.0
        %1642 = vmatprep.subr.mxu0 0.0
        %1643 = vmatpush1.msra.mxu0 0.0
        %1644 = vmatprep.subr.mxu0 0.0
        %1645 = vmatpush1.msra.mxu0 0.0
        %1646 = vmatprep.subr.mxu0 0.0
        %1647 = vmatpush1.msra.mxu0 %v1614
        %1648 = vmatprep.subr.mxu0 0.0
        %1649 = vmatpush2.msra.mxu0 0.0
        %1650 = vmatprep.subr.mxu0 0.0
        %1651 = vmatpush2.msra.mxu0 0.0
        %1652 = vmatprep.subr.mxu0 0.0
        %1653 = vmatpush2.msra.mxu0 0.0
        %1654 = vmatprep.subr.mxu0 0.0
        %1655 = vmatpush2.msra.mxu0 0.0
        %1656 = vmatprep.subr.mxu0 0.0
        %1657 = vmatpush2.msra.mxu0 0.0
        %1658 = vmatprep.subr.mxu0 0.0
        %1659 = vmatpush2.msra.mxu0 0.0
        %1660 = vmatprep.subr.mxu0 0.0
        %1661 = vmatpush2.msra.mxu0 0.0
        %1662 = vmatprep.subr.mxu0 0.0
        %1663 = vmatpush2.msra.mxu0 0.0
        %1664 = vmatprep.subr.mxu0 0.0
        %1665 = vmatpush2.msra.mxu0 0.0
        %1666 = vmatprep.subr.mxu0 0.0
        %1667 = vmatpush2.msra.mxu0 0.0
        %1668 = vmatprep.subr.mxu0 0.0
        %1669 = vmatpush2.msra.mxu0 0.0
        %1670 = vmatprep.subr.mxu0 0.0
        %1671 = vmatpush2.msra.mxu0 0.0
        %1672 = vmatprep.subr.mxu0 0.0
        %1673 = vmatpush2.msra.mxu0 0.0
        %1674 = vmatprep.subr.mxu0 0.0
        %1675 = vmatpush2.msra.mxu0 0.0
        %1676 = vmatprep.subr.mxu0 0.0
        %1677 = vmatpush2.msra.mxu0 0.0
        %1678 = vmatprep.subr.mxu0 0.0
        %1679 = vmatpush2.msra.mxu0 0.0
        %1680 = vmatprep.mubr.f32.mxu0 0.0
        %1681 = vmatmul.mubr.f32.gmra.mxu0 %v1506
        %v1682 = vpop.f32.mrf.mxu0
        %v1683 = vadd.f32 0.0, %v1682
        %v1684 = vpop.f32.mrf.mxu0
        %1685 = vmatprep.mubr.f32.mxu0 0.0
        %1686 = vmatmul.mubr.f32.gmra.mxu0 %v1509
        %v1687 = vpop.f32.mrf.mxu0
        %v1688 = vadd.f32 0.0, %v1687
        %v1689 = vpop.f32.mrf.mxu0
        %1690 = vmatprep.mubr.f32.mxu0 0.0
        %1691 = vmatmul.mubr.f32.gmra.mxu0 %v1512
        %v1692 = vpop.f32.mrf.mxu0
        %v1693 = vadd.f32 0.0, %v1692
        %v1694 = vpop.f32.mrf.mxu0
        %1695 = vmatprep.mubr.f32.mxu0 0.0
        %1696 = vmatmul.mubr.f32.gmra.mxu0 %v1515
        %v1697 = vpop.f32.mrf.mxu0
        %v1698 = vadd.f32 0.0, %v1697
        %v1699 = vpop.f32.mrf.mxu0
        %1700 = vmatprep.mubr.f32.mxu0 0.0
        %1701 = vmatmul.mubr.f32.gmra.mxu0 %v1518
        %v1702 = vpop.f32.mrf.mxu0
        %v1703 = vadd.f32 0.0, %v1702
        %v1704 = vpop.f32.mrf.mxu0
        %1705 = vmatprep.mubr.f32.mxu0 0.0
        %1706 = vmatmul.mubr.f32.gmra.mxu0 %v1521
        %v1707 = vpop.f32.mrf.mxu0
        %v1708 = vadd.f32 0.0, %v1707
        %v1709 = vpop.f32.mrf.mxu0
        %1710 = vmatprep.mubr.f32.mxu0 0.0
        %1711 = vmatmul.mubr.f32.gmra.mxu0 %v1524
        %v1712 = vpop.f32.mrf.mxu0
        %v1713 = vadd.f32 0.0, %v1712
        %v1714 = vpop.f32.mrf.mxu0
        %1715 = vmatprep.mubr.f32.mxu0 0.0
        %1716 = vmatmul.mubr.f32.gmra.mxu0 %v1527
        %v1717 = vpop.f32.mrf.mxu0
        %v1718 = vadd.f32 0.0, %v1717
        %v1719 = vpop.f32.mrf.mxu0
        %1720 = vmatprep.mubr.f32.mxu0 0.0
        %1721 = vmatmul.mubr.f32.gmra.mxu0 %v1530
        %v1722 = vpop.f32.mrf.mxu0
        %v1723 = vadd.f32 0.0, %v1722
        %v1724 = vpop.f32.mrf.mxu0
        %1725 = vmatprep.mubr.f32.mxu0 0.0
        %1726 = vmatmul.mubr.f32.gmra.mxu0 %v1533
        %v1727 = vpop.f32.mrf.mxu0
        %v1728 = vadd.f32 0.0, %v1727
        %v1729 = vpop.f32.mrf.mxu0
        %1730 = vmatprep.mubr.f32.mxu0 0.0
        %1731 = vmatmul.mubr.f32.gmra.mxu0 %v1536
        %v1732 = vpop.f32.mrf.mxu0
        %v1733 = vadd.f32 0.0, %v1732
        %v1734 = vpop.f32.mrf.mxu0
        %1735 = vmatprep.mubr.f32.mxu0 0.0
        %1736 = vmatmul.mubr.f32.gmra.mxu0 %v1539
        %v1737 = vpop.f32.mrf.mxu0
        %v1738 = vadd.f32 0.0, %v1737
        %v1739 = vpop.f32.mrf.mxu0
        %1740 = vmatprep.mubr.f32.mxu0 0.0
        %1741 = vmatmul.mubr.f32.gmra.mxu0 %v1542
        %v1742 = vpop.f32.mrf.mxu0
        %v1743 = vadd.f32 0.0, %v1742
        %v1744 = vpop.f32.mrf.mxu0
        %1745 = vmatprep.mubr.f32.mxu0 0.0
        %1746 = vmatmul.mubr.f32.gmra.mxu0 %v1545
        %v1747 = vpop.f32.mrf.mxu0
        %v1748 = vadd.f32 0.0, %v1747
        %v1749 = vpop.f32.mrf.mxu0
        %1750 = vmatprep.mubr.f32.mxu0 0.0
        %1751 = vmatmul.mubr.f32.gmra.mxu0 %v1548
        %v1752 = vpop.f32.mrf.mxu0
        %v1753 = vadd.f32 0.0, %v1752
        %v1754 = vpop.f32.mrf.mxu0
        %1755 = vmatprep.mubr.f32.mxu0 0.0
        %1756 = vmatmul.mubr.f32.gmra.mxu0 %v1551
        %v1757 = vpop.f32.mrf.mxu0
        %v1758 = vadd.f32 0.0, %v1757
        %v1759 = vpop.f32.mrf.mxu0
        %1760 = vmatprep.mubr.f32.mxu0 0.0
        %1761 = vmatmul.mubr.f32.gmra.mxu0 %v1554
        %v1762 = vpop.f32.mrf.mxu0
        %v1763 = vadd.f32 0.0, %v1762
        %v1764 = vpop.f32.mrf.mxu0
        %1765 = vmatprep.mubr.f32.mxu0 0.0
        %1766 = vmatmul.mubr.f32.gmra.mxu0 %v1557
        %v1767 = vpop.f32.mrf.mxu0
        %v1768 = vadd.f32 0.0, %v1767
        %v1769 = vpop.f32.mrf.mxu0
        %1770 = vmatprep.mubr.f32.mxu0 0.0
        %1771 = vmatmul.mubr.f32.gmra.mxu0 %v1560
        %v1772 = vpop.f32.mrf.mxu0
        %v1773 = vadd.f32 0.0, %v1772
        %v1774 = vpop.f32.mrf.mxu0
        %1775 = vmatprep.mubr.f32.mxu0 0.0
        %1776 = vmatmul.mubr.f32.gmra.mxu0 %v1563
        %v1777 = vpop.f32.mrf.mxu0
        %v1778 = vadd.f32 0.0, %v1777
        %v1779 = vpop.f32.mrf.mxu0
        %1780 = vmatprep.mubr.f32.mxu0 0.0
        %1781 = vmatmul.mubr.f32.gmra.mxu0 %v1566
        %v1782 = vpop.f32.mrf.mxu0
        %v1783 = vadd.f32 0.0, %v1782
        %v1784 = vpop.f32.mrf.mxu0
        %1785 = vmatprep.mubr.f32.mxu0 0.0
        %1786 = vmatmul.mubr.f32.gmra.mxu0 %v1569
        %v1787 = vpop.f32.mrf.mxu0
        %v1788 = vadd.f32 0.0, %v1787
        %v1789 = vpop.f32.mrf.mxu0
        %1790 = vmatprep.mubr.f32.mxu0 0.0
        %1791 = vmatmul.mubr.f32.gmra.mxu0 %v1572
        %v1792 = vpop.f32.mrf.mxu0
        %v1793 = vadd.f32 0.0, %v1792
        %v1794 = vpop.f32.mrf.mxu0
        %1795 = vmatprep.mubr.f32.mxu0 0.0
        %1796 = vmatmul.mubr.f32.gmra.mxu0 %v1575
        %v1797 = vpop.f32.mrf.mxu0
        %v1798 = vadd.f32 0.0, %v1797
        %v1799 = vpop.f32.mrf.mxu0
        %1800 = vmatprep.mubr.f32.mxu0 0.0
        %1801 = vmatmul.mubr.f32.gmra.mxu0 %v1578
        %v1802 = vpop.f32.mrf.mxu0
        %v1803 = vadd.f32 0.0, %v1802
        %v1804 = vpop.f32.mrf.mxu0
        %1805 = vmatprep.mubr.f32.mxu0 0.0
        %1806 = vmatmul.mubr.f32.gmra.mxu0 %v1581
        %v1807 = vpop.f32.mrf.mxu0
        %v1808 = vadd.f32 0.0, %v1807
        %v1809 = vpop.f32.mrf.mxu0
        %1810 = vmatprep.mubr.f32.mxu0 0.0
        %1811 = vmatmul.mubr.f32.gmra.mxu0 %v1584
        %v1812 = vpop.f32.mrf.mxu0
        %v1813 = vadd.f32 0.0, %v1812
        %v1814 = vpop.f32.mrf.mxu0
        %1815 = vmatprep.mubr.f32.mxu0 0.0
        %1816 = vmatmul.mubr.f32.gmra.mxu0 %v1587
        %v1817 = vpop.f32.mrf.mxu0
        %v1818 = vadd.f32 0.0, %v1817
        %v1819 = vpop.f32.mrf.mxu0
        %1820 = vmatprep.mubr.f32.mxu0 0.0
        %1821 = vmatmul.mubr.f32.gmra.mxu0 %v1590
        %v1822 = vpop.f32.mrf.mxu0
        %v1823 = vadd.f32 0.0, %v1822
        %v1824 = vpop.f32.mrf.mxu0
        %1825 = vmatprep.mubr.f32.mxu0 0.0
        %1826 = vmatmul.mubr.f32.gmra.mxu0 %v1593
        %v1827 = vpop.f32.mrf.mxu0
        %v1828 = vadd.f32 0.0, %v1827
        %v1829 = vpop.f32.mrf.mxu0
        %1830 = vmatprep.mubr.f32.mxu0 0.0
        %1831 = vmatmul.mubr.f32.gmra.mxu0 %v1596
        %v1832 = vpop.f32.mrf.mxu0
        %v1833 = vadd.f32 0.0, %v1832
        %v1834 = vpop.f32.mrf.mxu0
        %1835 = vmatprep.mubr.f32.mxu0 0.0
        %1836 = vmatmul.mubr.f32.gmra.mxu0 %v1599
        %v1837 = vpop.f32.mrf.mxu0
        %v1838 = vadd.f32 0.0, %v1837
        %v1839 = vpop.f32.mrf.mxu0
        %1840 = vmatprep.mubr.f32.mxu0 0.0
        %1841 = vmatmul.mubr.f32.gmra.mxu0 %v1602
        %v1842 = vpop.f32.mrf.mxu0
        %v1843 = vadd.f32 0.0, %v1842
        %v1844 = vpop.f32.mrf.mxu0
        %1845 = vmatprep.mubr.f32.mxu0 0.0
        %1846 = vmatmul.mubr.f32.gmra.mxu0 %v1605
        %v1847 = vpop.f32.mrf.mxu0
        %v1848 = vadd.f32 0.0, %v1847
        %v1849 = vpop.f32.mrf.mxu0
        %1850 = vmatprep.mubr.f32.mxu0 0.0
        %1851 = vmatmul.mubr.f32.gmra.mxu0 %v1608
        %v1852 = vpop.f32.mrf.mxu0
        %v1853 = vadd.f32 0.0, %v1852
        %v1854 = vpop.f32.mrf.mxu0
        %1855 = vmatprep.mubr.f32.mxu0 0.0
        %1856 = vmatmul.mubr.f32.gmra.mxu0 %v1611
        %v1857 = vpop.f32.mrf.mxu0
        %v1858 = vadd.f32 0.0, %v1857
        %v1859 = vpop.f32.mrf.mxu0
        %1860 = vdwg.mxu0
        %v1861 = vadd.f32 %v1432, %v1683
        %v1862 = vadd.f32 %v1433, %v1688
        %v1863 = vadd.f32 %v1434, %v1693
        %v1864 = vadd.f32 %v1435, %v1698
        %v1865 = vadd.f32 %v1436, %v1703
        %v1866 = vadd.f32 %v1437, %v1708
        %v1867 = vadd.f32 %v1438, %v1713
        %v1868 = vadd.f32 %v1439, %v1718
        %v1869 = vadd.f32 %v1440, %v1723
        %v1870 = vadd.f32 %v1441, %v1728
        %v1871 = vadd.f32 %v1442, %v1733
        %v1872 = vadd.f32 %v1443, %v1738
        %v1873 = vadd.f32 %v1444, %v1743
        %v1874 = vadd.f32 %v1445, %v1748
        %v1875 = vadd.f32 %v1446, %v1753
        %v1876 = vadd.f32 %v1447, %v1758
        %v1877 = vadd.f32 %v1448, %v1763
        %v1878 = vadd.f32 %v1449, %v1768
        %v1879 = vadd.f32 %v1450, %v1773
        %v1880 = vadd.f32 %v1451, %v1778
        %v1881 = vadd.f32 %v1452, %v1783
        %v1882 = vadd.f32 %v1453, %v1788
        %v1883 = vadd.f32 %v1454, %v1793
        %v1884 = vadd.f32 %v1455, %v1798
        %v1885 = vadd.f32 %v1456, %v1803
        %v1886 = vadd.f32 %v1457, %v1808
        %v1887 = vadd.f32 %v1458, %v1813
        %v1888 = vadd.f32 %v1459, %v1818
        %v1889 = vadd.f32 %v1460, %v1823
        %v1890 = vadd.f32 %v1461, %v1828
        %v1891 = vadd.f32 %v1462, %v1833
        %v1892 = vadd.f32 %v1463, %v1838
        %v1893 = vadd.f32 %v1464, %v1843
        %v1894 = vadd.f32 %v1465, %v1848
        %v1895 = vadd.f32 %v1466, %v1853
        %v1896 = vadd.f32 %v1467, %v1858
        %v1897 = vld [vmem:[%s250 + $0x13] sm:$0xff]
        %v1898 = vld [vmem:[%s250 + $0x1b] sm:$0xff]
        %v1899 = vld [vmem:[%s250 + $0x23] sm:$0xff]
        %v1900 = vld [vmem:[%s250 + $0x2b] sm:$0xff]
        %v1901 = vld [vmem:[%s250 + $0x33] sm:$0xff]
        %v1902 = vld [vmem:[%s250 + $0x3b] sm:$0xff]
        %v1903 = vld [vmem:[%s250 + $0x43] sm:$0xff]
        %v1904 = vld [vmem:[%s250 + $0x4b] sm:$0xff]
        %v1905 = vld [vmem:[%s250 + $0x53] sm:$0xff]
        %v1906 = vld [vmem:[%s250 + $0x5b] sm:$0xff]
        %v1907 = vld [vmem:[%s250 + $0x63] sm:$0xff]
        %v1908 = vld [vmem:[%s250 + $0x6b] sm:$0xff]
        %v1909 = vld [vmem:[%s250 + $0x73] sm:$0xff]
        %v1910 = vld [vmem:[%s250 + $0x7b] sm:$0xff]
        %v1911 = vld [vmem:[%s250 + $0x83] sm:$0xff]
        %v1912 = vld [vmem:[%s250 + $0x8b] sm:$0xff]
        %v1913 = vld [vmem:[%s250 + $0x93] sm:$0xff]
        %v1914 = vld [vmem:[%s250 + $0x9b] sm:$0xff]
        %v1915 = vld [vmem:[%s250 + $0xa3] sm:$0xff]
        %v1916 = vld [vmem:[%s250 + $0xab] sm:$0xff]
        %v1917 = vld [vmem:[%s250 + $0xb3] sm:$0xff]
        %v1918 = vld [vmem:[%s250 + $0xbb] sm:$0xff]
        %v1919 = vld [vmem:[%s250 + $0xc3] sm:$0xff]
        %v1920 = vld [vmem:[%s250 + $0xcb] sm:$0xff]
        %v1921 = vld [vmem:[%s250 + $0xd3] sm:$0xff]
        %v1922 = vld [vmem:[%s250 + $0xdb] sm:$0xff]
        %v1923 = vld [vmem:[%s250 + $0xe3] sm:$0xff]
        %v1924 = vld [vmem:[%s250 + $0xeb] sm:$0xff]
        %v1925 = vld [vmem:[%s250 + $0xf3] sm:$0xff]
        %v1926 = vld [vmem:[%s250 + $0xfb] sm:$0xff]
        %v1927 = vld [vmem:[%s250 + $0x103] sm:$0xff]
        %v1928 = vld [vmem:[%s250 + $0x10b] sm:$0xff]
        %v1929 = vld [vmem:[%s250 + $0x113] sm:$0xff]
        %v1930 = vld [vmem:[%s250 + $0x11b] sm:$0xff]
        %v1931 = vld [vmem:[%s250 + $0x123] sm:$0xff]
        %v1932 = vld [vmem:[%s250 + $0x12b] sm:$0xff]
        %v1933 = vld [vmem:[%s1 + $0x10] sm:$0xf]
        %v1935 = vsel %vm325, %v1897, 0
        %v1938 = vsel %vm325, %v1898, 0
        %v1941 = vsel %vm325, %v1899, 0
        %v1944 = vsel %vm325, %v1900, 0
        %v1947 = vsel %vm325, %v1901, 0
        %v1950 = vsel %vm325, %v1902, 0
        %v1953 = vsel %vm325, %v1903, 0
        %v1956 = vsel %vm325, %v1904, 0
        %v1959 = vsel %vm325, %v1905, 0
        %v1962 = vsel %vm325, %v1906, 0
        %v1965 = vsel %vm325, %v1907, 0
        %v1968 = vsel %vm325, %v1908, 0
        %v1971 = vsel %vm325, %v1909, 0
        %v1974 = vsel %vm325, %v1910, 0
        %v1977 = vsel %vm325, %v1911, 0
        %v1980 = vsel %vm325, %v1912, 0
        %v1983 = vsel %vm325, %v1913, 0
        %v1986 = vsel %vm325, %v1914, 0
        %v1989 = vsel %vm325, %v1915, 0
        %v1992 = vsel %vm325, %v1916, 0
        %v1995 = vsel %vm325, %v1917, 0
        %v1998 = vsel %vm325, %v1918, 0
        %v2001 = vsel %vm325, %v1919, 0
        %v2004 = vsel %vm325, %v1920, 0
        %v2007 = vsel %vm325, %v1921, 0
        %v2010 = vsel %vm325, %v1922, 0
        %v2013 = vsel %vm325, %v1923, 0
        %v2016 = vsel %vm325, %v1924, 0
        %v2019 = vsel %vm325, %v1925, 0
        %v2022 = vsel %vm325, %v1926, 0
        %v2025 = vsel %vm325, %v1927, 0
        %v2028 = vsel %vm325, %v1928, 0
        %v2031 = vsel %vm325, %v1929, 0
        %v2034 = vsel %vm325, %v1930, 0
        %v2037 = vsel %vm325, %v1931, 0
        %v2040 = vsel %vm325, %v1932, 0
        %v2043 = vsel %vm434, %v1933, 0
        %2045 = vmatprep.subr.mxu0 0.0
        %2046 = vmatpush1.msra.mxu0 0.0
        %2047 = vmatprep.subr.mxu0 0.0
        %2048 = vmatpush1.msra.mxu0 0.0
        %2049 = vmatprep.subr.mxu0 0.0
        %2050 = vmatpush1.msra.mxu0 0.0
        %2051 = vmatprep.subr.mxu0 0.0
        %2052 = vmatpush1.msra.mxu0 0.0
        %2053 = vmatprep.subr.mxu0 0.0
        %2054 = vmatpush1.msra.mxu0 0.0
        %2055 = vmatprep.subr.mxu0 0.0
        %2056 = vmatpush1.msra.mxu0 0.0
        %2057 = vmatprep.subr.mxu0 0.0
        %2058 = vmatpush1.msra.mxu0 0.0
        %2059 = vmatprep.subr.mxu0 0.0
        %2060 = vmatpush1.msra.mxu0 0.0
        %2061 = vmatprep.subr.mxu0 0.0
        %2062 = vmatpush1.msra.mxu0 0.0
        %2063 = vmatprep.subr.mxu0 0.0
        %2064 = vmatpush1.msra.mxu0 0.0
        %2065 = vmatprep.subr.mxu0 0.0
        %2066 = vmatpush1.msra.mxu0 0.0
        %2067 = vmatprep.subr.mxu0 0.0
        %2068 = vmatpush1.msra.mxu0 0.0
        %2069 = vmatprep.subr.mxu0 0.0
        %2070 = vmatpush1.msra.mxu0 0.0
        %2071 = vmatprep.subr.mxu0 0.0
        %2072 = vmatpush1.msra.mxu0 0.0
        %2073 = vmatprep.subr.mxu0 0.0
        %2074 = vmatpush1.msra.mxu0 0.0
        %2075 = vmatprep.subr.mxu0 0.0
        %2076 = vmatpush1.msra.mxu0 %v2043
        %2077 = vmatprep.subr.mxu0 0.0
        %2078 = vmatpush2.msra.mxu0 0.0
        %2079 = vmatprep.subr.mxu0 0.0
        %2080 = vmatpush2.msra.mxu0 0.0
        %2081 = vmatprep.subr.mxu0 0.0
        %2082 = vmatpush2.msra.mxu0 0.0
        %2083 = vmatprep.subr.mxu0 0.0
        %2084 = vmatpush2.msra.mxu0 0.0
        %2085 = vmatprep.subr.mxu0 0.0
        %2086 = vmatpush2.msra.mxu0 0.0
        %2087 = vmatprep.subr.mxu0 0.0
        %2088 = vmatpush2.msra.mxu0 0.0
        %2089 = vmatprep.subr.mxu0 0.0
        %2090 = vmatpush2.msra.mxu0 0.0
        %2091 = vmatprep.subr.mxu0 0.0
        %2092 = vmatpush2.msra.mxu0 0.0
        %2093 = vmatprep.subr.mxu0 0.0
        %2094 = vmatpush2.msra.mxu0 0.0
        %2095 = vmatprep.subr.mxu0 0.0
        %2096 = vmatpush2.msra.mxu0 0.0
        %2097 = vmatprep.subr.mxu0 0.0
        %2098 = vmatpush2.msra.mxu0 0.0
        %2099 = vmatprep.subr.mxu0 0.0
        %2100 = vmatpush2.msra.mxu0 0.0
        %2101 = vmatprep.subr.mxu0 0.0
        %2102 = vmatpush2.msra.mxu0 0.0
        %2103 = vmatprep.subr.mxu0 0.0
        %2104 = vmatpush2.msra.mxu0 0.0
        %2105 = vmatprep.subr.mxu0 0.0
        %2106 = vmatpush2.msra.mxu0 0.0
        %2107 = vmatprep.subr.mxu0 0.0
        %2108 = vmatpush2.msra.mxu0 0.0
        %2109 = vmatprep.mubr.f32.mxu0 0.0
        %2110 = vmatmul.mubr.f32.gmra.mxu0 %v1935
        %v2111 = vpop.f32.mrf.mxu0
        %v2112 = vadd.f32 0.0, %v2111
        %v2113 = vpop.f32.mrf.mxu0
        %2114 = vmatprep.mubr.f32.mxu0 0.0
        %2115 = vmatmul.mubr.f32.gmra.mxu0 %v1938
        %v2116 = vpop.f32.mrf.mxu0
        %v2117 = vadd.f32 0.0, %v2116
        %v2118 = vpop.f32.mrf.mxu0
        %2119 = vmatprep.mubr.f32.mxu0 0.0
        %2120 = vmatmul.mubr.f32.gmra.mxu0 %v1941
        %v2121 = vpop.f32.mrf.mxu0
        %v2122 = vadd.f32 0.0, %v2121
        %v2123 = vpop.f32.mrf.mxu0
        %2124 = vmatprep.mubr.f32.mxu0 0.0
        %2125 = vmatmul.mubr.f32.gmra.mxu0 %v1944
        %v2126 = vpop.f32.mrf.mxu0
        %v2127 = vadd.f32 0.0, %v2126
        %v2128 = vpop.f32.mrf.mxu0
        %2129 = vmatprep.mubr.f32.mxu0 0.0
        %2130 = vmatmul.mubr.f32.gmra.mxu0 %v1947
        %v2131 = vpop.f32.mrf.mxu0
        %v2132 = vadd.f32 0.0, %v2131
        %v2133 = vpop.f32.mrf.mxu0
        %2134 = vmatprep.mubr.f32.mxu0 0.0
        %2135 = vmatmul.mubr.f32.gmra.mxu0 %v1950
        %v2136 = vpop.f32.mrf.mxu0
        %v2137 = vadd.f32 0.0, %v2136
        %v2138 = vpop.f32.mrf.mxu0
        %2139 = vmatprep.mubr.f32.mxu0 0.0
        %2140 = vmatmul.mubr.f32.gmra.mxu0 %v1953
        %v2141 = vpop.f32.mrf.mxu0
        %v2142 = vadd.f32 0.0, %v2141
        %v2143 = vpop.f32.mrf.mxu0
        %2144 = vmatprep.mubr.f32.mxu0 0.0
        %2145 = vmatmul.mubr.f32.gmra.mxu0 %v1956
        %v2146 = vpop.f32.mrf.mxu0
        %v2147 = vadd.f32 0.0, %v2146
        %v2148 = vpop.f32.mrf.mxu0
        %2149 = vmatprep.mubr.f32.mxu0 0.0
        %2150 = vmatmul.mubr.f32.gmra.mxu0 %v1959
        %v2151 = vpop.f32.mrf.mxu0
        %v2152 = vadd.f32 0.0, %v2151
        %v2153 = vpop.f32.mrf.mxu0
        %2154 = vmatprep.mubr.f32.mxu0 0.0
        %2155 = vmatmul.mubr.f32.gmra.mxu0 %v1962
        %v2156 = vpop.f32.mrf.mxu0
        %v2157 = vadd.f32 0.0, %v2156
        %v2158 = vpop.f32.mrf.mxu0
        %2159 = vmatprep.mubr.f32.mxu0 0.0
        %2160 = vmatmul.mubr.f32.gmra.mxu0 %v1965
        %v2161 = vpop.f32.mrf.mxu0
        %v2162 = vadd.f32 0.0, %v2161
        %v2163 = vpop.f32.mrf.mxu0
        %2164 = vmatprep.mubr.f32.mxu0 0.0
        %2165 = vmatmul.mubr.f32.gmra.mxu0 %v1968
        %v2166 = vpop.f32.mrf.mxu0
        %v2167 = vadd.f32 0.0, %v2166
        %v2168 = vpop.f32.mrf.mxu0
        %2169 = vmatprep.mubr.f32.mxu0 0.0
        %2170 = vmatmul.mubr.f32.gmra.mxu0 %v1971
        %v2171 = vpop.f32.mrf.mxu0
        %v2172 = vadd.f32 0.0, %v2171
        %v2173 = vpop.f32.mrf.mxu0
        %2174 = vmatprep.mubr.f32.mxu0 0.0
        %2175 = vmatmul.mubr.f32.gmra.mxu0 %v1974
        %v2176 = vpop.f32.mrf.mxu0
        %v2177 = vadd.f32 0.0, %v2176
        %v2178 = vpop.f32.mrf.mxu0
        %2179 = vmatprep.mubr.f32.mxu0 0.0
        %2180 = vmatmul.mubr.f32.gmra.mxu0 %v1977
        %v2181 = vpop.f32.mrf.mxu0
        %v2182 = vadd.f32 0.0, %v2181
        %v2183 = vpop.f32.mrf.mxu0
        %2184 = vmatprep.mubr.f32.mxu0 0.0
        %2185 = vmatmul.mubr.f32.gmra.mxu0 %v1980
        %v2186 = vpop.f32.mrf.mxu0
        %v2187 = vadd.f32 0.0, %v2186
        %v2188 = vpop.f32.mrf.mxu0
        %2189 = vmatprep.mubr.f32.mxu0 0.0
        %2190 = vmatmul.mubr.f32.gmra.mxu0 %v1983
        %v2191 = vpop.f32.mrf.mxu0
        %v2192 = vadd.f32 0.0, %v2191
        %v2193 = vpop.f32.mrf.mxu0
        %2194 = vmatprep.mubr.f32.mxu0 0.0
        %2195 = vmatmul.mubr.f32.gmra.mxu0 %v1986
        %v2196 = vpop.f32.mrf.mxu0
        %v2197 = vadd.f32 0.0, %v2196
        %v2198 = vpop.f32.mrf.mxu0
        %2199 = vmatprep.mubr.f32.mxu0 0.0
        %2200 = vmatmul.mubr.f32.gmra.mxu0 %v1989
        %v2201 = vpop.f32.mrf.mxu0
        %v2202 = vadd.f32 0.0, %v2201
        %v2203 = vpop.f32.mrf.mxu0
        %2204 = vmatprep.mubr.f32.mxu0 0.0
        %2205 = vmatmul.mubr.f32.gmra.mxu0 %v1992
        %v2206 = vpop.f32.mrf.mxu0
        %v2207 = vadd.f32 0.0, %v2206
        %v2208 = vpop.f32.mrf.mxu0
        %2209 = vmatprep.mubr.f32.mxu0 0.0
        %2210 = vmatmul.mubr.f32.gmra.mxu0 %v1995
        %v2211 = vpop.f32.mrf.mxu0
        %v2212 = vadd.f32 0.0, %v2211
        %v2213 = vpop.f32.mrf.mxu0
        %2214 = vmatprep.mubr.f32.mxu0 0.0
        %2215 = vmatmul.mubr.f32.gmra.mxu0 %v1998
        %v2216 = vpop.f32.mrf.mxu0
        %v2217 = vadd.f32 0.0, %v2216
        %v2218 = vpop.f32.mrf.mxu0
        %2219 = vmatprep.mubr.f32.mxu0 0.0
        %2220 = vmatmul.mubr.f32.gmra.mxu0 %v2001
        %v2221 = vpop.f32.mrf.mxu0
        %v2222 = vadd.f32 0.0, %v2221
        %v2223 = vpop.f32.mrf.mxu0
        %2224 = vmatprep.mubr.f32.mxu0 0.0
        %2225 = vmatmul.mubr.f32.gmra.mxu0 %v2004
        %v2226 = vpop.f32.mrf.mxu0
        %v2227 = vadd.f32 0.0, %v2226
        %v2228 = vpop.f32.mrf.mxu0
        %2229 = vmatprep.mubr.f32.mxu0 0.0
        %2230 = vmatmul.mubr.f32.gmra.mxu0 %v2007
        %v2231 = vpop.f32.mrf.mxu0
        %v2232 = vadd.f32 0.0, %v2231
        %v2233 = vpop.f32.mrf.mxu0
        %2234 = vmatprep.mubr.f32.mxu0 0.0
        %2235 = vmatmul.mubr.f32.gmra.mxu0 %v2010
        %v2236 = vpop.f32.mrf.mxu0
        %v2237 = vadd.f32 0.0, %v2236
        %v2238 = vpop.f32.mrf.mxu0
        %2239 = vmatprep.mubr.f32.mxu0 0.0
        %2240 = vmatmul.mubr.f32.gmra.mxu0 %v2013
        %v2241 = vpop.f32.mrf.mxu0
        %v2242 = vadd.f32 0.0, %v2241
        %v2243 = vpop.f32.mrf.mxu0
        %2244 = vmatprep.mubr.f32.mxu0 0.0
        %2245 = vmatmul.mubr.f32.gmra.mxu0 %v2016
        %v2246 = vpop.f32.mrf.mxu0
        %v2247 = vadd.f32 0.0, %v2246
        %v2248 = vpop.f32.mrf.mxu0
        %2249 = vmatprep.mubr.f32.mxu0 0.0
        %2250 = vmatmul.mubr.f32.gmra.mxu0 %v2019
        %v2251 = vpop.f32.mrf.mxu0
        %v2252 = vadd.f32 0.0, %v2251
        %v2253 = vpop.f32.mrf.mxu0
        %2254 = vmatprep.mubr.f32.mxu0 0.0
        %2255 = vmatmul.mubr.f32.gmra.mxu0 %v2022
        %v2256 = vpop.f32.mrf.mxu0
        %v2257 = vadd.f32 0.0, %v2256
        %v2258 = vpop.f32.mrf.mxu0
        %2259 = vmatprep.mubr.f32.mxu0 0.0
        %2260 = vmatmul.mubr.f32.gmra.mxu0 %v2025
        %v2261 = vpop.f32.mrf.mxu0
        %v2262 = vadd.f32 0.0, %v2261
        %v2263 = vpop.f32.mrf.mxu0
        %2264 = vmatprep.mubr.f32.mxu0 0.0
        %2265 = vmatmul.mubr.f32.gmra.mxu0 %v2028
        %v2266 = vpop.f32.mrf.mxu0
        %v2267 = vadd.f32 0.0, %v2266
        %v2268 = vpop.f32.mrf.mxu0
        %2269 = vmatprep.mubr.f32.mxu0 0.0
        %2270 = vmatmul.mubr.f32.gmra.mxu0 %v2031
        %v2271 = vpop.f32.mrf.mxu0
        %v2272 = vadd.f32 0.0, %v2271
        %v2273 = vpop.f32.mrf.mxu0
        %2274 = vmatprep.mubr.f32.mxu0 0.0
        %2275 = vmatmul.mubr.f32.gmra.mxu0 %v2034
        %v2276 = vpop.f32.mrf.mxu0
        %v2277 = vadd.f32 0.0, %v2276
        %v2278 = vpop.f32.mrf.mxu0
        %2279 = vmatprep.mubr.f32.mxu0 0.0
        %2280 = vmatmul.mubr.f32.gmra.mxu0 %v2037
        %v2281 = vpop.f32.mrf.mxu0
        %v2282 = vadd.f32 0.0, %v2281
        %v2283 = vpop.f32.mrf.mxu0
        %2284 = vmatprep.mubr.f32.mxu0 0.0
        %2285 = vmatmul.mubr.f32.gmra.mxu0 %v2040
        %v2286 = vpop.f32.mrf.mxu0
        %v2287 = vadd.f32 0.0, %v2286
        %v2288 = vpop.f32.mrf.mxu0
        %2289 = vdwg.mxu0
        %v2290 = vadd.f32 %v1861, %v2112
        %v2291 = vadd.f32 %v1862, %v2117
        %v2292 = vadd.f32 %v1863, %v2122
        %v2293 = vadd.f32 %v1864, %v2127
        %v2294 = vadd.f32 %v1865, %v2132
        %v2295 = vadd.f32 %v1866, %v2137
        %v2296 = vadd.f32 %v1867, %v2142
        %v2297 = vadd.f32 %v1868, %v2147
        %v2298 = vadd.f32 %v1869, %v2152
        %v2299 = vadd.f32 %v1870, %v2157
        %v2300 = vadd.f32 %v1871, %v2162
        %v2301 = vadd.f32 %v1872, %v2167
        %v2302 = vadd.f32 %v1873, %v2172
        %v2303 = vadd.f32 %v1874, %v2177
        %v2304 = vadd.f32 %v1875, %v2182
        %v2305 = vadd.f32 %v1876, %v2187
        %v2306 = vadd.f32 %v1877, %v2192
        %v2307 = vadd.f32 %v1878, %v2197
        %v2308 = vadd.f32 %v1879, %v2202
        %v2309 = vadd.f32 %v1880, %v2207
        %v2310 = vadd.f32 %v1881, %v2212
        %v2311 = vadd.f32 %v1882, %v2217
        %v2312 = vadd.f32 %v1883, %v2222
        %v2313 = vadd.f32 %v1884, %v2227
        %v2314 = vadd.f32 %v1885, %v2232
        %v2315 = vadd.f32 %v1886, %v2237
        %v2316 = vadd.f32 %v1887, %v2242
        %v2317 = vadd.f32 %v1888, %v2247
        %v2318 = vadd.f32 %v1889, %v2252
        %v2319 = vadd.f32 %v1890, %v2257
        %v2320 = vadd.f32 %v1891, %v2262
        %v2321 = vadd.f32 %v1892, %v2267
        %v2322 = vadd.f32 %v1893, %v2272
        %v2323 = vadd.f32 %v1894, %v2277
        %v2324 = vadd.f32 %v1895, %v2282
        %v2325 = vadd.f32 %v1896, %v2287
        %v2326 = vld [vmem:[%s250 + $0x14] sm:$0xff]
        %v2327 = vld [vmem:[%s250 + $0x1c] sm:$0xff]
        %v2328 = vld [vmem:[%s250 + $0x24] sm:$0xff]
        %v2329 = vld [vmem:[%s250 + $0x2c] sm:$0xff]
        %v2330 = vld [vmem:[%s250 + $0x34] sm:$0xff]
        %v2331 = vld [vmem:[%s250 + $0x3c] sm:$0xff]
        %v2332 = vld [vmem:[%s250 + $0x44] sm:$0xff]
        %v2333 = vld [vmem:[%s250 + $0x4c] sm:$0xff]
        %v2334 = vld [vmem:[%s250 + $0x54] sm:$0xff]
        %v2335 = vld [vmem:[%s250 + $0x5c] sm:$0xff]
        %v2336 = vld [vmem:[%s250 + $0x64] sm:$0xff]
        %v2337 = vld [vmem:[%s250 + $0x6c] sm:$0xff]
        %v2338 = vld [vmem:[%s250 + $0x74] sm:$0xff]
        %v2339 = vld [vmem:[%s250 + $0x7c] sm:$0xff]
        %v2340 = vld [vmem:[%s250 + $0x84] sm:$0xff]
        %v2341 = vld [vmem:[%s250 + $0x8c] sm:$0xff]
        %v2342 = vld [vmem:[%s250 + $0x94] sm:$0xff]
        %v2343 = vld [vmem:[%s250 + $0x9c] sm:$0xff]
        %v2344 = vld [vmem:[%s250 + $0xa4] sm:$0xff]
        %v2345 = vld [vmem:[%s250 + $0xac] sm:$0xff]
        %v2346 = vld [vmem:[%s250 + $0xb4] sm:$0xff]
        %v2347 = vld [vmem:[%s250 + $0xbc] sm:$0xff]
        %v2348 = vld [vmem:[%s250 + $0xc4] sm:$0xff]
        %v2349 = vld [vmem:[%s250 + $0xcc] sm:$0xff]
        %v2350 = vld [vmem:[%s250 + $0xd4] sm:$0xff]
        %v2351 = vld [vmem:[%s250 + $0xdc] sm:$0xff]
        %v2352 = vld [vmem:[%s250 + $0xe4] sm:$0xff]
        %v2353 = vld [vmem:[%s250 + $0xec] sm:$0xff]
        %v2354 = vld [vmem:[%s250 + $0xf4] sm:$0xff]
        %v2355 = vld [vmem:[%s250 + $0xfc] sm:$0xff]
        %v2356 = vld [vmem:[%s250 + $0x104] sm:$0xff]
        %v2357 = vld [vmem:[%s250 + $0x10c] sm:$0xff]
        %v2358 = vld [vmem:[%s250 + $0x114] sm:$0xff]
        %v2359 = vld [vmem:[%s250 + $0x11c] sm:$0xff]
        %v2360 = vld [vmem:[%s250 + $0x124] sm:$0xff]
        %v2361 = vld [vmem:[%s250 + $0x12c] sm:$0xff]
        %v2362 = vld [vmem:[%s1 + $0x14] sm:$0xf]
        %v2364 = vsel %vm325, %v2326, 0
        %v2367 = vsel %vm325, %v2327, 0
        %v2370 = vsel %vm325, %v2328, 0
        %v2373 = vsel %vm325, %v2329, 0
        %v2376 = vsel %vm325, %v2330, 0
        %v2379 = vsel %vm325, %v2331, 0
        %v2382 = vsel %vm325, %v2332, 0
        %v2385 = vsel %vm325, %v2333, 0
        %v2388 = vsel %vm325, %v2334, 0
        %v2391 = vsel %vm325, %v2335, 0
        %v2394 = vsel %vm325, %v2336, 0
        %v2397 = vsel %vm325, %v2337, 0
        %v2400 = vsel %vm325, %v2338, 0
        %v2403 = vsel %vm325, %v2339, 0
        %v2406 = vsel %vm325, %v2340, 0
        %v2409 = vsel %vm325, %v2341, 0
        %v2412 = vsel %vm325, %v2342, 0
        %v2415 = vsel %vm325, %v2343, 0
        %v2418 = vsel %vm325, %v2344, 0
        %v2421 = vsel %vm325, %v2345, 0
        %v2424 = vsel %vm325, %v2346, 0
        %v2427 = vsel %vm325, %v2347, 0
        %v2430 = vsel %vm325, %v2348, 0
        %v2433 = vsel %vm325, %v2349, 0
        %v2436 = vsel %vm325, %v2350, 0
        %v2439 = vsel %vm325, %v2351, 0
        %v2442 = vsel %vm325, %v2352, 0
        %v2445 = vsel %vm325, %v2353, 0
        %v2448 = vsel %vm325, %v2354, 0
        %v2451 = vsel %vm325, %v2355, 0
        %v2454 = vsel %vm325, %v2356, 0
        %v2457 = vsel %vm325, %v2357, 0
        %v2460 = vsel %vm325, %v2358, 0
        %v2463 = vsel %vm325, %v2359, 0
        %v2466 = vsel %vm325, %v2360, 0
        %v2469 = vsel %vm325, %v2361, 0
        %v2472 = vsel %vm434, %v2362, 0
        %2474 = vmatprep.subr.mxu0 0.0
        %2475 = vmatpush1.msra.mxu0 0.0
        %2476 = vmatprep.subr.mxu0 0.0
        %2477 = vmatpush1.msra.mxu0 0.0
        %2478 = vmatprep.subr.mxu0 0.0
        %2479 = vmatpush1.msra.mxu0 0.0
        %2480 = vmatprep.subr.mxu0 0.0
        %2481 = vmatpush1.msra.mxu0 0.0
        %2482 = vmatprep.subr.mxu0 0.0
        %2483 = vmatpush1.msra.mxu0 0.0
        %2484 = vmatprep.subr.mxu0 0.0
        %2485 = vmatpush1.msra.mxu0 0.0
        %2486 = vmatprep.subr.mxu0 0.0
        %2487 = vmatpush1.msra.mxu0 0.0
        %2488 = vmatprep.subr.mxu0 0.0
        %2489 = vmatpush1.msra.mxu0 0.0
        %2490 = vmatprep.subr.mxu0 0.0
        %2491 = vmatpush1.msra.mxu0 0.0
        %2492 = vmatprep.subr.mxu0 0.0
        %2493 = vmatpush1.msra.mxu0 0.0
        %2494 = vmatprep.subr.mxu0 0.0
        %2495 = vmatpush1.msra.mxu0 0.0
        %2496 = vmatprep.subr.mxu0 0.0
        %2497 = vmatpush1.msra.mxu0 0.0
        %2498 = vmatprep.subr.mxu0 0.0
        %2499 = vmatpush1.msra.mxu0 0.0
        %2500 = vmatprep.subr.mxu0 0.0
        %2501 = vmatpush1.msra.mxu0 0.0
        %2502 = vmatprep.subr.mxu0 0.0
        %2503 = vmatpush1.msra.mxu0 0.0
        %2504 = vmatprep.subr.mxu0 0.0
        %2505 = vmatpush1.msra.mxu0 %v2472
        %2506 = vmatprep.subr.mxu0 0.0
        %2507 = vmatpush2.msra.mxu0 0.0
        %2508 = vmatprep.subr.mxu0 0.0
        %2509 = vmatpush2.msra.mxu0 0.0
        %2510 = vmatprep.subr.mxu0 0.0
        %2511 = vmatpush2.msra.mxu0 0.0
        %2512 = vmatprep.subr.mxu0 0.0
        %2513 = vmatpush2.msra.mxu0 0.0
        %2514 = vmatprep.subr.mxu0 0.0
        %2515 = vmatpush2.msra.mxu0 0.0
        %2516 = vmatprep.subr.mxu0 0.0
        %2517 = vmatpush2.msra.mxu0 0.0
        %2518 = vmatprep.subr.mxu0 0.0
        %2519 = vmatpush2.msra.mxu0 0.0
        %2520 = vmatprep.subr.mxu0 0.0
        %2521 = vmatpush2.msra.mxu0 0.0
        %2522 = vmatprep.subr.mxu0 0.0
        %2523 = vmatpush2.msra.mxu0 0.0
        %2524 = vmatprep.subr.mxu0 0.0
        %2525 = vmatpush2.msra.mxu0 0.0
        %2526 = vmatprep.subr.mxu0 0.0
        %2527 = vmatpush2.msra.mxu0 0.0
        %2528 = vmatprep.subr.mxu0 0.0
        %2529 = vmatpush2.msra.mxu0 0.0
        %2530 = vmatprep.subr.mxu0 0.0
        %2531 = vmatpush2.msra.mxu0 0.0
        %2532 = vmatprep.subr.mxu0 0.0
        %2533 = vmatpush2.msra.mxu0 0.0
        %2534 = vmatprep.subr.mxu0 0.0
        %2535 = vmatpush2.msra.mxu0 0.0
        %2536 = vmatprep.subr.mxu0 0.0
        %2537 = vmatpush2.msra.mxu0 0.0
        %2538 = vmatprep.mubr.f32.mxu0 0.0
        %2539 = vmatmul.mubr.f32.gmra.mxu0 %v2364
        %v2540 = vpop.f32.mrf.mxu0
        %v2541 = vadd.f32 0.0, %v2540
        %v2542 = vpop.f32.mrf.mxu0
        %2543 = vmatprep.mubr.f32.mxu0 0.0
        %2544 = vmatmul.mubr.f32.gmra.mxu0 %v2367
        %v2545 = vpop.f32.mrf.mxu0
        %v2546 = vadd.f32 0.0, %v2545
        %v2547 = vpop.f32.mrf.mxu0
        %2548 = vmatprep.mubr.f32.mxu0 0.0
        %2549 = vmatmul.mubr.f32.gmra.mxu0 %v2370
        %v2550 = vpop.f32.mrf.mxu0
        %v2551 = vadd.f32 0.0, %v2550
        %v2552 = vpop.f32.mrf.mxu0
        %2553 = vmatprep.mubr.f32.mxu0 0.0
        %2554 = vmatmul.mubr.f32.gmra.mxu0 %v2373
        %v2555 = vpop.f32.mrf.mxu0
        %v2556 = vadd.f32 0.0, %v2555
        %v2557 = vpop.f32.mrf.mxu0
        %2558 = vmatprep.mubr.f32.mxu0 0.0
        %2559 = vmatmul.mubr.f32.gmra.mxu0 %v2376
        %v2560 = vpop.f32.mrf.mxu0
        %v2561 = vadd.f32 0.0, %v2560
        %v2562 = vpop.f32.mrf.mxu0
        %2563 = vmatprep.mubr.f32.mxu0 0.0
        %2564 = vmatmul.mubr.f32.gmra.mxu0 %v2379
        %v2565 = vpop.f32.mrf.mxu0
        %v2566 = vadd.f32 0.0, %v2565
        %v2567 = vpop.f32.mrf.mxu0
        %2568 = vmatprep.mubr.f32.mxu0 0.0
        %2569 = vmatmul.mubr.f32.gmra.mxu0 %v2382
        %v2570 = vpop.f32.mrf.mxu0
        %v2571 = vadd.f32 0.0, %v2570
        %v2572 = vpop.f32.mrf.mxu0
        %2573 = vmatprep.mubr.f32.mxu0 0.0
        %2574 = vmatmul.mubr.f32.gmra.mxu0 %v2385
        %v2575 = vpop.f32.mrf.mxu0
        %v2576 = vadd.f32 0.0, %v2575
        %v2577 = vpop.f32.mrf.mxu0
        %2578 = vmatprep.mubr.f32.mxu0 0.0
        %2579 = vmatmul.mubr.f32.gmra.mxu0 %v2388
        %v2580 = vpop.f32.mrf.mxu0
        %v2581 = vadd.f32 0.0, %v2580
        %v2582 = vpop.f32.mrf.mxu0
        %2583 = vmatprep.mubr.f32.mxu0 0.0
        %2584 = vmatmul.mubr.f32.gmra.mxu0 %v2391
        %v2585 = vpop.f32.mrf.mxu0
        %v2586 = vadd.f32 0.0, %v2585
        %v2587 = vpop.f32.mrf.mxu0
        %2588 = vmatprep.mubr.f32.mxu0 0.0
        %2589 = vmatmul.mubr.f32.gmra.mxu0 %v2394
        %v2590 = vpop.f32.mrf.mxu0
        %v2591 = vadd.f32 0.0, %v2590
        %v2592 = vpop.f32.mrf.mxu0
        %2593 = vmatprep.mubr.f32.mxu0 0.0
        %2594 = vmatmul.mubr.f32.gmra.mxu0 %v2397
        %v2595 = vpop.f32.mrf.mxu0
        %v2596 = vadd.f32 0.0, %v2595
        %v2597 = vpop.f32.mrf.mxu0
        %2598 = vmatprep.mubr.f32.mxu0 0.0
        %2599 = vmatmul.mubr.f32.gmra.mxu0 %v2400
        %v2600 = vpop.f32.mrf.mxu0
        %v2601 = vadd.f32 0.0, %v2600
        %v2602 = vpop.f32.mrf.mxu0
        %2603 = vmatprep.mubr.f32.mxu0 0.0
        %2604 = vmatmul.mubr.f32.gmra.mxu0 %v2403
        %v2605 = vpop.f32.mrf.mxu0
        %v2606 = vadd.f32 0.0, %v2605
        %v2607 = vpop.f32.mrf.mxu0
        %2608 = vmatprep.mubr.f32.mxu0 0.0
        %2609 = vmatmul.mubr.f32.gmra.mxu0 %v2406
        %v2610 = vpop.f32.mrf.mxu0
        %v2611 = vadd.f32 0.0, %v2610
        %v2612 = vpop.f32.mrf.mxu0
        %2613 = vmatprep.mubr.f32.mxu0 0.0
        %2614 = vmatmul.mubr.f32.gmra.mxu0 %v2409
        %v2615 = vpop.f32.mrf.mxu0
        %v2616 = vadd.f32 0.0, %v2615
        %v2617 = vpop.f32.mrf.mxu0
        %2618 = vmatprep.mubr.f32.mxu0 0.0
        %2619 = vmatmul.mubr.f32.gmra.mxu0 %v2412
        %v2620 = vpop.f32.mrf.mxu0
        %v2621 = vadd.f32 0.0, %v2620
        %v2622 = vpop.f32.mrf.mxu0
        %2623 = vmatprep.mubr.f32.mxu0 0.0
        %2624 = vmatmul.mubr.f32.gmra.mxu0 %v2415
        %v2625 = vpop.f32.mrf.mxu0
        %v2626 = vadd.f32 0.0, %v2625
        %v2627 = vpop.f32.mrf.mxu0
        %2628 = vmatprep.mubr.f32.mxu0 0.0
        %2629 = vmatmul.mubr.f32.gmra.mxu0 %v2418
        %v2630 = vpop.f32.mrf.mxu0
        %v2631 = vadd.f32 0.0, %v2630
        %v2632 = vpop.f32.mrf.mxu0
        %2633 = vmatprep.mubr.f32.mxu0 0.0
        %2634 = vmatmul.mubr.f32.gmra.mxu0 %v2421
        %v2635 = vpop.f32.mrf.mxu0
        %v2636 = vadd.f32 0.0, %v2635
        %v2637 = vpop.f32.mrf.mxu0
        %2638 = vmatprep.mubr.f32.mxu0 0.0
        %2639 = vmatmul.mubr.f32.gmra.mxu0 %v2424
        %v2640 = vpop.f32.mrf.mxu0
        %v2641 = vadd.f32 0.0, %v2640
        %v2642 = vpop.f32.mrf.mxu0
        %2643 = vmatprep.mubr.f32.mxu0 0.0
        %2644 = vmatmul.mubr.f32.gmra.mxu0 %v2427
        %v2645 = vpop.f32.mrf.mxu0
        %v2646 = vadd.f32 0.0, %v2645
        %v2647 = vpop.f32.mrf.mxu0
        %2648 = vmatprep.mubr.f32.mxu0 0.0
        %2649 = vmatmul.mubr.f32.gmra.mxu0 %v2430
        %v2650 = vpop.f32.mrf.mxu0
        %v2651 = vadd.f32 0.0, %v2650
        %v2652 = vpop.f32.mrf.mxu0
        %2653 = vmatprep.mubr.f32.mxu0 0.0
        %2654 = vmatmul.mubr.f32.gmra.mxu0 %v2433
        %v2655 = vpop.f32.mrf.mxu0
        %v2656 = vadd.f32 0.0, %v2655
        %v2657 = vpop.f32.mrf.mxu0
        %2658 = vmatprep.mubr.f32.mxu0 0.0
        %2659 = vmatmul.mubr.f32.gmra.mxu0 %v2436
        %v2660 = vpop.f32.mrf.mxu0
        %v2661 = vadd.f32 0.0, %v2660
        %v2662 = vpop.f32.mrf.mxu0
        %2663 = vmatprep.mubr.f32.mxu0 0.0
        %2664 = vmatmul.mubr.f32.gmra.mxu0 %v2439
        %v2665 = vpop.f32.mrf.mxu0
        %v2666 = vadd.f32 0.0, %v2665
        %v2667 = vpop.f32.mrf.mxu0
        %2668 = vmatprep.mubr.f32.mxu0 0.0
        %2669 = vmatmul.mubr.f32.gmra.mxu0 %v2442
        %v2670 = vpop.f32.mrf.mxu0
        %v2671 = vadd.f32 0.0, %v2670
        %v2672 = vpop.f32.mrf.mxu0
        %2673 = vmatprep.mubr.f32.mxu0 0.0
        %2674 = vmatmul.mubr.f32.gmra.mxu0 %v2445
        %v2675 = vpop.f32.mrf.mxu0
        %v2676 = vadd.f32 0.0, %v2675
        %v2677 = vpop.f32.mrf.mxu0
        %2678 = vmatprep.mubr.f32.mxu0 0.0
        %2679 = vmatmul.mubr.f32.gmra.mxu0 %v2448
        %v2680 = vpop.f32.mrf.mxu0
        %v2681 = vadd.f32 0.0, %v2680
        %v2682 = vpop.f32.mrf.mxu0
        %2683 = vmatprep.mubr.f32.mxu0 0.0
        %2684 = vmatmul.mubr.f32.gmra.mxu0 %v2451
        %v2685 = vpop.f32.mrf.mxu0
        %v2686 = vadd.f32 0.0, %v2685
        %v2687 = vpop.f32.mrf.mxu0
        %2688 = vmatprep.mubr.f32.mxu0 0.0
        %2689 = vmatmul.mubr.f32.gmra.mxu0 %v2454
        %v2690 = vpop.f32.mrf.mxu0
        %v2691 = vadd.f32 0.0, %v2690
        %v2692 = vpop.f32.mrf.mxu0
        %2693 = vmatprep.mubr.f32.mxu0 0.0
        %2694 = vmatmul.mubr.f32.gmra.mxu0 %v2457
        %v2695 = vpop.f32.mrf.mxu0
        %v2696 = vadd.f32 0.0, %v2695
        %v2697 = vpop.f32.mrf.mxu0
        %2698 = vmatprep.mubr.f32.mxu0 0.0
        %2699 = vmatmul.mubr.f32.gmra.mxu0 %v2460
        %v2700 = vpop.f32.mrf.mxu0
        %v2701 = vadd.f32 0.0, %v2700
        %v2702 = vpop.f32.mrf.mxu0
        %2703 = vmatprep.mubr.f32.mxu0 0.0
        %2704 = vmatmul.mubr.f32.gmra.mxu0 %v2463
        %v2705 = vpop.f32.mrf.mxu0
        %v2706 = vadd.f32 0.0, %v2705
        %v2707 = vpop.f32.mrf.mxu0
        %2708 = vmatprep.mubr.f32.mxu0 0.0
        %2709 = vmatmul.mubr.f32.gmra.mxu0 %v2466
        %v2710 = vpop.f32.mrf.mxu0
        %v2711 = vadd.f32 0.0, %v2710
        %v2712 = vpop.f32.mrf.mxu0
        %2713 = vmatprep.mubr.f32.mxu0 0.0
        %2714 = vmatmul.mubr.f32.gmra.mxu0 %v2469
        %v2715 = vpop.f32.mrf.mxu0
        %v2716 = vadd.f32 0.0, %v2715
        %v2717 = vpop.f32.mrf.mxu0
        %2718 = vdwg.mxu0
        %v2719 = vadd.f32 %v2290, %v2541
        %v2720 = vadd.f32 %v2291, %v2546
        %v2721 = vadd.f32 %v2292, %v2551
        %v2722 = vadd.f32 %v2293, %v2556
        %v2723 = vadd.f32 %v2294, %v2561
        %v2724 = vadd.f32 %v2295, %v2566
        %v2725 = vadd.f32 %v2296, %v2571
        %v2726 = vadd.f32 %v2297, %v2576
        %v2727 = vadd.f32 %v2298, %v2581
        %v2728 = vadd.f32 %v2299, %v2586
        %v2729 = vadd.f32 %v2300, %v2591
        %v2730 = vadd.f32 %v2301, %v2596
        %v2731 = vadd.f32 %v2302, %v2601
        %v2732 = vadd.f32 %v2303, %v2606
        %v2733 = vadd.f32 %v2304, %v2611
        %v2734 = vadd.f32 %v2305, %v2616
        %v2735 = vadd.f32 %v2306, %v2621
        %v2736 = vadd.f32 %v2307, %v2626
        %v2737 = vadd.f32 %v2308, %v2631
        %v2738 = vadd.f32 %v2309, %v2636
        %v2739 = vadd.f32 %v2310, %v2641
        %v2740 = vadd.f32 %v2311, %v2646
        %v2741 = vadd.f32 %v2312, %v2651
        %v2742 = vadd.f32 %v2313, %v2656
        %v2743 = vadd.f32 %v2314, %v2661
        %v2744 = vadd.f32 %v2315, %v2666
        %v2745 = vadd.f32 %v2316, %v2671
        %v2746 = vadd.f32 %v2317, %v2676
        %v2747 = vadd.f32 %v2318, %v2681
        %v2748 = vadd.f32 %v2319, %v2686
        %v2749 = vadd.f32 %v2320, %v2691
        %v2750 = vadd.f32 %v2321, %v2696
        %v2751 = vadd.f32 %v2322, %v2701
        %v2752 = vadd.f32 %v2323, %v2706
        %v2753 = vadd.f32 %v2324, %v2711
        %v2754 = vadd.f32 %v2325, %v2716
        %v2755 = vld [vmem:[%s250 + $0x24] sm:$0xff]
        %v2756 = vld [vmem:[%s250 + $0x2c] sm:$0xff]
        %v2757 = vld [vmem:[%s250 + $0x34] sm:$0xff]
        %v2758 = vld [vmem:[%s250 + $0x3c] sm:$0xff]
        %v2759 = vld [vmem:[%s250 + $0x44] sm:$0xff]
        %v2760 = vld [vmem:[%s250 + $0x4c] sm:$0xff]
        %v2761 = vld [vmem:[%s250 + $0x54] sm:$0xff]
        %v2762 = vld [vmem:[%s250 + $0x5c] sm:$0xff]
        %v2763 = vld [vmem:[%s250 + $0x64] sm:$0xff]
        %v2764 = vld [vmem:[%s250 + $0x6c] sm:$0xff]
        %v2765 = vld [vmem:[%s250 + $0x74] sm:$0xff]
        %v2766 = vld [vmem:[%s250 + $0x7c] sm:$0xff]
        %v2767 = vld [vmem:[%s250 + $0x84] sm:$0xff]
        %v2768 = vld [vmem:[%s250 + $0x8c] sm:$0xff]
        %v2769 = vld [vmem:[%s250 + $0x94] sm:$0xff]
        %v2770 = vld [vmem:[%s250 + $0x9c] sm:$0xff]
        %v2771 = vld [vmem:[%s250 + $0xa4] sm:$0xff]
        %v2772 = vld [vmem:[%s250 + $0xac] sm:$0xff]
        %v2773 = vld [vmem:[%s250 + $0xb4] sm:$0xff]
        %v2774 = vld [vmem:[%s250 + $0xbc] sm:$0xff]
        %v2775 = vld [vmem:[%s250 + $0xc4] sm:$0xff]
        %v2776 = vld [vmem:[%s250 + $0xcc] sm:$0xff]
        %v2777 = vld [vmem:[%s250 + $0xd4] sm:$0xff]
        %v2778 = vld [vmem:[%s250 + $0xdc] sm:$0xff]
        %v2779 = vld [vmem:[%s250 + $0xe4] sm:$0xff]
        %v2780 = vld [vmem:[%s250 + $0xec] sm:$0xff]
        %v2781 = vld [vmem:[%s250 + $0xf4] sm:$0xff]
        %v2782 = vld [vmem:[%s250 + $0xfc] sm:$0xff]
        %v2783 = vld [vmem:[%s250 + $0x104] sm:$0xff]
        %v2784 = vld [vmem:[%s250 + $0x10c] sm:$0xff]
        %v2785 = vld [vmem:[%s250 + $0x114] sm:$0xff]
        %v2786 = vld [vmem:[%s250 + $0x11c] sm:$0xff]
        %v2787 = vld [vmem:[%s250 + $0x124] sm:$0xff]
        %v2788 = vld [vmem:[%s250 + $0x12c] sm:$0xff]
        %v2789 = vld [vmem:[%s250 + $0x134] sm:$0xff]
        %v2790 = vld [vmem:[%s250 + $0x13c] sm:$0xff]
        %v2791 = vld [vmem:[%s1 + $0x18] sm:$0xf]
        %v2793 = vsel %vm325, %v2755, 0
        %v2796 = vsel %vm325, %v2756, 0
        %v2799 = vsel %vm325, %v2757, 0
        %v2802 = vsel %vm325, %v2758, 0
        %v2805 = vsel %vm325, %v2759, 0
        %v2808 = vsel %vm325, %v2760, 0
        %v2811 = vsel %vm325, %v2761, 0
        %v2814 = vsel %vm325, %v2762, 0
        %v2817 = vsel %vm325, %v2763, 0
        %v2820 = vsel %vm325, %v2764, 0
        %v2823 = vsel %vm325, %v2765, 0
        %v2826 = vsel %vm325, %v2766, 0
        %v2829 = vsel %vm325, %v2767, 0
        %v2832 = vsel %vm325, %v2768, 0
        %v2835 = vsel %vm325, %v2769, 0
        %v2838 = vsel %vm325, %v2770, 0
        %v2841 = vsel %vm325, %v2771, 0
        %v2844 = vsel %vm325, %v2772, 0
        %v2847 = vsel %vm325, %v2773, 0
        %v2850 = vsel %vm325, %v2774, 0
        %v2853 = vsel %vm325, %v2775, 0
        %v2856 = vsel %vm325, %v2776, 0
        %v2859 = vsel %vm325, %v2777, 0
        %v2862 = vsel %vm325, %v2778, 0
        %v2865 = vsel %vm325, %v2779, 0
        %v2868 = vsel %vm325, %v2780, 0
        %v2871 = vsel %vm325, %v2781, 0
        %v2874 = vsel %vm325, %v2782, 0
        %v2877 = vsel %vm325, %v2783, 0
        %v2880 = vsel %vm325, %v2784, 0
        %v2883 = vsel %vm325, %v2785, 0
        %v2886 = vsel %vm325, %v2786, 0
        %v2889 = vsel %vm325, %v2787, 0
        %v2892 = vsel %vm325, %v2788, 0
        %v2895 = vsel %vm325, %v2789, 0
        %v2898 = vsel %vm325, %v2790, 0
        %v2901 = vsel %vm434, %v2791, 0
        %2903 = vmatprep.subr.mxu0 0.0
        %2904 = vmatpush1.msra.mxu0 0.0
        %2905 = vmatprep.subr.mxu0 0.0
        %2906 = vmatpush1.msra.mxu0 0.0
        %2907 = vmatprep.subr.mxu0 0.0
        %2908 = vmatpush1.msra.mxu0 0.0
        %2909 = vmatprep.subr.mxu0 0.0
        %2910 = vmatpush1.msra.mxu0 0.0
        %2911 = vmatprep.subr.mxu0 0.0
        %2912 = vmatpush1.msra.mxu0 0.0
        %2913 = vmatprep.subr.mxu0 0.0
        %2914 = vmatpush1.msra.mxu0 0.0
        %2915 = vmatprep.subr.mxu0 0.0
        %2916 = vmatpush1.msra.mxu0 0.0
        %2917 = vmatprep.subr.mxu0 0.0
        %2918 = vmatpush1.msra.mxu0 0.0
        %2919 = vmatprep.subr.mxu0 0.0
        %2920 = vmatpush1.msra.mxu0 0.0
        %2921 = vmatprep.subr.mxu0 0.0
        %2922 = vmatpush1.msra.mxu0 0.0
        %2923 = vmatprep.subr.mxu0 0.0
        %2924 = vmatpush1.msra.mxu0 0.0
        %2925 = vmatprep.subr.mxu0 0.0
        %2926 = vmatpush1.msra.mxu0 0.0
        %2927 = vmatprep.subr.mxu0 0.0
        %2928 = vmatpush1.msra.mxu0 0.0
        %2929 = vmatprep.subr.mxu0 0.0
        %2930 = vmatpush1.msra.mxu0 0.0
        %2931 = vmatprep.subr.mxu0 0.0
        %2932 = vmatpush1.msra.mxu0 0.0
        %2933 = vmatprep.subr.mxu0 0.0
        %2934 = vmatpush1.msra.mxu0 %v2901
        %2935 = vmatprep.subr.mxu0 0.0
        %2936 = vmatpush2.msra.mxu0 0.0
        %2937 = vmatprep.subr.mxu0 0.0
        %2938 = vmatpush2.msra.mxu0 0.0
        %2939 = vmatprep.subr.mxu0 0.0
        %2940 = vmatpush2.msra.mxu0 0.0
        %2941 = vmatprep.subr.mxu0 0.0
        %2942 = vmatpush2.msra.mxu0 0.0
        %2943 = vmatprep.subr.mxu0 0.0
        %2944 = vmatpush2.msra.mxu0 0.0
        %2945 = vmatprep.subr.mxu0 0.0
        %2946 = vmatpush2.msra.mxu0 0.0
        %2947 = vmatprep.subr.mxu0 0.0
        %2948 = vmatpush2.msra.mxu0 0.0
        %2949 = vmatprep.subr.mxu0 0.0
        %2950 = vmatpush2.msra.mxu0 0.0
        %2951 = vmatprep.subr.mxu0 0.0
        %2952 = vmatpush2.msra.mxu0 0.0
        %2953 = vmatprep.subr.mxu0 0.0
        %2954 = vmatpush2.msra.mxu0 0.0
        %2955 = vmatprep.subr.mxu0 0.0
        %2956 = vmatpush2.msra.mxu0 0.0
        %2957 = vmatprep.subr.mxu0 0.0
        %2958 = vmatpush2.msra.mxu0 0.0
        %2959 = vmatprep.subr.mxu0 0.0
        %2960 = vmatpush2.msra.mxu0 0.0
        %2961 = vmatprep.subr.mxu0 0.0
        %2962 = vmatpush2.msra.mxu0 0.0
        %2963 = vmatprep.subr.mxu0 0.0
        %2964 = vmatpush2.msra.mxu0 0.0
        %2965 = vmatprep.subr.mxu0 0.0
        %2966 = vmatpush2.msra.mxu0 0.0
        %2967 = vmatprep.mubr.f32.mxu0 0.0
        %2968 = vmatmul.mubr.f32.gmra.mxu0 %v2793
        %v2969 = vpop.f32.mrf.mxu0
        %v2970 = vadd.f32 0.0, %v2969
        %v2971 = vpop.f32.mrf.mxu0
        %2972 = vmatprep.mubr.f32.mxu0 0.0
        %2973 = vmatmul.mubr.f32.gmra.mxu0 %v2796
        %v2974 = vpop.f32.mrf.mxu0
        %v2975 = vadd.f32 0.0, %v2974
        %v2976 = vpop.f32.mrf.mxu0
        %2977 = vmatprep.mubr.f32.mxu0 0.0
        %2978 = vmatmul.mubr.f32.gmra.mxu0 %v2799
        %v2979 = vpop.f32.mrf.mxu0
        %v2980 = vadd.f32 0.0, %v2979
        %v2981 = vpop.f32.mrf.mxu0
        %2982 = vmatprep.mubr.f32.mxu0 0.0
        %2983 = vmatmul.mubr.f32.gmra.mxu0 %v2802
        %v2984 = vpop.f32.mrf.mxu0
        %v2985 = vadd.f32 0.0, %v2984
        %v2986 = vpop.f32.mrf.mxu0
        %2987 = vmatprep.mubr.f32.mxu0 0.0
        %2988 = vmatmul.mubr.f32.gmra.mxu0 %v2805
        %v2989 = vpop.f32.mrf.mxu0
        %v2990 = vadd.f32 0.0, %v2989
        %v2991 = vpop.f32.mrf.mxu0
        %2992 = vmatprep.mubr.f32.mxu0 0.0
        %2993 = vmatmul.mubr.f32.gmra.mxu0 %v2808
        %v2994 = vpop.f32.mrf.mxu0
        %v2995 = vadd.f32 0.0, %v2994
        %v2996 = vpop.f32.mrf.mxu0
        %2997 = vmatprep.mubr.f32.mxu0 0.0
        %2998 = vmatmul.mubr.f32.gmra.mxu0 %v2811
        %v2999 = vpop.f32.mrf.mxu0
        %v3000 = vadd.f32 0.0, %v2999
        %v3001 = vpop.f32.mrf.mxu0
        %3002 = vmatprep.mubr.f32.mxu0 0.0
        %3003 = vmatmul.mubr.f32.gmra.mxu0 %v2814
        %v3004 = vpop.f32.mrf.mxu0
        %v3005 = vadd.f32 0.0, %v3004
        %v3006 = vpop.f32.mrf.mxu0
        %3007 = vmatprep.mubr.f32.mxu0 0.0
        %3008 = vmatmul.mubr.f32.gmra.mxu0 %v2817
        %v3009 = vpop.f32.mrf.mxu0
        %v3010 = vadd.f32 0.0, %v3009
        %v3011 = vpop.f32.mrf.mxu0
        %3012 = vmatprep.mubr.f32.mxu0 0.0
        %3013 = vmatmul.mubr.f32.gmra.mxu0 %v2820
        %v3014 = vpop.f32.mrf.mxu0
        %v3015 = vadd.f32 0.0, %v3014
        %v3016 = vpop.f32.mrf.mxu0
        %3017 = vmatprep.mubr.f32.mxu0 0.0
        %3018 = vmatmul.mubr.f32.gmra.mxu0 %v2823
        %v3019 = vpop.f32.mrf.mxu0
        %v3020 = vadd.f32 0.0, %v3019
        %v3021 = vpop.f32.mrf.mxu0
        %3022 = vmatprep.mubr.f32.mxu0 0.0
        %3023 = vmatmul.mubr.f32.gmra.mxu0 %v2826
        %v3024 = vpop.f32.mrf.mxu0
        %v3025 = vadd.f32 0.0, %v3024
        %v3026 = vpop.f32.mrf.mxu0
        %3027 = vmatprep.mubr.f32.mxu0 0.0
        %3028 = vmatmul.mubr.f32.gmra.mxu0 %v2829
        %v3029 = vpop.f32.mrf.mxu0
        %v3030 = vadd.f32 0.0, %v3029
        %v3031 = vpop.f32.mrf.mxu0
        %3032 = vmatprep.mubr.f32.mxu0 0.0
        %3033 = vmatmul.mubr.f32.gmra.mxu0 %v2832
        %v3034 = vpop.f32.mrf.mxu0
        %v3035 = vadd.f32 0.0, %v3034
        %v3036 = vpop.f32.mrf.mxu0
        %3037 = vmatprep.mubr.f32.mxu0 0.0
        %3038 = vmatmul.mubr.f32.gmra.mxu0 %v2835
        %v3039 = vpop.f32.mrf.mxu0
        %v3040 = vadd.f32 0.0, %v3039
        %v3041 = vpop.f32.mrf.mxu0
        %3042 = vmatprep.mubr.f32.mxu0 0.0
        %3043 = vmatmul.mubr.f32.gmra.mxu0 %v2838
        %v3044 = vpop.f32.mrf.mxu0
        %v3045 = vadd.f32 0.0, %v3044
        %v3046 = vpop.f32.mrf.mxu0
        %3047 = vmatprep.mubr.f32.mxu0 0.0
        %3048 = vmatmul.mubr.f32.gmra.mxu0 %v2841
        %v3049 = vpop.f32.mrf.mxu0
        %v3050 = vadd.f32 0.0, %v3049
        %v3051 = vpop.f32.mrf.mxu0
        %3052 = vmatprep.mubr.f32.mxu0 0.0
        %3053 = vmatmul.mubr.f32.gmra.mxu0 %v2844
        %v3054 = vpop.f32.mrf.mxu0
        %v3055 = vadd.f32 0.0, %v3054
        %v3056 = vpop.f32.mrf.mxu0
        %3057 = vmatprep.mubr.f32.mxu0 0.0
        %3058 = vmatmul.mubr.f32.gmra.mxu0 %v2847
        %v3059 = vpop.f32.mrf.mxu0
        %v3060 = vadd.f32 0.0, %v3059
        %v3061 = vpop.f32.mrf.mxu0
        %3062 = vmatprep.mubr.f32.mxu0 0.0
        %3063 = vmatmul.mubr.f32.gmra.mxu0 %v2850
        %v3064 = vpop.f32.mrf.mxu0
        %v3065 = vadd.f32 0.0, %v3064
        %v3066 = vpop.f32.mrf.mxu0
        %3067 = vmatprep.mubr.f32.mxu0 0.0
        %3068 = vmatmul.mubr.f32.gmra.mxu0 %v2853
        %v3069 = vpop.f32.mrf.mxu0
        %v3070 = vadd.f32 0.0, %v3069
        %v3071 = vpop.f32.mrf.mxu0
        %3072 = vmatprep.mubr.f32.mxu0 0.0
        %3073 = vmatmul.mubr.f32.gmra.mxu0 %v2856
        %v3074 = vpop.f32.mrf.mxu0
        %v3075 = vadd.f32 0.0, %v3074
        %v3076 = vpop.f32.mrf.mxu0
        %3077 = vmatprep.mubr.f32.mxu0 0.0
        %3078 = vmatmul.mubr.f32.gmra.mxu0 %v2859
        %v3079 = vpop.f32.mrf.mxu0
        %v3080 = vadd.f32 0.0, %v3079
        %v3081 = vpop.f32.mrf.mxu0
        %3082 = vmatprep.mubr.f32.mxu0 0.0
        %3083 = vmatmul.mubr.f32.gmra.mxu0 %v2862
        %v3084 = vpop.f32.mrf.mxu0
        %v3085 = vadd.f32 0.0, %v3084
        %v3086 = vpop.f32.mrf.mxu0
        %3087 = vmatprep.mubr.f32.mxu0 0.0
        %3088 = vmatmul.mubr.f32.gmra.mxu0 %v2865
        %v3089 = vpop.f32.mrf.mxu0
        %v3090 = vadd.f32 0.0, %v3089
        %v3091 = vpop.f32.mrf.mxu0
        %3092 = vmatprep.mubr.f32.mxu0 0.0
        %3093 = vmatmul.mubr.f32.gmra.mxu0 %v2868
        %v3094 = vpop.f32.mrf.mxu0
        %v3095 = vadd.f32 0.0, %v3094
        %v3096 = vpop.f32.mrf.mxu0
        %3097 = vmatprep.mubr.f32.mxu0 0.0
        %3098 = vmatmul.mubr.f32.gmra.mxu0 %v2871
        %v3099 = vpop.f32.mrf.mxu0
        %v3100 = vadd.f32 0.0, %v3099
        %v3101 = vpop.f32.mrf.mxu0
        %3102 = vmatprep.mubr.f32.mxu0 0.0
        %3103 = vmatmul.mubr.f32.gmra.mxu0 %v2874
        %v3104 = vpop.f32.mrf.mxu0
        %v3105 = vadd.f32 0.0, %v3104
        %v3106 = vpop.f32.mrf.mxu0
        %3107 = vmatprep.mubr.f32.mxu0 0.0
        %3108 = vmatmul.mubr.f32.gmra.mxu0 %v2877
        %v3109 = vpop.f32.mrf.mxu0
        %v3110 = vadd.f32 0.0, %v3109
        %v3111 = vpop.f32.mrf.mxu0
        %3112 = vmatprep.mubr.f32.mxu0 0.0
        %3113 = vmatmul.mubr.f32.gmra.mxu0 %v2880
        %v3114 = vpop.f32.mrf.mxu0
        %v3115 = vadd.f32 0.0, %v3114
        %v3116 = vpop.f32.mrf.mxu0
        %3117 = vmatprep.mubr.f32.mxu0 0.0
        %3118 = vmatmul.mubr.f32.gmra.mxu0 %v2883
        %v3119 = vpop.f32.mrf.mxu0
        %v3120 = vadd.f32 0.0, %v3119
        %v3121 = vpop.f32.mrf.mxu0
        %3122 = vmatprep.mubr.f32.mxu0 0.0
        %3123 = vmatmul.mubr.f32.gmra.mxu0 %v2886
        %v3124 = vpop.f32.mrf.mxu0
        %v3125 = vadd.f32 0.0, %v3124
        %v3126 = vpop.f32.mrf.mxu0
        %3127 = vmatprep.mubr.f32.mxu0 0.0
        %3128 = vmatmul.mubr.f32.gmra.mxu0 %v2889
        %v3129 = vpop.f32.mrf.mxu0
        %v3130 = vadd.f32 0.0, %v3129
        %v3131 = vpop.f32.mrf.mxu0
        %3132 = vmatprep.mubr.f32.mxu0 0.0
        %3133 = vmatmul.mubr.f32.gmra.mxu0 %v2892
        %v3134 = vpop.f32.mrf.mxu0
        %v3135 = vadd.f32 0.0, %v3134
        %v3136 = vpop.f32.mrf.mxu0
        %3137 = vmatprep.mubr.f32.mxu0 0.0
        %3138 = vmatmul.mubr.f32.gmra.mxu0 %v2895
        %v3139 = vpop.f32.mrf.mxu0
        %v3140 = vadd.f32 0.0, %v3139
        %v3141 = vpop.f32.mrf.mxu0
        %3142 = vmatprep.mubr.f32.mxu0 0.0
        %3143 = vmatmul.mubr.f32.gmra.mxu0 %v2898
        %v3144 = vpop.f32.mrf.mxu0
        %v3145 = vadd.f32 0.0, %v3144
        %v3146 = vpop.f32.mrf.mxu0
        %3147 = vdwg.mxu0
        %v3148 = vadd.f32 %v2719, %v2970
        %v3149 = vadd.f32 %v2720, %v2975
        %v3150 = vadd.f32 %v2721, %v2980
        %v3151 = vadd.f32 %v2722, %v2985
        %v3152 = vadd.f32 %v2723, %v2990
        %v3153 = vadd.f32 %v2724, %v2995
        %v3154 = vadd.f32 %v2725, %v3000
        %v3155 = vadd.f32 %v2726, %v3005
        %v3156 = vadd.f32 %v2727, %v3010
        %v3157 = vadd.f32 %v2728, %v3015
        %v3158 = vadd.f32 %v2729, %v3020
        %v3159 = vadd.f32 %v2730, %v3025
        %v3160 = vadd.f32 %v2731, %v3030
        %v3161 = vadd.f32 %v2732, %v3035
        %v3162 = vadd.f32 %v2733, %v3040
        %v3163 = vadd.f32 %v2734, %v3045
        %v3164 = vadd.f32 %v2735, %v3050
        %v3165 = vadd.f32 %v2736, %v3055
        %v3166 = vadd.f32 %v2737, %v3060
        %v3167 = vadd.f32 %v2738, %v3065
        %v3168 = vadd.f32 %v2739, %v3070
        %v3169 = vadd.f32 %v2740, %v3075
        %v3170 = vadd.f32 %v2741, %v3080
        %v3171 = vadd.f32 %v2742, %v3085
        %v3172 = vadd.f32 %v2743, %v3090
        %v3173 = vadd.f32 %v2744, %v3095
        %v3174 = vadd.f32 %v2745, %v3100
        %v3175 = vadd.f32 %v2746, %v3105
        %v3176 = vadd.f32 %v2747, %v3110
        %v3177 = vadd.f32 %v2748, %v3115
        %v3178 = vadd.f32 %v2749, %v3120
        %v3179 = vadd.f32 %v2750, %v3125
        %v3180 = vadd.f32 %v2751, %v3130
        %v3181 = vadd.f32 %v2752, %v3135
        %v3182 = vadd.f32 %v2753, %v3140
        %v3183 = vadd.f32 %v2754, %v3145
        %v3184 = vld [vmem:[%s250 + $0x25] sm:$0xff]
        %v3185 = vld [vmem:[%s250 + $0x2d] sm:$0xff]
        %v3186 = vld [vmem:[%s250 + $0x35] sm:$0xff]
        %v3187 = vld [vmem:[%s250 + $0x3d] sm:$0xff]
        %v3188 = vld [vmem:[%s250 + $0x45] sm:$0xff]
        %v3189 = vld [vmem:[%s250 + $0x4d] sm:$0xff]
        %v3190 = vld [vmem:[%s250 + $0x55] sm:$0xff]
        %v3191 = vld [vmem:[%s250 + $0x5d] sm:$0xff]
        %v3192 = vld [vmem:[%s250 + $0x65] sm:$0xff]
        %v3193 = vld [vmem:[%s250 + $0x6d] sm:$0xff]
        %v3194 = vld [vmem:[%s250 + $0x75] sm:$0xff]
        %v3195 = vld [vmem:[%s250 + $0x7d] sm:$0xff]
        %v3196 = vld [vmem:[%s250 + $0x85] sm:$0xff]
        %v3197 = vld [vmem:[%s250 + $0x8d] sm:$0xff]
        %v3198 = vld [vmem:[%s250 + $0x95] sm:$0xff]
        %v3199 = vld [vmem:[%s250 + $0x9d] sm:$0xff]
        %v3200 = vld [vmem:[%s250 + $0xa5] sm:$0xff]
        %v3201 = vld [vmem:[%s250 + $0xad] sm:$0xff]
        %v3202 = vld [vmem:[%s250 + $0xb5] sm:$0xff]
        %v3203 = vld [vmem:[%s250 + $0xbd] sm:$0xff]
        %v3204 = vld [vmem:[%s250 + $0xc5] sm:$0xff]
        %v3205 = vld [vmem:[%s250 + $0xcd] sm:$0xff]
        %v3206 = vld [vmem:[%s250 + $0xd5] sm:$0xff]
        %v3207 = vld [vmem:[%s250 + $0xdd] sm:$0xff]
        %v3208 = vld [vmem:[%s250 + $0xe5] sm:$0xff]
        %v3209 = vld [vmem:[%s250 + $0xed] sm:$0xff]
        %v3210 = vld [vmem:[%s250 + $0xf5] sm:$0xff]
        %v3211 = vld [vmem:[%s250 + $0xfd] sm:$0xff]
        %v3212 = vld [vmem:[%s250 + $0x105] sm:$0xff]
        %v3213 = vld [vmem:[%s250 + $0x10d] sm:$0xff]
        %v3214 = vld [vmem:[%s250 + $0x115] sm:$0xff]
        %v3215 = vld [vmem:[%s250 + $0x11d] sm:$0xff]
        %v3216 = vld [vmem:[%s250 + $0x125] sm:$0xff]
        %v3217 = vld [vmem:[%s250 + $0x12d] sm:$0xff]
        %v3218 = vld [vmem:[%s250 + $0x135] sm:$0xff]
        %v3219 = vld [vmem:[%s250 + $0x13d] sm:$0xff]
        %v3220 = vld [vmem:[%s1 + $0x1c] sm:$0xf]
        %v3222 = vsel %vm325, %v3184, 0
        %v3225 = vsel %vm325, %v3185, 0
        %v3228 = vsel %vm325, %v3186, 0
        %v3231 = vsel %vm325, %v3187, 0
        %v3234 = vsel %vm325, %v3188, 0
        %v3237 = vsel %vm325, %v3189, 0
        %v3240 = vsel %vm325, %v3190, 0
        %v3243 = vsel %vm325, %v3191, 0
        %v3246 = vsel %vm325, %v3192, 0
        %v3249 = vsel %vm325, %v3193, 0
        %v3252 = vsel %vm325, %v3194, 0
        %v3255 = vsel %vm325, %v3195, 0
        %v3258 = vsel %vm325, %v3196, 0
        %v3261 = vsel %vm325, %v3197, 0
        %v3264 = vsel %vm325, %v3198, 0
        %v3267 = vsel %vm325, %v3199, 0
        %v3270 = vsel %vm325, %v3200, 0
        %v3273 = vsel %vm325, %v3201, 0
        %v3276 = vsel %vm325, %v3202, 0
        %v3279 = vsel %vm325, %v3203, 0
        %v3282 = vsel %vm325, %v3204, 0
        %v3285 = vsel %vm325, %v3205, 0
        %v3288 = vsel %vm325, %v3206, 0
        %v3291 = vsel %vm325, %v3207, 0
        %v3294 = vsel %vm325, %v3208, 0
        %v3297 = vsel %vm325, %v3209, 0
        %v3300 = vsel %vm325, %v3210, 0
        %v3303 = vsel %vm325, %v3211, 0
        %v3306 = vsel %vm325, %v3212, 0
        %v3309 = vsel %vm325, %v3213, 0
        %v3312 = vsel %vm325, %v3214, 0
        %v3315 = vsel %vm325, %v3215, 0
        %v3318 = vsel %vm325, %v3216, 0
        %v3321 = vsel %vm325, %v3217, 0
        %v3324 = vsel %vm325, %v3218, 0
        %v3327 = vsel %vm325, %v3219, 0
        %v3330 = vsel %vm434, %v3220, 0
        %3332 = vmatprep.subr.mxu0 0.0
        %3333 = vmatpush1.msra.mxu0 0.0
        %3334 = vmatprep.subr.mxu0 0.0
        %3335 = vmatpush1.msra.mxu0 0.0
        %3336 = vmatprep.subr.mxu0 0.0
        %3337 = vmatpush1.msra.mxu0 0.0
        %3338 = vmatprep.subr.mxu0 0.0
        %3339 = vmatpush1.msra.mxu0 0.0
        %3340 = vmatprep.subr.mxu0 0.0
        %3341 = vmatpush1.msra.mxu0 0.0
        %3342 = vmatprep.subr.mxu0 0.0
        %3343 = vmatpush1.msra.mxu0 0.0
        %3344 = vmatprep.subr.mxu0 0.0
        %3345 = vmatpush1.msra.mxu0 0.0
        %3346 = vmatprep.subr.mxu0 0.0
        %3347 = vmatpush1.msra.mxu0 0.0
        %3348 = vmatprep.subr.mxu0 0.0
        %3349 = vmatpush1.msra.mxu0 0.0
        %3350 = vmatprep.subr.mxu0 0.0
        %3351 = vmatpush1.msra.mxu0 0.0
        %3352 = vmatprep.subr.mxu0 0.0
        %3353 = vmatpush1.msra.mxu0 0.0
        %3354 = vmatprep.subr.mxu0 0.0
        %3355 = vmatpush1.msra.mxu0 0.0
        %3356 = vmatprep.subr.mxu0 0.0
        %3357 = vmatpush1.msra.mxu0 0.0
        %3358 = vmatprep.subr.mxu0 0.0
        %3359 = vmatpush1.msra.mxu0 0.0
        %3360 = vmatprep.subr.mxu0 0.0
        %3361 = vmatpush1.msra.mxu0 0.0
        %3362 = vmatprep.subr.mxu0 0.0
        %3363 = vmatpush1.msra.mxu0 %v3330
        %3364 = vmatprep.subr.mxu0 0.0
        %3365 = vmatpush2.msra.mxu0 0.0
        %3366 = vmatprep.subr.mxu0 0.0
        %3367 = vmatpush2.msra.mxu0 0.0
        %3368 = vmatprep.subr.mxu0 0.0
        %3369 = vmatpush2.msra.mxu0 0.0
        %3370 = vmatprep.subr.mxu0 0.0
        %3371 = vmatpush2.msra.mxu0 0.0
        %3372 = vmatprep.subr.mxu0 0.0
        %3373 = vmatpush2.msra.mxu0 0.0
        %3374 = vmatprep.subr.mxu0 0.0
        %3375 = vmatpush2.msra.mxu0 0.0
        %3376 = vmatprep.subr.mxu0 0.0
        %3377 = vmatpush2.msra.mxu0 0.0
        %3378 = vmatprep.subr.mxu0 0.0
        %3379 = vmatpush2.msra.mxu0 0.0
        %3380 = vmatprep.subr.mxu0 0.0
        %3381 = vmatpush2.msra.mxu0 0.0
        %3382 = vmatprep.subr.mxu0 0.0
        %3383 = vmatpush2.msra.mxu0 0.0
        %3384 = vmatprep.subr.mxu0 0.0
        %3385 = vmatpush2.msra.mxu0 0.0
        %3386 = vmatprep.subr.mxu0 0.0
        %3387 = vmatpush2.msra.mxu0 0.0
        %3388 = vmatprep.subr.mxu0 0.0
        %3389 = vmatpush2.msra.mxu0 0.0
        %3390 = vmatprep.subr.mxu0 0.0
        %3391 = vmatpush2.msra.mxu0 0.0
        %3392 = vmatprep.subr.mxu0 0.0
        %3393 = vmatpush2.msra.mxu0 0.0
        %3394 = vmatprep.subr.mxu0 0.0
        %3395 = vmatpush2.msra.mxu0 0.0
        %3396 = vmatprep.mubr.f32.mxu0 0.0
        %3397 = vmatmul.mubr.f32.gmra.mxu0 %v3222
        %v3398 = vpop.f32.mrf.mxu0
        %v3399 = vadd.f32 0.0, %v3398
        %v3400 = vpop.f32.mrf.mxu0
        %3401 = vmatprep.mubr.f32.mxu0 0.0
        %3402 = vmatmul.mubr.f32.gmra.mxu0 %v3225
        %v3403 = vpop.f32.mrf.mxu0
        %v3404 = vadd.f32 0.0, %v3403
        %v3405 = vpop.f32.mrf.mxu0
        %3406 = vmatprep.mubr.f32.mxu0 0.0
        %3407 = vmatmul.mubr.f32.gmra.mxu0 %v3228
        %v3408 = vpop.f32.mrf.mxu0
        %v3409 = vadd.f32 0.0, %v3408
        %v3410 = vpop.f32.mrf.mxu0
        %3411 = vmatprep.mubr.f32.mxu0 0.0
        %3412 = vmatmul.mubr.f32.gmra.mxu0 %v3231
        %v3413 = vpop.f32.mrf.mxu0
        %v3414 = vadd.f32 0.0, %v3413
        %v3415 = vpop.f32.mrf.mxu0
        %3416 = vmatprep.mubr.f32.mxu0 0.0
        %3417 = vmatmul.mubr.f32.gmra.mxu0 %v3234
        %v3418 = vpop.f32.mrf.mxu0
        %v3419 = vadd.f32 0.0, %v3418
        %v3420 = vpop.f32.mrf.mxu0
        %3421 = vmatprep.mubr.f32.mxu0 0.0
        %3422 = vmatmul.mubr.f32.gmra.mxu0 %v3237
        %v3423 = vpop.f32.mrf.mxu0
        %v3424 = vadd.f32 0.0, %v3423
        %v3425 = vpop.f32.mrf.mxu0
        %3426 = vmatprep.mubr.f32.mxu0 0.0
        %3427 = vmatmul.mubr.f32.gmra.mxu0 %v3240
        %v3428 = vpop.f32.mrf.mxu0
        %v3429 = vadd.f32 0.0, %v3428
        %v3430 = vpop.f32.mrf.mxu0
        %3431 = vmatprep.mubr.f32.mxu0 0.0
        %3432 = vmatmul.mubr.f32.gmra.mxu0 %v3243
        %v3433 = vpop.f32.mrf.mxu0
        %v3434 = vadd.f32 0.0, %v3433
        %v3435 = vpop.f32.mrf.mxu0
        %3436 = vmatprep.mubr.f32.mxu0 0.0
        %3437 = vmatmul.mubr.f32.gmra.mxu0 %v3246
        %v3438 = vpop.f32.mrf.mxu0
        %v3439 = vadd.f32 0.0, %v3438
        %v3440 = vpop.f32.mrf.mxu0
        %3441 = vmatprep.mubr.f32.mxu0 0.0
        %3442 = vmatmul.mubr.f32.gmra.mxu0 %v3249
        %v3443 = vpop.f32.mrf.mxu0
        %v3444 = vadd.f32 0.0, %v3443
        %v3445 = vpop.f32.mrf.mxu0
        %3446 = vmatprep.mubr.f32.mxu0 0.0
        %3447 = vmatmul.mubr.f32.gmra.mxu0 %v3252
        %v3448 = vpop.f32.mrf.mxu0
        %v3449 = vadd.f32 0.0, %v3448
        %v3450 = vpop.f32.mrf.mxu0
        %3451 = vmatprep.mubr.f32.mxu0 0.0
        %3452 = vmatmul.mubr.f32.gmra.mxu0 %v3255
        %v3453 = vpop.f32.mrf.mxu0
        %v3454 = vadd.f32 0.0, %v3453
        %v3455 = vpop.f32.mrf.mxu0
        %3456 = vmatprep.mubr.f32.mxu0 0.0
        %3457 = vmatmul.mubr.f32.gmra.mxu0 %v3258
        %v3458 = vpop.f32.mrf.mxu0
        %v3459 = vadd.f32 0.0, %v3458
        %v3460 = vpop.f32.mrf.mxu0
        %3461 = vmatprep.mubr.f32.mxu0 0.0
        %3462 = vmatmul.mubr.f32.gmra.mxu0 %v3261
        %v3463 = vpop.f32.mrf.mxu0
        %v3464 = vadd.f32 0.0, %v3463
        %v3465 = vpop.f32.mrf.mxu0
        %3466 = vmatprep.mubr.f32.mxu0 0.0
        %3467 = vmatmul.mubr.f32.gmra.mxu0 %v3264
        %v3468 = vpop.f32.mrf.mxu0
        %v3469 = vadd.f32 0.0, %v3468
        %v3470 = vpop.f32.mrf.mxu0
        %3471 = vmatprep.mubr.f32.mxu0 0.0
        %3472 = vmatmul.mubr.f32.gmra.mxu0 %v3267
        %v3473 = vpop.f32.mrf.mxu0
        %v3474 = vadd.f32 0.0, %v3473
        %v3475 = vpop.f32.mrf.mxu0
        %3476 = vmatprep.mubr.f32.mxu0 0.0
        %3477 = vmatmul.mubr.f32.gmra.mxu0 %v3270
        %v3478 = vpop.f32.mrf.mxu0
        %v3479 = vadd.f32 0.0, %v3478
        %v3480 = vpop.f32.mrf.mxu0
        %3481 = vmatprep.mubr.f32.mxu0 0.0
        %3482 = vmatmul.mubr.f32.gmra.mxu0 %v3273
        %v3483 = vpop.f32.mrf.mxu0
        %v3484 = vadd.f32 0.0, %v3483
        %v3485 = vpop.f32.mrf.mxu0
        %3486 = vmatprep.mubr.f32.mxu0 0.0
        %3487 = vmatmul.mubr.f32.gmra.mxu0 %v3276
        %v3488 = vpop.f32.mrf.mxu0
        %v3489 = vadd.f32 0.0, %v3488
        %v3490 = vpop.f32.mrf.mxu0
        %3491 = vmatprep.mubr.f32.mxu0 0.0
        %3492 = vmatmul.mubr.f32.gmra.mxu0 %v3279
        %v3493 = vpop.f32.mrf.mxu0
        %v3494 = vadd.f32 0.0, %v3493
        %v3495 = vpop.f32.mrf.mxu0
        %3496 = vmatprep.mubr.f32.mxu0 0.0
        %3497 = vmatmul.mubr.f32.gmra.mxu0 %v3282
        %v3498 = vpop.f32.mrf.mxu0
        %v3499 = vadd.f32 0.0, %v3498
        %v3500 = vpop.f32.mrf.mxu0
        %3501 = vmatprep.mubr.f32.mxu0 0.0
        %3502 = vmatmul.mubr.f32.gmra.mxu0 %v3285
        %v3503 = vpop.f32.mrf.mxu0
        %v3504 = vadd.f32 0.0, %v3503
        %v3505 = vpop.f32.mrf.mxu0
        %3506 = vmatprep.mubr.f32.mxu0 0.0
        %3507 = vmatmul.mubr.f32.gmra.mxu0 %v3288
        %v3508 = vpop.f32.mrf.mxu0
        %v3509 = vadd.f32 0.0, %v3508
        %v3510 = vpop.f32.mrf.mxu0
        %3511 = vmatprep.mubr.f32.mxu0 0.0
        %3512 = vmatmul.mubr.f32.gmra.mxu0 %v3291
        %v3513 = vpop.f32.mrf.mxu0
        %v3514 = vadd.f32 0.0, %v3513
        %v3515 = vpop.f32.mrf.mxu0
        %3516 = vmatprep.mubr.f32.mxu0 0.0
        %3517 = vmatmul.mubr.f32.gmra.mxu0 %v3294
        %v3518 = vpop.f32.mrf.mxu0
        %v3519 = vadd.f32 0.0, %v3518
        %v3520 = vpop.f32.mrf.mxu0
        %3521 = vmatprep.mubr.f32.mxu0 0.0
        %3522 = vmatmul.mubr.f32.gmra.mxu0 %v3297
        %v3523 = vpop.f32.mrf.mxu0
        %v3524 = vadd.f32 0.0, %v3523
        %v3525 = vpop.f32.mrf.mxu0
        %3526 = vmatprep.mubr.f32.mxu0 0.0
        %3527 = vmatmul.mubr.f32.gmra.mxu0 %v3300
        %v3528 = vpop.f32.mrf.mxu0
        %v3529 = vadd.f32 0.0, %v3528
        %v3530 = vpop.f32.mrf.mxu0
        %3531 = vmatprep.mubr.f32.mxu0 0.0
        %3532 = vmatmul.mubr.f32.gmra.mxu0 %v3303
        %v3533 = vpop.f32.mrf.mxu0
        %v3534 = vadd.f32 0.0, %v3533
        %v3535 = vpop.f32.mrf.mxu0
        %3536 = vmatprep.mubr.f32.mxu0 0.0
        %3537 = vmatmul.mubr.f32.gmra.mxu0 %v3306
        %v3538 = vpop.f32.mrf.mxu0
        %v3539 = vadd.f32 0.0, %v3538
        %v3540 = vpop.f32.mrf.mxu0
        %3541 = vmatprep.mubr.f32.mxu0 0.0
        %3542 = vmatmul.mubr.f32.gmra.mxu0 %v3309
        %v3543 = vpop.f32.mrf.mxu0
        %v3544 = vadd.f32 0.0, %v3543
        %v3545 = vpop.f32.mrf.mxu0
        %3546 = vmatprep.mubr.f32.mxu0 0.0
        %3547 = vmatmul.mubr.f32.gmra.mxu0 %v3312
        %v3548 = vpop.f32.mrf.mxu0
        %v3549 = vadd.f32 0.0, %v3548
        %v3550 = vpop.f32.mrf.mxu0
        %3551 = vmatprep.mubr.f32.mxu0 0.0
        %3552 = vmatmul.mubr.f32.gmra.mxu0 %v3315
        %v3553 = vpop.f32.mrf.mxu0
        %v3554 = vadd.f32 0.0, %v3553
        %v3555 = vpop.f32.mrf.mxu0
        %3556 = vmatprep.mubr.f32.mxu0 0.0
        %3557 = vmatmul.mubr.f32.gmra.mxu0 %v3318
        %v3558 = vpop.f32.mrf.mxu0
        %v3559 = vadd.f32 0.0, %v3558
        %v3560 = vpop.f32.mrf.mxu0
        %3561 = vmatprep.mubr.f32.mxu0 0.0
        %3562 = vmatmul.mubr.f32.gmra.mxu0 %v3321
        %v3563 = vpop.f32.mrf.mxu0
        %v3564 = vadd.f32 0.0, %v3563
        %v3565 = vpop.f32.mrf.mxu0
        %3566 = vmatprep.mubr.f32.mxu0 0.0
        %3567 = vmatmul.mubr.f32.gmra.mxu0 %v3324
        %v3568 = vpop.f32.mrf.mxu0
        %v3569 = vadd.f32 0.0, %v3568
        %v3570 = vpop.f32.mrf.mxu0
        %3571 = vmatprep.mubr.f32.mxu0 0.0
        %3572 = vmatmul.mubr.f32.gmra.mxu0 %v3327
        %v3573 = vpop.f32.mrf.mxu0
        %v3574 = vadd.f32 0.0, %v3573
        %v3575 = vpop.f32.mrf.mxu0
        %3576 = vdwg.mxu0
        %v3577 = vadd.f32 %v3148, %v3399
        %v3578 = vadd.f32 %v3149, %v3404
        %v3579 = vadd.f32 %v3150, %v3409
        %v3580 = vadd.f32 %v3151, %v3414
        %v3581 = vadd.f32 %v3152, %v3419
        %v3582 = vadd.f32 %v3153, %v3424
        %v3583 = vadd.f32 %v3154, %v3429
        %v3584 = vadd.f32 %v3155, %v3434
        %v3585 = vadd.f32 %v3156, %v3439
        %v3586 = vadd.f32 %v3157, %v3444
        %v3587 = vadd.f32 %v3158, %v3449
        %v3588 = vadd.f32 %v3159, %v3454
        %v3589 = vadd.f32 %v3160, %v3459
        %v3590 = vadd.f32 %v3161, %v3464
        %v3591 = vadd.f32 %v3162, %v3469
        %v3592 = vadd.f32 %v3163, %v3474
        %v3593 = vadd.f32 %v3164, %v3479
        %v3594 = vadd.f32 %v3165, %v3484
        %v3595 = vadd.f32 %v3166, %v3489
        %v3596 = vadd.f32 %v3167, %v3494
        %v3597 = vadd.f32 %v3168, %v3499
        %v3598 = vadd.f32 %v3169, %v3504
        %v3599 = vadd.f32 %v3170, %v3509
        %v3600 = vadd.f32 %v3171, %v3514
        %v3601 = vadd.f32 %v3172, %v3519
        %v3602 = vadd.f32 %v3173, %v3524
        %v3603 = vadd.f32 %v3174, %v3529
        %v3604 = vadd.f32 %v3175, %v3534
        %v3605 = vadd.f32 %v3176, %v3539
        %v3606 = vadd.f32 %v3177, %v3544
        %v3607 = vadd.f32 %v3178, %v3549
        %v3608 = vadd.f32 %v3179, %v3554
        %v3609 = vadd.f32 %v3180, %v3559
        %v3610 = vadd.f32 %v3181, %v3564
        %v3611 = vadd.f32 %v3182, %v3569
        %v3612 = vadd.f32 %v3183, %v3574
        %v3613 = vld [vmem:[%s250 + $0x26] sm:$0xff]
        %v3614 = vld [vmem:[%s250 + $0x2e] sm:$0xff]
        %v3615 = vld [vmem:[%s250 + $0x36] sm:$0xff]
        %v3616 = vld [vmem:[%s250 + $0x3e] sm:$0xff]
        %v3617 = vld [vmem:[%s250 + $0x46] sm:$0xff]
        %v3618 = vld [vmem:[%s250 + $0x4e] sm:$0xff]
        %v3619 = vld [vmem:[%s250 + $0x56] sm:$0xff]
        %v3620 = vld [vmem:[%s250 + $0x5e] sm:$0xff]
        %v3621 = vld [vmem:[%s250 + $0x66] sm:$0xff]
        %v3622 = vld [vmem:[%s250 + $0x6e] sm:$0xff]
        %v3623 = vld [vmem:[%s250 + $0x76] sm:$0xff]
        %v3624 = vld [vmem:[%s250 + $0x7e] sm:$0xff]
        %v3625 = vld [vmem:[%s250 + $0x86] sm:$0xff]
        %v3626 = vld [vmem:[%s250 + $0x8e] sm:$0xff]
        %v3627 = vld [vmem:[%s250 + $0x96] sm:$0xff]
        %v3628 = vld [vmem:[%s250 + $0x9e] sm:$0xff]
        %v3629 = vld [vmem:[%s250 + $0xa6] sm:$0xff]
        %v3630 = vld [vmem:[%s250 + $0xae] sm:$0xff]
        %v3631 = vld [vmem:[%s250 + $0xb6] sm:$0xff]
        %v3632 = vld [vmem:[%s250 + $0xbe] sm:$0xff]
        %v3633 = vld [vmem:[%s250 + $0xc6] sm:$0xff]
        %v3634 = vld [vmem:[%s250 + $0xce] sm:$0xff]
        %v3635 = vld [vmem:[%s250 + $0xd6] sm:$0xff]
        %v3636 = vld [vmem:[%s250 + $0xde] sm:$0xff]
        %v3637 = vld [vmem:[%s250 + $0xe6] sm:$0xff]
        %v3638 = vld [vmem:[%s250 + $0xee] sm:$0xff]
        %v3639 = vld [vmem:[%s250 + $0xf6] sm:$0xff]
        %v3640 = vld [vmem:[%s250 + $0xfe] sm:$0xff]
        %v3641 = vld [vmem:[%s250 + $0x106] sm:$0xff]
        %v3642 = vld [vmem:[%s250 + $0x10e] sm:$0xff]
        %v3643 = vld [vmem:[%s250 + $0x116] sm:$0xff]
        %v3644 = vld [vmem:[%s250 + $0x11e] sm:$0xff]
        %v3645 = vld [vmem:[%s250 + $0x126] sm:$0xff]
        %v3646 = vld [vmem:[%s250 + $0x12e] sm:$0xff]
        %v3647 = vld [vmem:[%s250 + $0x136] sm:$0xff]
        %v3648 = vld [vmem:[%s250 + $0x13e] sm:$0xff]
        %v3649 = vld [vmem:[%s1 + $0x20] sm:$0xf]
        %v3651 = vsel %vm325, %v3613, 0
        %v3654 = vsel %vm325, %v3614, 0
        %v3657 = vsel %vm325, %v3615, 0
        %v3660 = vsel %vm325, %v3616, 0
        %v3663 = vsel %vm325, %v3617, 0
        %v3666 = vsel %vm325, %v3618, 0
        %v3669 = vsel %vm325, %v3619, 0
        %v3672 = vsel %vm325, %v3620, 0
        %v3675 = vsel %vm325, %v3621, 0
        %v3678 = vsel %vm325, %v3622, 0
        %v3681 = vsel %vm325, %v3623, 0
        %v3684 = vsel %vm325, %v3624, 0
        %v3687 = vsel %vm325, %v3625, 0
        %v3690 = vsel %vm325, %v3626, 0
        %v3693 = vsel %vm325, %v3627, 0
        %v3696 = vsel %vm325, %v3628, 0
        %v3699 = vsel %vm325, %v3629, 0
        %v3702 = vsel %vm325, %v3630, 0
        %v3705 = vsel %vm325, %v3631, 0
        %v3708 = vsel %vm325, %v3632, 0
        %v3711 = vsel %vm325, %v3633, 0
        %v3714 = vsel %vm325, %v3634, 0
        %v3717 = vsel %vm325, %v3635, 0
        %v3720 = vsel %vm325, %v3636, 0
        %v3723 = vsel %vm325, %v3637, 0
        %v3726 = vsel %vm325, %v3638, 0
        %v3729 = vsel %vm325, %v3639, 0
        %v3732 = vsel %vm325, %v3640, 0
        %v3735 = vsel %vm325, %v3641, 0
        %v3738 = vsel %vm325, %v3642, 0
        %v3741 = vsel %vm325, %v3643, 0
        %v3744 = vsel %vm325, %v3644, 0
        %v3747 = vsel %vm325, %v3645, 0
        %v3750 = vsel %vm325, %v3646, 0
        %v3753 = vsel %vm325, %v3647, 0
        %v3756 = vsel %vm325, %v3648, 0
        %v3759 = vsel %vm434, %v3649, 0
        %3761 = vmatprep.subr.mxu0 0.0
        %3762 = vmatpush1.msra.mxu0 0.0
        %3763 = vmatprep.subr.mxu0 0.0
        %3764 = vmatpush1.msra.mxu0 0.0
        %3765 = vmatprep.subr.mxu0 0.0
        %3766 = vmatpush1.msra.mxu0 0.0
        %3767 = vmatprep.subr.mxu0 0.0
        %3768 = vmatpush1.msra.mxu0 0.0
        %3769 = vmatprep.subr.mxu0 0.0
        %3770 = vmatpush1.msra.mxu0 0.0
        %3771 = vmatprep.subr.mxu0 0.0
        %3772 = vmatpush1.msra.mxu0 0.0
        %3773 = vmatprep.subr.mxu0 0.0
        %3774 = vmatpush1.msra.mxu0 0.0
        %3775 = vmatprep.subr.mxu0 0.0
        %3776 = vmatpush1.msra.mxu0 0.0
        %3777 = vmatprep.subr.mxu0 0.0
        %3778 = vmatpush1.msra.mxu0 0.0
        %3779 = vmatprep.subr.mxu0 0.0
        %3780 = vmatpush1.msra.mxu0 0.0
        %3781 = vmatprep.subr.mxu0 0.0
        %3782 = vmatpush1.msra.mxu0 0.0
        %3783 = vmatprep.subr.mxu0 0.0
        %3784 = vmatpush1.msra.mxu0 0.0
        %3785 = vmatprep.subr.mxu0 0.0
        %3786 = vmatpush1.msra.mxu0 0.0
        %3787 = vmatprep.subr.mxu0 0.0
        %3788 = vmatpush1.msra.mxu0 0.0
        %3789 = vmatprep.subr.mxu0 0.0
        %3790 = vmatpush1.msra.mxu0 0.0
        %3791 = vmatprep.subr.mxu0 0.0
        %3792 = vmatpush1.msra.mxu0 %v3759
        %3793 = vmatprep.subr.mxu0 0.0
        %3794 = vmatpush2.msra.mxu0 0.0
        %3795 = vmatprep.subr.mxu0 0.0
        %3796 = vmatpush2.msra.mxu0 0.0
        %3797 = vmatprep.subr.mxu0 0.0
        %3798 = vmatpush2.msra.mxu0 0.0
        %3799 = vmatprep.subr.mxu0 0.0
        %3800 = vmatpush2.msra.mxu0 0.0
        %3801 = vmatprep.subr.mxu0 0.0
        %3802 = vmatpush2.msra.mxu0 0.0
        %3803 = vmatprep.subr.mxu0 0.0
        %3804 = vmatpush2.msra.mxu0 0.0
        %3805 = vmatprep.subr.mxu0 0.0
        %3806 = vmatpush2.msra.mxu0 0.0
        %3807 = vmatprep.subr.mxu0 0.0
        %3808 = vmatpush2.msra.mxu0 0.0
        %3809 = vmatprep.subr.mxu0 0.0
        %3810 = vmatpush2.msra.mxu0 0.0
        %3811 = vmatprep.subr.mxu0 0.0
        %3812 = vmatpush2.msra.mxu0 0.0
        %3813 = vmatprep.subr.mxu0 0.0
        %3814 = vmatpush2.msra.mxu0 0.0
        %3815 = vmatprep.subr.mxu0 0.0
        %3816 = vmatpush2.msra.mxu0 0.0
        %3817 = vmatprep.subr.mxu0 0.0
        %3818 = vmatpush2.msra.mxu0 0.0
        %3819 = vmatprep.subr.mxu0 0.0
        %3820 = vmatpush2.msra.mxu0 0.0
        %3821 = vmatprep.subr.mxu0 0.0
        %3822 = vmatpush2.msra.mxu0 0.0
        %3823 = vmatprep.subr.mxu0 0.0
        %3824 = vmatpush2.msra.mxu0 0.0
        %3825 = vmatprep.mubr.f32.mxu0 0.0
        %3826 = vmatmul.mubr.f32.gmra.mxu0 %v3651
        %v3827 = vpop.f32.mrf.mxu0
        %v3828 = vadd.f32 0.0, %v3827
        %v3829 = vpop.f32.mrf.mxu0
        %3830 = vmatprep.mubr.f32.mxu0 0.0
        %3831 = vmatmul.mubr.f32.gmra.mxu0 %v3654
        %v3832 = vpop.f32.mrf.mxu0
        %v3833 = vadd.f32 0.0, %v3832
        %v3834 = vpop.f32.mrf.mxu0
        %3835 = vmatprep.mubr.f32.mxu0 0.0
        %3836 = vmatmul.mubr.f32.gmra.mxu0 %v3657
        %v3837 = vpop.f32.mrf.mxu0
        %v3838 = vadd.f32 0.0, %v3837
        %v3839 = vpop.f32.mrf.mxu0
        %3840 = vmatprep.mubr.f32.mxu0 0.0
        %3841 = vmatmul.mubr.f32.gmra.mxu0 %v3660
        %v3842 = vpop.f32.mrf.mxu0
        %v3843 = vadd.f32 0.0, %v3842
        %v3844 = vpop.f32.mrf.mxu0
        %3845 = vmatprep.mubr.f32.mxu0 0.0
        %3846 = vmatmul.mubr.f32.gmra.mxu0 %v3663
        %v3847 = vpop.f32.mrf.mxu0
        %v3848 = vadd.f32 0.0, %v3847
        %v3849 = vpop.f32.mrf.mxu0
        %3850 = vmatprep.mubr.f32.mxu0 0.0
        %3851 = vmatmul.mubr.f32.gmra.mxu0 %v3666
        %v3852 = vpop.f32.mrf.mxu0
        %v3853 = vadd.f32 0.0, %v3852
        %v3854 = vpop.f32.mrf.mxu0
        %3855 = vmatprep.mubr.f32.mxu0 0.0
        %3856 = vmatmul.mubr.f32.gmra.mxu0 %v3669
        %v3857 = vpop.f32.mrf.mxu0
        %v3858 = vadd.f32 0.0, %v3857
        %v3859 = vpop.f32.mrf.mxu0
        %3860 = vmatprep.mubr.f32.mxu0 0.0
        %3861 = vmatmul.mubr.f32.gmra.mxu0 %v3672
        %v3862 = vpop.f32.mrf.mxu0
        %v3863 = vadd.f32 0.0, %v3862
        %v3864 = vpop.f32.mrf.mxu0
        %3865 = vmatprep.mubr.f32.mxu0 0.0
        %3866 = vmatmul.mubr.f32.gmra.mxu0 %v3675
        %v3867 = vpop.f32.mrf.mxu0
        %v3868 = vadd.f32 0.0, %v3867
        %v3869 = vpop.f32.mrf.mxu0
        %3870 = vmatprep.mubr.f32.mxu0 0.0
        %3871 = vmatmul.mubr.f32.gmra.mxu0 %v3678
        %v3872 = vpop.f32.mrf.mxu0
        %v3873 = vadd.f32 0.0, %v3872
        %v3874 = vpop.f32.mrf.mxu0
        %3875 = vmatprep.mubr.f32.mxu0 0.0
        %3876 = vmatmul.mubr.f32.gmra.mxu0 %v3681
        %v3877 = vpop.f32.mrf.mxu0
        %v3878 = vadd.f32 0.0, %v3877
        %v3879 = vpop.f32.mrf.mxu0
        %3880 = vmatprep.mubr.f32.mxu0 0.0
        %3881 = vmatmul.mubr.f32.gmra.mxu0 %v3684
        %v3882 = vpop.f32.mrf.mxu0
        %v3883 = vadd.f32 0.0, %v3882
        %v3884 = vpop.f32.mrf.mxu0
        %3885 = vmatprep.mubr.f32.mxu0 0.0
        %3886 = vmatmul.mubr.f32.gmra.mxu0 %v3687
        %v3887 = vpop.f32.mrf.mxu0
        %v3888 = vadd.f32 0.0, %v3887
        %v3889 = vpop.f32.mrf.mxu0
        %3890 = vmatprep.mubr.f32.mxu0 0.0
        %3891 = vmatmul.mubr.f32.gmra.mxu0 %v3690
        %v3892 = vpop.f32.mrf.mxu0
        %v3893 = vadd.f32 0.0, %v3892
        %v3894 = vpop.f32.mrf.mxu0
        %3895 = vmatprep.mubr.f32.mxu0 0.0
        %3896 = vmatmul.mubr.f32.gmra.mxu0 %v3693
        %v3897 = vpop.f32.mrf.mxu0
        %v3898 = vadd.f32 0.0, %v3897
        %v3899 = vpop.f32.mrf.mxu0
        %3900 = vmatprep.mubr.f32.mxu0 0.0
        %3901 = vmatmul.mubr.f32.gmra.mxu0 %v3696
        %v3902 = vpop.f32.mrf.mxu0
        %v3903 = vadd.f32 0.0, %v3902
        %v3904 = vpop.f32.mrf.mxu0
        %3905 = vmatprep.mubr.f32.mxu0 0.0
        %3906 = vmatmul.mubr.f32.gmra.mxu0 %v3699
        %v3907 = vpop.f32.mrf.mxu0
        %v3908 = vadd.f32 0.0, %v3907
        %v3909 = vpop.f32.mrf.mxu0
        %3910 = vmatprep.mubr.f32.mxu0 0.0
        %3911 = vmatmul.mubr.f32.gmra.mxu0 %v3702
        %v3912 = vpop.f32.mrf.mxu0
        %v3913 = vadd.f32 0.0, %v3912
        %v3914 = vpop.f32.mrf.mxu0
        %3915 = vmatprep.mubr.f32.mxu0 0.0
        %3916 = vmatmul.mubr.f32.gmra.mxu0 %v3705
        %v3917 = vpop.f32.mrf.mxu0
        %v3918 = vadd.f32 0.0, %v3917
        %v3919 = vpop.f32.mrf.mxu0
        %3920 = vmatprep.mubr.f32.mxu0 0.0
        %3921 = vmatmul.mubr.f32.gmra.mxu0 %v3708
        %v3922 = vpop.f32.mrf.mxu0
        %v3923 = vadd.f32 0.0, %v3922
        %v3924 = vpop.f32.mrf.mxu0
        %3925 = vmatprep.mubr.f32.mxu0 0.0
        %3926 = vmatmul.mubr.f32.gmra.mxu0 %v3711
        %v3927 = vpop.f32.mrf.mxu0
        %v3928 = vadd.f32 0.0, %v3927
        %v3929 = vpop.f32.mrf.mxu0
        %3930 = vmatprep.mubr.f32.mxu0 0.0
        %3931 = vmatmul.mubr.f32.gmra.mxu0 %v3714
        %v3932 = vpop.f32.mrf.mxu0
        %v3933 = vadd.f32 0.0, %v3932
        %v3934 = vpop.f32.mrf.mxu0
        %3935 = vmatprep.mubr.f32.mxu0 0.0
        %3936 = vmatmul.mubr.f32.gmra.mxu0 %v3717
        %v3937 = vpop.f32.mrf.mxu0
        %v3938 = vadd.f32 0.0, %v3937
        %v3939 = vpop.f32.mrf.mxu0
        %3940 = vmatprep.mubr.f32.mxu0 0.0
        %3941 = vmatmul.mubr.f32.gmra.mxu0 %v3720
        %v3942 = vpop.f32.mrf.mxu0
        %v3943 = vadd.f32 0.0, %v3942
        %v3944 = vpop.f32.mrf.mxu0
        %3945 = vmatprep.mubr.f32.mxu0 0.0
        %3946 = vmatmul.mubr.f32.gmra.mxu0 %v3723
        %v3947 = vpop.f32.mrf.mxu0
        %v3948 = vadd.f32 0.0, %v3947
        %v3949 = vpop.f32.mrf.mxu0
        %3950 = vmatprep.mubr.f32.mxu0 0.0
        %3951 = vmatmul.mubr.f32.gmra.mxu0 %v3726
        %v3952 = vpop.f32.mrf.mxu0
        %v3953 = vadd.f32 0.0, %v3952
        %v3954 = vpop.f32.mrf.mxu0
        %3955 = vmatprep.mubr.f32.mxu0 0.0
        %3956 = vmatmul.mubr.f32.gmra.mxu0 %v3729
        %v3957 = vpop.f32.mrf.mxu0
        %v3958 = vadd.f32 0.0, %v3957
        %v3959 = vpop.f32.mrf.mxu0
        %3960 = vmatprep.mubr.f32.mxu0 0.0
        %3961 = vmatmul.mubr.f32.gmra.mxu0 %v3732
        %v3962 = vpop.f32.mrf.mxu0
        %v3963 = vadd.f32 0.0, %v3962
        %v3964 = vpop.f32.mrf.mxu0
        %3965 = vmatprep.mubr.f32.mxu0 0.0
        %3966 = vmatmul.mubr.f32.gmra.mxu0 %v3735
        %v3967 = vpop.f32.mrf.mxu0
        %v3968 = vadd.f32 0.0, %v3967
        %v3969 = vpop.f32.mrf.mxu0
        %3970 = vmatprep.mubr.f32.mxu0 0.0
        %3971 = vmatmul.mubr.f32.gmra.mxu0 %v3738
        %v3972 = vpop.f32.mrf.mxu0
        %v3973 = vadd.f32 0.0, %v3972
        %v3974 = vpop.f32.mrf.mxu0
        %3975 = vmatprep.mubr.f32.mxu0 0.0
        %3976 = vmatmul.mubr.f32.gmra.mxu0 %v3741
        %v3977 = vpop.f32.mrf.mxu0
        %v3978 = vadd.f32 0.0, %v3977
        %v3979 = vpop.f32.mrf.mxu0
        %3980 = vmatprep.mubr.f32.mxu0 0.0
        %3981 = vmatmul.mubr.f32.gmra.mxu0 %v3744
        %v3982 = vpop.f32.mrf.mxu0
        %v3983 = vadd.f32 0.0, %v3982
        %v3984 = vpop.f32.mrf.mxu0
        %3985 = vmatprep.mubr.f32.mxu0 0.0
        %3986 = vmatmul.mubr.f32.gmra.mxu0 %v3747
        %v3987 = vpop.f32.mrf.mxu0
        %v3988 = vadd.f32 0.0, %v3987
        %v3989 = vpop.f32.mrf.mxu0
        %3990 = vmatprep.mubr.f32.mxu0 0.0
        %3991 = vmatmul.mubr.f32.gmra.mxu0 %v3750
        %v3992 = vpop.f32.mrf.mxu0
        %v3993 = vadd.f32 0.0, %v3992
        %v3994 = vpop.f32.mrf.mxu0
        %3995 = vmatprep.mubr.f32.mxu0 0.0
        %3996 = vmatmul.mubr.f32.gmra.mxu0 %v3753
        %v3997 = vpop.f32.mrf.mxu0
        %v3998 = vadd.f32 0.0, %v3997
        %v3999 = vpop.f32.mrf.mxu0
        %4000 = vmatprep.mubr.f32.mxu0 0.0
        %4001 = vmatmul.mubr.f32.gmra.mxu0 %v3756
        %v4002 = vpop.f32.mrf.mxu0
        %v4003 = vadd.f32 0.0, %v4002
        %v4004 = vpop.f32.mrf.mxu0
        %4005 = vdwg.mxu0
        %v4006 = vadd.f32 %v3577, %v3828
        %v4007 = vadd.f32 %v3578, %v3833
        %v4008 = vadd.f32 %v3579, %v3838
        %v4009 = vadd.f32 %v3580, %v3843
        %v4010 = vadd.f32 %v3581, %v3848
        %v4011 = vadd.f32 %v3582, %v3853
        %v4012 = vadd.f32 %v3583, %v3858
        %v4013 = vadd.f32 %v3584, %v3863
        %v4014 = vadd.f32 %v3585, %v3868
        %v4015 = vadd.f32 %v3586, %v3873
        %v4016 = vadd.f32 %v3587, %v3878
        %v4017 = vadd.f32 %v3588, %v3883
        %v4018 = vadd.f32 %v3589, %v3888
        %v4019 = vadd.f32 %v3590, %v3893
        %v4020 = vadd.f32 %v3591, %v3898
        %v4021 = vadd.f32 %v3592, %v3903
        %v4022 = vadd.f32 %v3593, %v3908
        %v4023 = vadd.f32 %v3594, %v3913
        %v4024 = vadd.f32 %v3595, %v3918
        %v4025 = vadd.f32 %v3596, %v3923
        %v4026 = vadd.f32 %v3597, %v3928
        %v4027 = vadd.f32 %v3598, %v3933
        %v4028 = vadd.f32 %v3599, %v3938
        %v4029 = vadd.f32 %v3600, %v3943
        %v4030 = vadd.f32 %v3601, %v3948
        %v4031 = vadd.f32 %v3602, %v3953
        %v4032 = vadd.f32 %v3603, %v3958
        %v4033 = vadd.f32 %v3604, %v3963
        %v4034 = vadd.f32 %v3605, %v3968
        %v4035 = vadd.f32 %v3606, %v3973
        %v4036 = vadd.f32 %v3607, %v3978
        %v4037 = vadd.f32 %v3608, %v3983
        %v4038 = vadd.f32 %v3609, %v3988
        %v4039 = vadd.f32 %v3610, %v3993
        %v4040 = vadd.f32 %v3611, %v3998
        %v4041 = vadd.f32 %v3612, %v4003
        %v4042 = vld [vmem:[%s2] sm:$0x1]
        %v4044 = vlaneseq
        %v4045 = vshrl.u32 %v4044, 7
        %v4046 = vsub.s32 0, %v4045
        %v4047 = vrot.slane %v4042, %v4046
        %v4049 = vadd.f32 %v4006, %v4047
        %v4050 = vadd.f32 %v4007, %v4047
        %v4051 = vadd.f32 %v4008, %v4047
        %v4052 = vadd.f32 %v4009, %v4047
        %v4053 = vadd.f32 %v4010, %v4047
        %v4054 = vadd.f32 %v4011, %v4047
        %v4055 = vadd.f32 %v4012, %v4047
        %v4056 = vadd.f32 %v4013, %v4047
        %v4057 = vadd.f32 %v4014, %v4047
        %v4058 = vadd.f32 %v4015, %v4047
        %v4059 = vadd.f32 %v4016, %v4047
        %v4060 = vadd.f32 %v4017, %v4047
        %v4061 = vadd.f32 %v4018, %v4047
        %v4062 = vadd.f32 %v4019, %v4047
        %v4063 = vadd.f32 %v4020, %v4047
        %v4064 = vadd.f32 %v4021, %v4047
        %v4065 = vadd.f32 %v4022, %v4047
        %v4066 = vadd.f32 %v4023, %v4047
        %v4067 = vadd.f32 %v4024, %v4047
        %v4068 = vadd.f32 %v4025, %v4047
        %v4069 = vadd.f32 %v4026, %v4047
        %v4070 = vadd.f32 %v4027, %v4047
        %v4071 = vadd.f32 %v4028, %v4047
        %v4072 = vadd.f32 %v4029, %v4047
        %v4073 = vadd.f32 %v4030, %v4047
        %v4074 = vadd.f32 %v4031, %v4047
        %v4075 = vadd.f32 %v4032, %v4047
        %v4076 = vadd.f32 %v4033, %v4047
        %v4077 = vadd.f32 %v4034, %v4047
        %v4078 = vadd.f32 %v4035, %v4047
        %v4079 = vadd.f32 %v4036, %v4047
        %v4080 = vadd.f32 %v4037, %v4047
        %v4081 = vadd.f32 %v4038, %v4047
        %v4082 = vadd.f32 %v4039, %v4047
        %v4083 = vadd.f32 %v4040, %v4047
        %v4084 = vadd.f32 %v4041, %v4047
        %vm4085 = vcmp.gt.f32.partialorder %v4049, 0.0
        %vm4086 = vcmp.gt.f32.partialorder %v4050, 0.0
        %vm4087 = vcmp.gt.f32.partialorder %v4051, 0.0
        %vm4088 = vcmp.gt.f32.partialorder %v4052, 0.0
        %vm4089 = vcmp.gt.f32.partialorder %v4053, 0.0
        %vm4090 = vcmp.gt.f32.partialorder %v4054, 0.0
        %vm4091 = vcmp.gt.f32.partialorder %v4055, 0.0
        %vm4092 = vcmp.gt.f32.partialorder %v4056, 0.0
        %vm4093 = vcmp.gt.f32.partialorder %v4057, 0.0
        %vm4094 = vcmp.gt.f32.partialorder %v4058, 0.0
        %vm4095 = vcmp.gt.f32.partialorder %v4059, 0.0
        %vm4096 = vcmp.gt.f32.partialorder %v4060, 0.0
        %vm4097 = vcmp.gt.f32.partialorder %v4061, 0.0
        %vm4098 = vcmp.gt.f32.partialorder %v4062, 0.0
        %vm4099 = vcmp.gt.f32.partialorder %v4063, 0.0
        %vm4100 = vcmp.gt.f32.partialorder %v4064, 0.0
        %vm4101 = vcmp.gt.f32.partialorder %v4065, 0.0
        %vm4102 = vcmp.gt.f32.partialorder %v4066, 0.0
        %vm4103 = vcmp.gt.f32.partialorder %v4067, 0.0
        %vm4104 = vcmp.gt.f32.partialorder %v4068, 0.0
        %vm4105 = vcmp.gt.f32.partialorder %v4069, 0.0
        %vm4106 = vcmp.gt.f32.partialorder %v4070, 0.0
        %vm4107 = vcmp.gt.f32.partialorder %v4071, 0.0
        %vm4108 = vcmp.gt.f32.partialorder %v4072, 0.0
        %vm4109 = vcmp.gt.f32.partialorder %v4073, 0.0
        %vm4110 = vcmp.gt.f32.partialorder %v4074, 0.0
        %vm4111 = vcmp.gt.f32.partialorder %v4075, 0.0
        %vm4112 = vcmp.gt.f32.partialorder %v4076, 0.0
        %vm4113 = vcmp.gt.f32.partialorder %v4077, 0.0
        %vm4114 = vcmp.gt.f32.partialorder %v4078, 0.0
        %vm4115 = vcmp.gt.f32.partialorder %v4079, 0.0
        %vm4116 = vcmp.gt.f32.partialorder %v4080, 0.0
        %vm4117 = vcmp.gt.f32.partialorder %v4081, 0.0
        %vm4118 = vcmp.gt.f32.partialorder %v4082, 0.0
        %vm4119 = vcmp.gt.f32.partialorder %v4083, 0.0
        %vm4120 = vcmp.gt.f32.partialorder %v4084, 0.0
        %v4121 = vmul.f32 %v4049, 0.1
        %v4122 = vmul.f32 %v4050, 0.1
        %v4123 = vmul.f32 %v4051, 0.1
        %v4124 = vmul.f32 %v4052, 0.1
        %v4125 = vmul.f32 %v4053, 0.1
        %v4126 = vmul.f32 %v4054, 0.1
        %v4127 = vmul.f32 %v4055, 0.1
        %v4128 = vmul.f32 %v4056, 0.1
        %v4129 = vmul.f32 %v4057, 0.1
        %v4130 = vmul.f32 %v4058, 0.1
        %v4131 = vmul.f32 %v4059, 0.1
        %v4132 = vmul.f32 %v4060, 0.1
        %v4133 = vmul.f32 %v4061, 0.1
        %v4134 = vmul.f32 %v4062, 0.1
        %v4135 = vmul.f32 %v4063, 0.1
        %v4136 = vmul.f32 %v4064, 0.1
        %v4137 = vmul.f32 %v4065, 0.1
        %v4138 = vmul.f32 %v4066, 0.1
        %v4139 = vmul.f32 %v4067, 0.1
        %v4140 = vmul.f32 %v4068, 0.1
        %v4141 = vmul.f32 %v4069, 0.1
        %v4142 = vmul.f32 %v4070, 0.1
        %v4143 = vmul.f32 %v4071, 0.1
        %v4144 = vmul.f32 %v4072, 0.1
        %v4145 = vmul.f32 %v4073, 0.1
        %v4146 = vmul.f32 %v4074, 0.1
        %v4147 = vmul.f32 %v4075, 0.1
        %v4148 = vmul.f32 %v4076, 0.1
        %v4149 = vmul.f32 %v4077, 0.1
        %v4150 = vmul.f32 %v4078, 0.1
        %v4151 = vmul.f32 %v4079, 0.1
        %v4152 = vmul.f32 %v4080, 0.1
        %v4153 = vmul.f32 %v4081, 0.1
        %v4154 = vmul.f32 %v4082, 0.1
        %v4155 = vmul.f32 %v4083, 0.1
        %v4156 = vmul.f32 %v4084, 0.1
        %v4157 = vsel %vm4085, %v4049, %v4121
        %v4158 = vsel %vm4086, %v4050, %v4122
        %v4159 = vsel %vm4087, %v4051, %v4123
        %v4160 = vsel %vm4088, %v4052, %v4124
        %v4161 = vsel %vm4089, %v4053, %v4125
        %v4162 = vsel %vm4090, %v4054, %v4126
        %v4163 = vsel %vm4091, %v4055, %v4127
        %v4164 = vsel %vm4092, %v4056, %v4128
        %v4165 = vsel %vm4093, %v4057, %v4129
        %v4166 = vsel %vm4094, %v4058, %v4130
        %v4167 = vsel %vm4095, %v4059, %v4131
        %v4168 = vsel %vm4096, %v4060, %v4132
        %v4169 = vsel %vm4097, %v4061, %v4133
        %v4170 = vsel %vm4098, %v4062, %v4134
        %v4171 = vsel %vm4099, %v4063, %v4135
        %v4172 = vsel %vm4100, %v4064, %v4136
        %v4173 = vsel %vm4101, %v4065, %v4137
        %v4174 = vsel %vm4102, %v4066, %v4138
        %v4175 = vsel %vm4103, %v4067, %v4139
        %v4176 = vsel %vm4104, %v4068, %v4140
        %v4177 = vsel %vm4105, %v4069, %v4141
        %v4178 = vsel %vm4106, %v4070, %v4142
        %v4179 = vsel %vm4107, %v4071, %v4143
        %v4180 = vsel %vm4108, %v4072, %v4144
        %v4181 = vsel %vm4109, %v4073, %v4145
        %v4182 = vsel %vm4110, %v4074, %v4146
        %v4183 = vsel %vm4111, %v4075, %v4147
        %v4184 = vsel %vm4112, %v4076, %v4148
        %v4185 = vsel %vm4113, %v4077, %v4149
        %v4186 = vsel %vm4114, %v4078, %v4150
        %v4187 = vsel %vm4115, %v4079, %v4151
        %v4188 = vsel %vm4116, %v4080, %v4152
        %v4189 = vsel %vm4117, %v4081, %v4153
        %v4190 = vsel %vm4118, %v4082, %v4154
        %v4191 = vsel %vm4119, %v4083, %v4155
        %v4192 = vsel %vm4120, %v4084, %v4156
        %v4193 = vld [vmem:[%s3] sm:$0xff]
        %v4194 = vld [vmem:[%s4] sm:$0x1]
        %v4196 = vlaneseq
        %v4197 = vshrl.u32 %v4196, 7
        %v4198 = vsub.s32 0, %v4197
        %v4199 = vrot.slane %v4194, %v4198
        %vm4201 = vcmask 64512
        %v4203 = vsel %vm4201, %v4157, 0
        %v4206 = vsel %vm4201, %v4158, 0
        %v4209 = vsel %vm4201, %v4159, 0
        %v4212 = vsel %vm4201, %v4160, 0
        %v4215 = vsel %vm4201, %v4161, 0
        %v4218 = vsel %vm4201, %v4162, 0
        %v4221 = vsel %vm4201, %v4163, 0
        %v4224 = vsel %vm4201, %v4164, 0
        %v4227 = vsel %vm4201, %v4165, 0
        %v4230 = vsel %vm4201, %v4166, 0
        %v4233 = vsel %vm4201, %v4167, 0
        %v4236 = vsel %vm4201, %v4168, 0
        %v4239 = vsel %vm4201, %v4169, 0
        %v4242 = vsel %vm4201, %v4170, 0
        %v4245 = vsel %vm4201, %v4171, 0
        %v4248 = vsel %vm4201, %v4172, 0
        %v4251 = vsel %vm4201, %v4173, 0
        %v4254 = vsel %vm4201, %v4174, 0
        %v4257 = vsel %vm4201, %v4175, 0
        %v4260 = vsel %vm4201, %v4176, 0
        %v4263 = vsel %vm4201, %v4177, 0
        %v4266 = vsel %vm4201, %v4178, 0
        %v4269 = vsel %vm4201, %v4179, 0
        %v4272 = vsel %vm4201, %v4180, 0
        %v4275 = vsel %vm4201, %v4181, 0
        %v4278 = vsel %vm4201, %v4182, 0
        %v4281 = vsel %vm4201, %v4183, 0
        %v4284 = vsel %vm4201, %v4184, 0
        %v4287 = vsel %vm4201, %v4185, 0
        %v4290 = vsel %vm4201, %v4186, 0
        %v4293 = vsel %vm4201, %v4187, 0
        %v4296 = vsel %vm4201, %v4188, 0
        %v4299 = vsel %vm4201, %v4189, 0
        %v4302 = vsel %vm4201, %v4190, 0
        %v4305 = vsel %vm4201, %v4191, 0
        %v4308 = vsel %vm4201, %v4192, 0
        %4310 = vmatprep.subr.mxu0 0.0
        %4311 = vmatpush1.msra.mxu0 0.0
        %4312 = vmatprep.subr.mxu0 0.0
        %4313 = vmatpush1.msra.mxu0 0.0
        %4314 = vmatprep.subr.mxu0 0.0
        %4315 = vmatpush1.msra.mxu0 0.0
        %4316 = vmatprep.subr.mxu0 0.0
        %4317 = vmatpush1.msra.mxu0 0.0
        %4318 = vmatprep.subr.mxu0 0.0
        %4319 = vmatpush1.msra.mxu0 0.0
        %4320 = vmatprep.subr.mxu0 0.0
        %4321 = vmatpush1.msra.mxu0 0.0
        %4322 = vmatprep.subr.mxu0 0.0
        %4323 = vmatpush1.msra.mxu0 0.0
        %4324 = vmatprep.subr.mxu0 0.0
        %4325 = vmatpush1.msra.mxu0 0.0
        %4326 = vmatprep.subr.mxu0 0.0
        %4327 = vmatpush1.msra.mxu0 0.0
        %4328 = vmatprep.subr.mxu0 0.0
        %4329 = vmatpush1.msra.mxu0 0.0
        %4330 = vmatprep.subr.mxu0 0.0
        %4331 = vmatpush1.msra.mxu0 0.0
        %4332 = vmatprep.subr.mxu0 0.0
        %4333 = vmatpush1.msra.mxu0 0.0
        %4334 = vmatprep.subr.mxu0 0.0
        %4335 = vmatpush1.msra.mxu0 0.0
        %4336 = vmatprep.subr.mxu0 0.0
        %4337 = vmatpush1.msra.mxu0 0.0
        %4338 = vmatprep.subr.mxu0 0.0
        %4339 = vmatpush1.msra.mxu0 0.0
        %4340 = vmatprep.subr.mxu0 0.0
        %4341 = vmatpush1.msra.mxu0 %v4193
        %4342 = vmatprep.subr.mxu0 0.0
        %4343 = vmatpush2.msra.mxu0 0.0
        %4344 = vmatprep.subr.mxu0 0.0
        %4345 = vmatpush2.msra.mxu0 0.0
        %4346 = vmatprep.subr.mxu0 0.0
        %4347 = vmatpush2.msra.mxu0 0.0
        %4348 = vmatprep.subr.mxu0 0.0
        %4349 = vmatpush2.msra.mxu0 0.0
        %4350 = vmatprep.subr.mxu0 0.0
        %4351 = vmatpush2.msra.mxu0 0.0
        %4352 = vmatprep.subr.mxu0 0.0
        %4353 = vmatpush2.msra.mxu0 0.0
        %4354 = vmatprep.subr.mxu0 0.0
        %4355 = vmatpush2.msra.mxu0 0.0
        %4356 = vmatprep.subr.mxu0 0.0
        %4357 = vmatpush2.msra.mxu0 0.0
        %4358 = vmatprep.subr.mxu0 0.0
        %4359 = vmatpush2.msra.mxu0 0.0
        %4360 = vmatprep.subr.mxu0 0.0
        %4361 = vmatpush2.msra.mxu0 0.0
        %4362 = vmatprep.subr.mxu0 0.0
        %4363 = vmatpush2.msra.mxu0 0.0
        %4364 = vmatprep.subr.mxu0 0.0
        %4365 = vmatpush2.msra.mxu0 0.0
        %4366 = vmatprep.subr.mxu0 0.0
        %4367 = vmatpush2.msra.mxu0 0.0
        %4368 = vmatprep.subr.mxu0 0.0
        %4369 = vmatpush2.msra.mxu0 0.0
        %4370 = vmatprep.subr.mxu0 0.0
        %4371 = vmatpush2.msra.mxu0 0.0
        %4372 = vmatprep.subr.mxu0 0.0
        %4373 = vmatpush2.msra.mxu0 0.0
        %4374 = vmatprep.mubr.f32.mxu0 0.0
        %4375 = vmatmul.mubr.f32.gmra.mxu0 %v4203
        %v4376 = vpop.f32.mrf.mxu0
        %v4377 = vadd.f32 %v4199, %v4376
        %v4378 = vpop.f32.mrf.mxu0
        %4379 = vmatprep.mubr.f32.mxu0 0.0
        %4380 = vmatmul.mubr.f32.gmra.mxu0 %v4206
        %v4381 = vpop.f32.mrf.mxu0
        %v4382 = vadd.f32 %v4199, %v4381
        %v4383 = vpop.f32.mrf.mxu0
        %4384 = vmatprep.mubr.f32.mxu0 0.0
        %4385 = vmatmul.mubr.f32.gmra.mxu0 %v4209
        %v4386 = vpop.f32.mrf.mxu0
        %v4387 = vadd.f32 %v4199, %v4386
        %v4388 = vpop.f32.mrf.mxu0
        %4389 = vmatprep.mubr.f32.mxu0 0.0
        %4390 = vmatmul.mubr.f32.gmra.mxu0 %v4212
        %v4391 = vpop.f32.mrf.mxu0
        %v4392 = vadd.f32 %v4199, %v4391
        %v4393 = vpop.f32.mrf.mxu0
        %4394 = vmatprep.mubr.f32.mxu0 0.0
        %4395 = vmatmul.mubr.f32.gmra.mxu0 %v4215
        %v4396 = vpop.f32.mrf.mxu0
        %v4397 = vadd.f32 %v4199, %v4396
        %v4398 = vpop.f32.mrf.mxu0
        %4399 = vmatprep.mubr.f32.mxu0 0.0
        %4400 = vmatmul.mubr.f32.gmra.mxu0 %v4218
        %v4401 = vpop.f32.mrf.mxu0
        %v4402 = vadd.f32 %v4199, %v4401
        %v4403 = vpop.f32.mrf.mxu0
        %4404 = vmatprep.mubr.f32.mxu0 0.0
        %4405 = vmatmul.mubr.f32.gmra.mxu0 %v4221
        %v4406 = vpop.f32.mrf.mxu0
        %v4407 = vadd.f32 %v4199, %v4406
        %v4408 = vpop.f32.mrf.mxu0
        %4409 = vmatprep.mubr.f32.mxu0 0.0
        %4410 = vmatmul.mubr.f32.gmra.mxu0 %v4224
        %v4411 = vpop.f32.mrf.mxu0
        %v4412 = vadd.f32 %v4199, %v4411
        %v4413 = vpop.f32.mrf.mxu0
        %4414 = vmatprep.mubr.f32.mxu0 0.0
        %4415 = vmatmul.mubr.f32.gmra.mxu0 %v4227
        %v4416 = vpop.f32.mrf.mxu0
        %v4417 = vadd.f32 %v4199, %v4416
        %v4418 = vpop.f32.mrf.mxu0
        %4419 = vmatprep.mubr.f32.mxu0 0.0
        %4420 = vmatmul.mubr.f32.gmra.mxu0 %v4230
        %v4421 = vpop.f32.mrf.mxu0
        %v4422 = vadd.f32 %v4199, %v4421
        %v4423 = vpop.f32.mrf.mxu0
        %4424 = vmatprep.mubr.f32.mxu0 0.0
        %4425 = vmatmul.mubr.f32.gmra.mxu0 %v4233
        %v4426 = vpop.f32.mrf.mxu0
        %v4427 = vadd.f32 %v4199, %v4426
        %v4428 = vpop.f32.mrf.mxu0
        %4429 = vmatprep.mubr.f32.mxu0 0.0
        %4430 = vmatmul.mubr.f32.gmra.mxu0 %v4236
        %v4431 = vpop.f32.mrf.mxu0
        %v4432 = vadd.f32 %v4199, %v4431
        %v4433 = vpop.f32.mrf.mxu0
        %4434 = vmatprep.mubr.f32.mxu0 0.0
        %4435 = vmatmul.mubr.f32.gmra.mxu0 %v4239
        %v4436 = vpop.f32.mrf.mxu0
        %v4437 = vadd.f32 %v4199, %v4436
        %v4438 = vpop.f32.mrf.mxu0
        %4439 = vmatprep.mubr.f32.mxu0 0.0
        %4440 = vmatmul.mubr.f32.gmra.mxu0 %v4242
        %v4441 = vpop.f32.mrf.mxu0
        %v4442 = vadd.f32 %v4199, %v4441
        %v4443 = vpop.f32.mrf.mxu0
        %4444 = vmatprep.mubr.f32.mxu0 0.0
        %4445 = vmatmul.mubr.f32.gmra.mxu0 %v4245
        %v4446 = vpop.f32.mrf.mxu0
        %v4447 = vadd.f32 %v4199, %v4446
        %v4448 = vpop.f32.mrf.mxu0
        %4449 = vmatprep.mubr.f32.mxu0 0.0
        %4450 = vmatmul.mubr.f32.gmra.mxu0 %v4248
        %v4451 = vpop.f32.mrf.mxu0
        %v4452 = vadd.f32 %v4199, %v4451
        %v4453 = vpop.f32.mrf.mxu0
        %4454 = vmatprep.mubr.f32.mxu0 0.0
        %4455 = vmatmul.mubr.f32.gmra.mxu0 %v4251
        %v4456 = vpop.f32.mrf.mxu0
        %v4457 = vadd.f32 %v4199, %v4456
        %v4458 = vpop.f32.mrf.mxu0
        %4459 = vmatprep.mubr.f32.mxu0 0.0
        %4460 = vmatmul.mubr.f32.gmra.mxu0 %v4254
        %v4461 = vpop.f32.mrf.mxu0
        %v4462 = vadd.f32 %v4199, %v4461
        %v4463 = vpop.f32.mrf.mxu0
        %4464 = vmatprep.mubr.f32.mxu0 0.0
        %4465 = vmatmul.mubr.f32.gmra.mxu0 %v4257
        %v4466 = vpop.f32.mrf.mxu0
        %v4467 = vadd.f32 %v4199, %v4466
        %v4468 = vpop.f32.mrf.mxu0
        %4469 = vmatprep.mubr.f32.mxu0 0.0
        %4470 = vmatmul.mubr.f32.gmra.mxu0 %v4260
        %v4471 = vpop.f32.mrf.mxu0
        %v4472 = vadd.f32 %v4199, %v4471
        %v4473 = vpop.f32.mrf.mxu0
        %4474 = vmatprep.mubr.f32.mxu0 0.0
        %4475 = vmatmul.mubr.f32.gmra.mxu0 %v4263
        %v4476 = vpop.f32.mrf.mxu0
        %v4477 = vadd.f32 %v4199, %v4476
        %v4478 = vpop.f32.mrf.mxu0
        %4479 = vmatprep.mubr.f32.mxu0 0.0
        %4480 = vmatmul.mubr.f32.gmra.mxu0 %v4266
        %v4481 = vpop.f32.mrf.mxu0
        %v4482 = vadd.f32 %v4199, %v4481
        %v4483 = vpop.f32.mrf.mxu0
        %4484 = vmatprep.mubr.f32.mxu0 0.0
        %4485 = vmatmul.mubr.f32.gmra.mxu0 %v4269
        %v4486 = vpop.f32.mrf.mxu0
        %v4487 = vadd.f32 %v4199, %v4486
        %v4488 = vpop.f32.mrf.mxu0
        %4489 = vmatprep.mubr.f32.mxu0 0.0
        %4490 = vmatmul.mubr.f32.gmra.mxu0 %v4272
        %v4491 = vpop.f32.mrf.mxu0
        %v4492 = vadd.f32 %v4199, %v4491
        %v4493 = vpop.f32.mrf.mxu0
        %4494 = vmatprep.mubr.f32.mxu0 0.0
        %4495 = vmatmul.mubr.f32.gmra.mxu0 %v4275
        %v4496 = vpop.f32.mrf.mxu0
        %v4497 = vadd.f32 %v4199, %v4496
        %v4498 = vpop.f32.mrf.mxu0
        %4499 = vmatprep.mubr.f32.mxu0 0.0
        %4500 = vmatmul.mubr.f32.gmra.mxu0 %v4278
        %v4501 = vpop.f32.mrf.mxu0
        %v4502 = vadd.f32 %v4199, %v4501
        %v4503 = vpop.f32.mrf.mxu0
        %4504 = vmatprep.mubr.f32.mxu0 0.0
        %4505 = vmatmul.mubr.f32.gmra.mxu0 %v4281
        %v4506 = vpop.f32.mrf.mxu0
        %v4507 = vadd.f32 %v4199, %v4506
        %v4508 = vpop.f32.mrf.mxu0
        %4509 = vmatprep.mubr.f32.mxu0 0.0
        %4510 = vmatmul.mubr.f32.gmra.mxu0 %v4284
        %v4511 = vpop.f32.mrf.mxu0
        %v4512 = vadd.f32 %v4199, %v4511
        %v4513 = vpop.f32.mrf.mxu0
        %4514 = vmatprep.mubr.f32.mxu0 0.0
        %4515 = vmatmul.mubr.f32.gmra.mxu0 %v4287
        %v4516 = vpop.f32.mrf.mxu0
        %v4517 = vadd.f32 %v4199, %v4516
        %v4518 = vpop.f32.mrf.mxu0
        %4519 = vmatprep.mubr.f32.mxu0 0.0
        %4520 = vmatmul.mubr.f32.gmra.mxu0 %v4290
        %v4521 = vpop.f32.mrf.mxu0
        %v4522 = vadd.f32 %v4199, %v4521
        %v4523 = vpop.f32.mrf.mxu0
        %4524 = vmatprep.mubr.f32.mxu0 0.0
        %4525 = vmatmul.mubr.f32.gmra.mxu0 %v4293
        %v4526 = vpop.f32.mrf.mxu0
        %v4527 = vadd.f32 %v4199, %v4526
        %v4528 = vpop.f32.mrf.mxu0
        %4529 = vmatprep.mubr.f32.mxu0 0.0
        %4530 = vmatmul.mubr.f32.gmra.mxu0 %v4296
        %v4531 = vpop.f32.mrf.mxu0
        %v4532 = vadd.f32 %v4199, %v4531
        %v4533 = vpop.f32.mrf.mxu0
        %4534 = vmatprep.mubr.f32.mxu0 0.0
        %4535 = vmatmul.mubr.f32.gmra.mxu0 %v4299
        %v4536 = vpop.f32.mrf.mxu0
        %v4537 = vadd.f32 %v4199, %v4536
        %v4538 = vpop.f32.mrf.mxu0
        %4539 = vmatprep.mubr.f32.mxu0 0.0
        %4540 = vmatmul.mubr.f32.gmra.mxu0 %v4302
        %v4541 = vpop.f32.mrf.mxu0
        %v4542 = vadd.f32 %v4199, %v4541
        %v4543 = vpop.f32.mrf.mxu0
        %4544 = vmatprep.mubr.f32.mxu0 0.0
        %4545 = vmatmul.mubr.f32.gmra.mxu0 %v4305
        %v4546 = vpop.f32.mrf.mxu0
        %v4547 = vadd.f32 %v4199, %v4546
        %v4548 = vpop.f32.mrf.mxu0
        %4549 = vmatprep.mubr.f32.mxu0 0.0
        %4550 = vmatmul.mubr.f32.gmra.mxu0 %v4308
        %v4551 = vpop.f32.mrf.mxu0
        %v4552 = vadd.f32 %v4199, %v4551
        %v4553 = vpop.f32.mrf.mxu0
        %4554 = vdwg.mxu0
        %4555 = vst [vmem:[%s241] sm:$0xff] %v4377
        %4556 = vst [vmem:[%s241 + $0x8] sm:$0xff] %v4382
        %4557 = vst [vmem:[%s241 + $0x10] sm:$0xff] %v4387
        %4558 = vst [vmem:[%s241 + $0x18] sm:$0xff] %v4392
        %4559 = vst [vmem:[%s241 + $0x20] sm:$0xff] %v4397
        %4560 = vst [vmem:[%s241 + $0x28] sm:$0xff] %v4402
        %4561 = vst [vmem:[%s241 + $0x30] sm:$0xff] %v4407
        %4562 = vst [vmem:[%s241 + $0x38] sm:$0xff] %v4412
        %4563 = vst [vmem:[%s241 + $0x40] sm:$0xff] %v4417
        %4564 = vst [vmem:[%s241 + $0x48] sm:$0xff] %v4422
        %4565 = vst [vmem:[%s241 + $0x50] sm:$0xff] %v4427
        %4566 = vst [vmem:[%s241 + $0x58] sm:$0xff] %v4432
        %4567 = vst [vmem:[%s241 + $0x60] sm:$0xff] %v4437
        %4568 = vst [vmem:[%s241 + $0x68] sm:$0xff] %v4442
        %4569 = vst [vmem:[%s241 + $0x70] sm:$0xff] %v4447
        %4570 = vst [vmem:[%s241 + $0x78] sm:$0xff] %v4452
        %4571 = vst [vmem:[%s241 + $0x80] sm:$0xff] %v4457
        %4572 = vst [vmem:[%s241 + $0x88] sm:$0xff] %v4462
        %4573 = vst [vmem:[%s241 + $0x90] sm:$0xff] %v4467
        %4574 = vst [vmem:[%s241 + $0x98] sm:$0xff] %v4472
        %4575 = vst [vmem:[%s241 + $0xa0] sm:$0xff] %v4477
        %4576 = vst [vmem:[%s241 + $0xa8] sm:$0xff] %v4482
        %4577 = vst [vmem:[%s241 + $0xb0] sm:$0xff] %v4487
        %4578 = vst [vmem:[%s241 + $0xb8] sm:$0xff] %v4492
        %4579 = vst [vmem:[%s241 + $0xc0] sm:$0xff] %v4497
        %4580 = vst [vmem:[%s241 + $0xc8] sm:$0xff] %v4502
        %4581 = vst [vmem:[%s241 + $0xd0] sm:$0xff] %v4507
        %4582 = vst [vmem:[%s241 + $0xd8] sm:$0xff] %v4512
        %4583 = vst [vmem:[%s241 + $0xe0] sm:$0xff] %v4517
        %4584 = vst [vmem:[%s241 + $0xe8] sm:$0xff] %v4522
        %4585 = vst [vmem:[%s241 + $0xf0] sm:$0xff] %v4527
        %4586 = vst [vmem:[%s241 + $0xf8] sm:$0xff] %v4532
        %4587 = vst [vmem:[%s241 + $0x100] sm:$0xff] %v4537
        %4588 = vst [vmem:[%s241 + $0x108] sm:$0xff] %v4542
        %4589 = vst [vmem:[%s241 + $0x110] sm:$0xff] %v4547
        %4590 = vst [vmem:[%s241 + $0x118] sm:$0xff] %v4552
        %s4591 = sand.u32 %s153, 1
        %s4592 = scalar_lea.sflag [#allocation3], %s4591
        %s4593 = sand.u32 %s153, 1
        %s4594 = smul.addr %s4593, 288
        %s4595 = scalar_lea.vmem [#allocation2], %s4594
        // Predicated region
        $region41: #{tpu_custom_call.1} parent=39 // pred_check
          %p4596 = pneg %p163
        $region42: #{tpu_custom_call.1} parent=39 // pred_check_branch
          %4598 = sbr.rel (%p4596) target = $region44
        $region43: #{tpu_custom_call.1} parent=39 // pred_region
          %s4600 = ssub.s32 4608, 4608
          %4601 = vsyncadd %s4592, %s4600
          %s4602 = smul.addr %s24, 36
          %s4603 = smul.addr %s23, 36
          %s4604 = sadd.s32 %s4602, %s4603
          %s4605 = smul.addr %s4604, 128
          %s4606 = scalar_lea.hbm %s5, %s4605
          %s4607 = sshll.u32 %s4595, 4
          %s4608 = int_to_ptr.vmem [resolvable:$true] %s4607
          %4613 = dma.vmem_to_hbm [thread:$0]  %s4608, 4608, %s4606, %s4592, 128, 128, 8
        $region44: #{tpu_custom_call.1} parent=39 // pred_fallthru
          _
      $region40: #{tpu_custom_call.1} parent=5 // pred_fallthru
        _
      %p4614 = scmp.le.s32.totalorder 2, %s14
      // Predicated region
      $region45: #{tpu_custom_call.1} parent=5 // pred_check
        %p4615 = pneg %p4614
      $region46: #{tpu_custom_call.1} parent=5 // pred_check_branch
        %4617 = sbr.rel (%p4615) target = $region48
      $region47: #{tpu_custom_call.1} parent=5 // pred_region
        %s4618 = ssub.s32 %s14, 2
        // Predicated region
        $region49: #{tpu_custom_call.1} parent=47 // pred_check
          %p4619 = pneg %p169
        $region50: #{tpu_custom_call.1} parent=47 // pred_check_branch
          %4621 = sbr.rel (%p4619) target = $region52
        $region51: #{tpu_custom_call.1} parent=47 // pred_region
          %s4622 = sand.u32 %s154, 1
          %s4623 = scalar_lea.sflag [#allocation3], %s4622
          %s4624 = sand.u32 %s154, 1
          %s4625 = smul.addr %s4624, 288
          %s4626 = scalar_lea.vmem [#allocation2], %s4625
          %4627 = dma.done %s4623, 4608
        $region52: #{tpu_custom_call.1} parent=47 // pred_fallthru
          _
      $region48: #{tpu_custom_call.1} parent=5 // pred_fallthru
        _
    $region6: #{tpu_custom_call.1} parent=1 // loop_footer
      %s18 = sadd.s32 1, %s14
    $region7: #{tpu_custom_call.1} parent=1 // loop_footer_branch
      %13 = sbr.rel target = $region3
    $region8: #{tpu_custom_call.1} parent=1 // loop_exit
      _
    %4628 = vsyncpa [#allocation3], 1
    %s4629 = scalar_lea.sflag [#allocation3], 1
    %4630 = vsyncpa %s4629, 1

</llo_original>
